<compile_context>
chip_gen: v6e
topology: v6e:2x2x1
jax: 0.10.0
libtpu: 0.0.40
codegen_flags: <defaults>
</compile_context>

<pallas_src>
import functools

import numpy as np

import jax
import jax.numpy as jnp
from jax.experimental import pallas as pl
from jax.experimental.pallas import tpu as pltpu


# ----------------------------------------------------------------------------
# Fused discriminator + GAN-loss Pallas kernel
# ----------------------------------------------------------------------------
def _disc_gan_loss_kernel(xe_ref, xo_ref, w1b_ref, b1t_ref, w2b_ref, b2t_ref,
                          w3p_ref, b3p_ref, w4p_ref, b4_ref,
                          o_ref, h1e_s, h1o_s, *, batch, neg_slope):
    """Whole discriminator forward + BCE losses for the stacked [fake ; real] batch.

    xe_ref / xo_ref : (2B, Hp/2, K1pad) bf16  — even / odd rows of the spatially padded
                      input, each row flattened as (W+2)*C and zero-padded to K1pad lanes.
    w1b / w2b       : (3, K, N) bf16 banded conv weights (one matrix per kernel-row tap).
    h1e_s / h1o_s   : VMEM scratch holding conv1 output in conv2's padded, parity-split
                      row layout (halo rows/cols stay zero).
    o_ref           : (1, 3) SMEM — [loss_g, loss_d_real, loss_d_fake].
    """
    f32 = jnp.float32
    n_img = xe_ref.shape[0]
    rh = xe_ref.shape[1] - 1            # conv rows per parity  (= H/2)
    n1 = w1b_ref.shape[2]               # conv1 output row width (= W*feat, lane-dense)
    off = (h1e_s.shape[2] - n1) // 2    # left spatial-halo width in lanes (= feat)
    oh2 = w3p_ref.shape[0]              # conv2 output rows (= H/2 for stride 2)

    def lrelu(v):
        return jnp.where(v >= 0.0, v, v * neg_slope)

    # Zero the conv2-input scratches once (only the halo entries actually need it).
    h1e_s[...] = jnp.zeros_like(h1e_s)
    h1o_s[...] = jnp.zeros_like(h1o_s)

    h2_imgs = []                        # per-image conv2 activations (oh2, n2) bf16
    for n in range(n_img):
        # ---- conv1: 3x3 / stride 1 / pad 1 as banded matmuls, split by output-row parity
        # even output rows y=0,2,...  taps -> xe[0:rh], xo[0:rh], xe[1:rh+1]
        acc_e = jnp.dot(xe_ref[n, pl.ds(0, rh), :], w1b_ref[0], preferred_element_type=f32)
        acc_e += jnp.dot(xo_ref[n, pl.ds(0, rh), :], w1b_ref[1], preferred_element_type=f32)
        acc_e += jnp.dot(xe_ref[n, pl.ds(1, rh), :], w1b_ref[2], preferred_element_type=f32)
        # odd output rows  y=1,3,...  taps -> xo[0:rh], xe[1:rh+1], xo[1:rh+1]
        acc_o = jnp.dot(xo_ref[n, pl.ds(0, rh), :], w1b_ref[0], preferred_element_type=f32)
        acc_o += jnp.dot(xe_ref[n, pl.ds(1, rh), :], w1b_ref[1], preferred_element_type=f32)
        acc_o += jnp.dot(xo_ref[n, pl.ds(1, rh), :], w1b_ref[2], preferred_element_type=f32)

        acc_e = lrelu(acc_e + b1t_ref[...])
        acc_o = lrelu(acc_o + b1t_ref[...])

        # Scatter into conv2's zero-padded, parity-split input (padded row r = y + 1):
        #   even padded rows = [zero ; odd-y outputs], odd padded rows = [even-y ; zero]
        h1e_s[n, pl.ds(1, rh), pl.ds(off, n1)] = acc_o.astype(h1e_s.dtype)
        h1o_s[n, pl.ds(0, rh), pl.ds(off, n1)] = acc_e.astype(h1o_s.dtype)

        # ---- conv2: 3x3 / stride 2 / pad 1; output row oy reads padded rows 2oy+i
        acc2 = jnp.dot(h1e_s[n, pl.ds(0, oh2), :], w2b_ref[0], preferred_element_type=f32)
        acc2 += jnp.dot(h1o_s[n, pl.ds(0, oh2), :], w2b_ref[1], preferred_element_type=f32)
        acc2 += jnp.dot(h1e_s[n, pl.ds(1, oh2), :], w2b_ref[2], preferred_element_type=f32)
        acc2 = lrelu(acc2 + b2t_ref[...])
        h2_imgs.append(acc2.astype(jnp.bfloat16))

    # ---- fc3 (blocked over conv2 output rows) + LReLU + fc4 + BCE losses, all fused
    acc3 = jnp.zeros((n_img, w3p_ref.shape[2]), f32)
    for oy in range(oh2):
        rows = jnp.concatenate([h[oy:oy + 1, :] for h in h2_imgs], axis=0)  # (n_img, n2)
        acc3 += jnp.dot(rows, w3p_ref[oy], preferred_element_type=f32)
    h3 = lrelu(acc3 + b3p_ref[...])
    # fc4 has a single output unit: lane reduce (XLU), not an N=1 GEMM.
    logits = jnp.sum(h3 * w4p_ref[...], axis=-1, keepdims=True) + b4_ref[...]  # (2B, 1)

    fake_logits = logits[0:batch]
    real_logits = logits[batch:]

    def bce_sum(x, label):  # numerically-stable BCE-with-logits, summed
        return jnp.sum(jnp.maximum(x, 0.0) - x * label + jnp.log1p(jnp.exp(-jnp.abs(x))))

    inv_b = 1.0 / float(batch)
    o_ref[0, 0] = bce_sum(fake_logits, 1.0) * inv_b   # Adv_G       (label = 1 on fake)
    o_ref[0, 1] = bce_sum(real_logits, 1.0) * inv_b   # Adv_D Real
    o_ref[0, 2] = bce_sum(fake_logits, 0.0) * inv_b   # Adv_D Fake


def _disc_losses(params, xe, xo, batch):
    n_img = xe.shape[0]
    conv2_k = params["w2b"].shape[1]
    vmem = pltpu.MemorySpace.VMEM
    out = pl.pallas_call(
        functools.partial(_disc_gan_loss_kernel, batch=batch, neg_slope=0.2),
        out_shape=jax.ShapeDtypeStruct((1, 3), jnp.float32),
        in_specs=[pl.BlockSpec(memory_space=vmem)] * 10,
        out_specs=pl.BlockSpec(memory_space=pltpu.MemorySpace.SMEM),
        scratch_shapes=[
            pltpu.VMEM((n_img, xe.shape[1], conv2_k), jnp.bfloat16),  # even padded rows
            pltpu.VMEM((n_img, xe.shape[1], conv2_k), jnp.bfloat16),  # odd padded rows
        ],
    )(xe, xo, params["w1b"], params["b1t"], params["w2b"], params["b2t"],
      params["w3p"], params["b3p"], params["w4p"], params["b4"])
    return out[0, 0], out[0, 1], out[0, 2]


# ----------------------------------------------------------------------------
# Synthetic Discriminator params, prepared ONCE in kernel-ready layout
#   conv banded weights, lane-padded K, tiled biases, hidden padded to 128, bf16 cast.
# ----------------------------------------------------------------------------
def init_discriminator_params(key, in_c=4, feat=8, hw=16, hidden=64):
    k1, k2, k3, k4 = jax.random.split(key, 4)
    c2 = 2 * feat
    oh = hw // 2                                   # conv2 output spatial (stride 2)
    flat = oh * oh * c2

    w1 = np.asarray(0.05 * jax.random.normal(k1, (3, 3, in_c, feat), jnp.float32))
    w2 = np.asarray(0.05 * jax.random.normal(k2, (3, 3, feat, c2), jnp.float32))
    w3 = np.asarray(0.05 * jax.random.normal(k3, (flat, hidden), jnp.float32))
    w4 = np.asarray(0.05 * jax.random.normal(k4, (hidden, 1), jnp.float32))
    b1 = np.zeros((feat,), np.float32)
    b2 = np.zeros((c2,), np.float32)
    b3 = np.zeros((hidden,), np.float32)
    b4 = np.zeros((1,), np.float32)

    wp = hw + 2                                    # spatially padded width
    # conv1 banded weights: K = (W+2)*C zero-padded to 128 lanes, N = W*feat (lane-dense)
    k1_real, n1 = wp * in_c, hw * feat
    k1_pad = ((k1_real + 127) // 128) * 128
    w1b = np.zeros((3, k1_pad, n1), np.float32)
    for i in range(3):
        for j in range(3):
            for x in range(hw):
                w1b[i, (x + j) * in_c:(x + j + 1) * in_c, x * feat:(x + 1) * feat] = w1[i, j]
    b1t = np.tile(b1, hw).reshape(1, n1)

    # conv2 (stride 2) banded weights: K = (W+2)*feat (multiple of 16 for bf16), N = oh*c2
    k2_real, n2 = wp * feat, oh * c2
    w2b = np.zeros((3, k2_real, n2), np.float32)
    for i in range(3):
        for j in range(3):
            for x in range(oh):
                w2b[i, (2 * x + j) * feat:(2 * x + j + 1) * feat, x * c2:(x + 1) * c2] = w2[i, j]
    b2t = np.tile(b2, oh).reshape(1, n2)

    # fc3 blocked per conv2 output row (flatten order = (oy, ox, c)), hidden padded to 128
    hid_pad = ((max(hidden, 128) + 127) // 128) * 128
    w3p = np.zeros((oh, n2, hid_pad), np.float32)
    for oy in range(oh):
        w3p[oy, :, :hidden] = w3[oy * n2:(oy + 1) * n2, :]
    b3p = np.zeros((1, hid_pad), np.float32)
    b3p[0, :hidden] = b3
    w4p = np.zeros((1, hid_pad), np.float32)
    w4p[0, :hidden] = w4[:, 0]

    return {
        "w1b": jnp.asarray(w1b, jnp.bfloat16), "b1t": jnp.asarray(b1t, jnp.float32),
        "w2b": jnp.asarray(w2b, jnp.bfloat16), "b2t": jnp.asarray(b2t, jnp.float32),
        "w3p": jnp.asarray(w3p, jnp.bfloat16), "b3p": jnp.asarray(b3p, jnp.float32),
        "w4p": jnp.asarray(w4p, jnp.float32),
        "b4": jnp.asarray(b4.reshape(1, 1), jnp.float32),
    }


# ----------------------------------------------------------------------------
# Adversarial.forward  (gan_type='GAN')
# ----------------------------------------------------------------------------
LOSS_NAMES = ["Adv_G", "Adv_D", "Adv_D Real", "Adv_D Fake"]


@functools.partial(jax.jit, static_argnames=("gan_k",))
def adversarial_forward(params, fake, real, gan_k=1):
    # Discriminator params are fixed in this pure-forward setting, so each of the
    # gan_k iterations yields identical losses: compute ONE pass; the gan_k-mean
    # equals the single-pass value.  Likewise D(fake) == D(stop_gradient(fake)),
    # so the same logits serve the generator loss.
    del gan_k
    fake_detach = jax.lax.stop_gradient(fake)
    batch = fake.shape[0]

    # One stacked batch [fake_detach ; real]; flatten each padded image row to
    # (W+2)*C lanes and split by row parity so the kernel's conv taps are
    # contiguous, unit-stride slices.  (No im2col — this is just the input + halo.)
    x = jnp.concatenate([fake_detach, real], axis=0)            # (2B, C, H, W)
    x = jnp.transpose(x, (0, 2, 3, 1)).astype(jnp.float32)      # NHWC
    n_img, h, w, c = x.shape
    xp = jnp.pad(x, ((0, 0), (1, 1), (1, 1), (0, 0)))
    xp = xp.reshape(n_img, h + 2, (w + 2) * c)
    k1_pad = params["w1b"].shape[1]
    if xp.shape[-1] < k1_pad:                                   # K padding for conv1 GEMM
        xp = jnp.pad(xp, ((0, 0), (0, 0), (0, k1_pad - xp.shape[-1])))
    xe = xp[:, 0::2, :].astype(jnp.bfloat16)                    # even padded rows
    xo = xp[:, 1::2, :].astype(jnp.bfloat16)                    # odd padded rows

    loss_g, loss_d_real, loss_d_fake = _disc_losses(params, xe, xo, batch)
    loss_d = loss_d_fake + loss_d_real                          # matches reference (no 0.5)

    all_loss_items = {
        "Adv_G": loss_g,
        "Adv_D": loss_d,
        "Adv_D Real": loss_d_real,
        "Adv_D Fake": loss_d_fake,
    }
    return loss_g, all_loss_items


# ----------------------------------------------------------------------------
if __name__ == "__main__":
    key = jax.random.PRNGKey(0)
    k_params, k_fake, k_real = jax.random.split(key, 3)

    B, C, H, W = 2, 4, 16, 16
    fake = jax.random.normal(k_fake, (B, C, H, W), jnp.float32)
    real = jax.random.normal(k_real, (B, C, H, W), jnp.float32)

    params = init_discriminator_params(k_params, in_c=C, feat=8, hw=H, hidden=64)

    loss_g, items = adversarial_forward(params, fake, real, gan_k=1)
    loss_g = jax.block_until_ready(loss_g)

    assert bool(jnp.isfinite(loss_g)), "non-finite generator loss"
    for v in items.values():
        assert bool(jnp.isfinite(v)), "non-finite loss item"

    print("KERNEL_OK")
</pallas_src>

<mosaic_0001>
module attributes {stable_mosaic.version = 11 : i64} {
  func.func @_disc_gan_loss_kernel(%arg0: memref<4x9x128xbf16, #tpu.memory_space<vmem>>, %arg1: memref<4x9x128xbf16, #tpu.memory_space<vmem>>, %arg2: memref<3x128x128xbf16, #tpu.memory_space<vmem>>, %arg3: memref<1x128xf32, #tpu.memory_space<vmem>>, %arg4: memref<3x144x128xbf16, #tpu.memory_space<vmem>>, %arg5: memref<1x128xf32, #tpu.memory_space<vmem>>, %arg6: memref<8x128x128xbf16, #tpu.memory_space<vmem>>, %arg7: memref<1x128xf32, #tpu.memory_space<vmem>>, %arg8: memref<1x128xf32, #tpu.memory_space<vmem>>, %arg9: memref<1x1xf32, #tpu.memory_space<vmem>>, %arg10: memref<1x3xf32, #tpu.memory_space<smem>>, %arg11: memref<4x9x144xbf16, #tpu.memory_space<vmem>>, %arg12: memref<4x9x144xbf16, #tpu.memory_space<vmem>>) attributes {dimension_semantics = [], scalar_prefetch = 0 : i64, scratch_operands = 2 : i64, tpu.core_type = #tpu.core_type<tc>} {
    %cst = arith.constant 0.000000e+00 : bf16
    %0 = vector.broadcast %cst : bf16 to vector<4x9x144xbf16>
    %c0 = arith.constant 0 : index
    %c0_0 = arith.constant 0 : index
    %c0_1 = arith.constant 0 : index
    %1 = vector.load %arg11[%c0, %c0_0, %c0_1] : memref<4x9x144xbf16, #tpu.memory_space<vmem>>, vector<4x9x144xbf16>
    tpu.vector_store %arg11[%c0, %c0_0, %c0_1], %0 {strides = array<i32>} : memref<4x9x144xbf16, #tpu.memory_space<vmem>>, vector<4x9x144xbf16>,
    %cst_2 = arith.constant 0.000000e+00 : bf16
    %2 = vector.broadcast %cst_2 : bf16 to vector<4x9x144xbf16>
    %c0_3 = arith.constant 0 : index
    %c0_4 = arith.constant 0 : index
    %c0_5 = arith.constant 0 : index
    %3 = vector.load %arg12[%c0_3, %c0_4, %c0_5] : memref<4x9x144xbf16, #tpu.memory_space<vmem>>, vector<4x9x144xbf16>
    tpu.vector_store %arg12[%c0_3, %c0_4, %c0_5], %2 {strides = array<i32>} : memref<4x9x144xbf16, #tpu.memory_space<vmem>>, vector<4x9x144xbf16>,
    %c0_6 = arith.constant 0 : index
    %c0_7 = arith.constant 0 : index
    %c0_8 = arith.constant 0 : index
    %4 = vector.load %arg0[%c0_6, %c0_7, %c0_8] : memref<4x9x128xbf16, #tpu.memory_space<vmem>>, vector<1x8x128xbf16>
    %5 = vector.shape_cast %4 : vector<1x8x128xbf16> to vector<8x128xbf16>
    %c0_9 = arith.constant 0 : index
    %c0_10 = arith.constant 0 : index
    %c0_11 = arith.constant 0 : index
    %6 = vector.load %arg2[%c0_9, %c0_10, %c0_11] : memref<3x128x128xbf16, #tpu.memory_space<vmem>>, vector<1x128x128xbf16>
    %7 = vector.shape_cast %6 : vector<1x128x128xbf16> to vector<128x128xbf16>
    %cst_12 = arith.constant dense<0.000000e+00> : vector<8x128xf32>
    %8 = tpu.matmul %5, %7, %cst_12 {dimension_numbers = #tpu.dot_dimension_numbers<[1], [0], [0], [1], [0, 0, 1, 1], [], []>} : vector<8x128xbf16>, vector<128x128xbf16>, vector<8x128xf32> -> vector<8x128xf32>
    %c0_13 = arith.constant 0 : index
    %c0_14 = arith.constant 0 : index
    %c0_15 = arith.constant 0 : index
    %9 = vector.load %arg1[%c0_13, %c0_14, %c0_15] : memref<4x9x128xbf16, #tpu.memory_space<vmem>>, vector<1x8x128xbf16>
    %10 = vector.shape_cast %9 : vector<1x8x128xbf16> to vector<8x128xbf16>
    %c1 = arith.constant 1 : index
    %c0_16 = arith.constant 0 : index
    %c0_17 = arith.constant 0 : index
    %11 = vector.load %arg2[%c1, %c0_16, %c0_17] : memref<3x128x128xbf16, #tpu.memory_space<vmem>>, vector<1x128x128xbf16>
    %12 = vector.shape_cast %11 : vector<1x128x128xbf16> to vector<128x128xbf16>
    %cst_18 = arith.constant dense<0.000000e+00> : vector<8x128xf32>
    %13 = tpu.matmul %10, %12, %cst_18 {dimension_numbers = #tpu.dot_dimension_numbers<[1], [0], [0], [1], [0, 0, 1, 1], [], []>} : vector<8x128xbf16>, vector<128x128xbf16>, vector<8x128xf32> -> vector<8x128xf32>
    %14 = arith.addf %8, %13 : vector<8x128xf32>
    %c0_19 = arith.constant 0 : index
    %c1_20 = arith.constant 1 : index
    %c0_21 = arith.constant 0 : index
    %15 = vector.load %arg0[%c0_19, %c1_20, %c0_21] : memref<4x9x128xbf16, #tpu.memory_space<vmem>>, vector<1x8x128xbf16>
    %16 = vector.shape_cast %15 : vector<1x8x128xbf16> to vector<8x128xbf16>
    %c2 = arith.constant 2 : index
    %c0_22 = arith.constant 0 : index
    %c0_23 = arith.constant 0 : index
    %17 = vector.load %arg2[%c2, %c0_22, %c0_23] : memref<3x128x128xbf16, #tpu.memory_space<vmem>>, vector<1x128x128xbf16>
    %18 = vector.shape_cast %17 : vector<1x128x128xbf16> to vector<128x128xbf16>
    %cst_24 = arith.constant dense<0.000000e+00> : vector<8x128xf32>
    %19 = tpu.matmul %16, %18, %cst_24 {dimension_numbers = #tpu.dot_dimension_numbers<[1], [0], [0], [1], [0, 0, 1, 1], [], []>} : vector<8x128xbf16>, vector<128x128xbf16>, vector<8x128xf32> -> vector<8x128xf32>
    %20 = arith.addf %14, %19 : vector<8x128xf32>
    %c0_25 = arith.constant 0 : index
    %c0_26 = arith.constant 0 : index
    %c0_27 = arith.constant 0 : index
    %21 = vector.load %arg1[%c0_25, %c0_26, %c0_27] : memref<4x9x128xbf16, #tpu.memory_space<vmem>>, vector<1x8x128xbf16>
    %22 = vector.shape_cast %21 : vector<1x8x128xbf16> to vector<8x128xbf16>
    %c0_28 = arith.constant 0 : index
    %c0_29 = arith.constant 0 : index
    %c0_30 = arith.constant 0 : index
    %23 = vector.load %arg2[%c0_28, %c0_29, %c0_30] : memref<3x128x128xbf16, #tpu.memory_space<vmem>>, vector<1x128x128xbf16>
    %24 = vector.shape_cast %23 : vector<1x128x128xbf16> to vector<128x128xbf16>
    %cst_31 = arith.constant dense<0.000000e+00> : vector<8x128xf32>
    %25 = tpu.matmul %22, %24, %cst_31 {dimension_numbers = #tpu.dot_dimension_numbers<[1], [0], [0], [1], [0, 0, 1, 1], [], []>} : vector<8x128xbf16>, vector<128x128xbf16>, vector<8x128xf32> -> vector<8x128xf32>
    %c0_32 = arith.constant 0 : index
    %c1_33 = arith.constant 1 : index
    %c0_34 = arith.constant 0 : index
    %26 = vector.load %arg0[%c0_32, %c1_33, %c0_34] : memref<4x9x128xbf16, #tpu.memory_space<vmem>>, vector<1x8x128xbf16>
    %27 = vector.shape_cast %26 : vector<1x8x128xbf16> to vector<8x128xbf16>
    %c1_35 = arith.constant 1 : index
    %c0_36 = arith.constant 0 : index
    %c0_37 = arith.constant 0 : index
    %28 = vector.load %arg2[%c1_35, %c0_36, %c0_37] : memref<3x128x128xbf16, #tpu.memory_space<vmem>>, vector<1x128x128xbf16>
    %29 = vector.shape_cast %28 : vector<1x128x128xbf16> to vector<128x128xbf16>
    %cst_38 = arith.constant dense<0.000000e+00> : vector<8x128xf32>
    %30 = tpu.matmul %27, %29, %cst_38 {dimension_numbers = #tpu.dot_dimension_numbers<[1], [0], [0], [1], [0, 0, 1, 1], [], []>} : vector<8x128xbf16>, vector<128x128xbf16>, vector<8x128xf32> -> vector<8x128xf32>
    %31 = arith.addf %25, %30 : vector<8x128xf32>
    %c0_39 = arith.constant 0 : index
    %c1_40 = arith.constant 1 : index
    %c0_41 = arith.constant 0 : index
    %32 = vector.load %arg1[%c0_39, %c1_40, %c0_41] : memref<4x9x128xbf16, #tpu.memory_space<vmem>>, vector<1x8x128xbf16>
    %33 = vector.shape_cast %32 : vector<1x8x128xbf16> to vector<8x128xbf16>
    %c2_42 = arith.constant 2 : index
    %c0_43 = arith.constant 0 : index
    %c0_44 = arith.constant 0 : index
    %34 = vector.load %arg2[%c2_42, %c0_43, %c0_44] : memref<3x128x128xbf16, #tpu.memory_space<vmem>>, vector<1x128x128xbf16>
    %35 = vector.shape_cast %34 : vector<1x128x128xbf16> to vector<128x128xbf16>
    %cst_45 = arith.constant dense<0.000000e+00> : vector<8x128xf32>
    %36 = tpu.matmul %33, %35, %cst_45 {dimension_numbers = #tpu.dot_dimension_numbers<[1], [0], [0], [1], [0, 0, 1, 1], [], []>} : vector<8x128xbf16>, vector<128x128xbf16>, vector<8x128xf32> -> vector<8x128xf32>
    %37 = arith.addf %31, %36 : vector<8x128xf32>
    %c0_46 = arith.constant 0 : index
    %c0_47 = arith.constant 0 : index
    %38 = vector.load %arg3[%c0_46, %c0_47] : memref<1x128xf32, #tpu.memory_space<vmem>>, vector<1x128xf32>
    %39 = vector.broadcast %38 : vector<1x128xf32> to vector<8x128xf32>
    %40 = arith.addf %20, %39 : vector<8x128xf32>
    %cst_48 = arith.constant 0.000000e+00 : f32
    %41 = vector.broadcast %cst_48 : f32 to vector<8x128xf32>
    %42 = arith.cmpf oge, %40, %41 : vector<8x128xf32>
    %cst_49 = arith.constant 2.000000e-01 : f32
    %43 = vector.broadcast %cst_49 : f32 to vector<8x128xf32>
    %44 = arith.mulf %40, %43 : vector<8x128xf32>
    %45 = arith.select %42, %40, %44 : vector<8x128xi1>, vector<8x128xf32>
    %c0_50 = arith.constant 0 : index
    %c0_51 = arith.constant 0 : index
    %46 = vector.load %arg3[%c0_50, %c0_51] : memref<1x128xf32, #tpu.memory_space<vmem>>, vector<1x128xf32>
    %47 = vector.broadcast %46 : vector<1x128xf32> to vector<8x128xf32>
    %48 = arith.addf %37, %47 : vector<8x128xf32>
    %cst_52 = arith.constant 0.000000e+00 : f32
    %49 = vector.broadcast %cst_52 : f32 to vector<8x128xf32>
    %50 = arith.cmpf oge, %48, %49 : vector<8x128xf32>
    %cst_53 = arith.constant 2.000000e-01 : f32
    %51 = vector.broadcast %cst_53 : f32 to vector<8x128xf32>
    %52 = arith.mulf %48, %51 : vector<8x128xf32>
    %53 = arith.select %50, %48, %52 : vector<8x128xi1>, vector<8x128xf32>
    %54 = arith.truncf %53 : vector<8x128xf32> to vector<8x128xbf16>
    %c0_54 = arith.constant 0 : index
    %c1_55 = arith.constant 1 : index
    %c8 = arith.constant 8 : index
    %55 = vector.load %arg11[%c0_54, %c1_55, %c8] : memref<4x9x144xbf16, #tpu.memory_space<vmem>>, vector<1x8x128xbf16>
    %56 = vector.shape_cast %55 : vector<1x8x128xbf16> to vector<8x128xbf16>
    %57 = vector.shape_cast %54 : vector<8x128xbf16> to vector<1x8x128xbf16>
    tpu.vector_store %arg11[%c0_54, %c1_55, %c8], %57 {strides = array<i32>} : memref<4x9x144xbf16, #tpu.memory_space<vmem>>, vector<1x8x128xbf16>,
    %58 = arith.truncf %45 : vector<8x128xf32> to vector<8x128xbf16>
    %c0_56 = arith.constant 0 : index
    %c0_57 = arith.constant 0 : index
    %c8_58 = arith.constant 8 : index
    %59 = vector.load %arg12[%c0_56, %c0_57, %c8_58] : memref<4x9x144xbf16, #tpu.memory_space<vmem>>, vector<1x8x128xbf16>
    %60 = vector.shape_cast %59 : vector<1x8x128xbf16> to vector<8x128xbf16>
    %61 = vector.shape_cast %58 : vector<8x128xbf16> to vector<1x8x128xbf16>
    tpu.vector_store %arg12[%c0_56, %c0_57, %c8_58], %61 {strides = array<i32>} : memref<4x9x144xbf16, #tpu.memory_space<vmem>>, vector<1x8x128xbf16>,
    %c0_59 = arith.constant 0 : index
    %c0_60 = arith.constant 0 : index
    %c0_61 = arith.constant 0 : index
    %62 = vector.load %arg11[%c0_59, %c0_60, %c0_61] : memref<4x9x144xbf16, #tpu.memory_space<vmem>>, vector<1x8x144xbf16>
    %63 = vector.shape_cast %62 : vector<1x8x144xbf16> to vector<8x144xbf16>
    %c0_62 = arith.constant 0 : index
    %c0_63 = arith.constant 0 : index
    %c0_64 = arith.constant 0 : index
    %64 = vector.load %arg4[%c0_62, %c0_63, %c0_64] : memref<3x144x128xbf16, #tpu.memory_space<vmem>>, vector<1x144x128xbf16>
    %65 = vector.shape_cast %64 : vector<1x144x128xbf16> to vector<144x128xbf16>
    %cst_65 = arith.constant dense<0.000000e+00> : vector<8x128xf32>
    %66 = tpu.matmul %63, %65, %cst_65 {dimension_numbers = #tpu.dot_dimension_numbers<[1], [0], [0], [1], [0, 0, 1, 1], [], []>} : vector<8x144xbf16>, vector<144x128xbf16>, vector<8x128xf32> -> vector<8x128xf32>
    %c0_66 = arith.constant 0 : index
    %c0_67 = arith.constant 0 : index
    %c0_68 = arith.constant 0 : index
    %67 = vector.load %arg12[%c0_66, %c0_67, %c0_68] : memref<4x9x144xbf16, #tpu.memory_space<vmem>>, vector<1x8x144xbf16>
    %68 = vector.shape_cast %67 : vector<1x8x144xbf16> to vector<8x144xbf16>
    %c1_69 = arith.constant 1 : index
    %c0_70 = arith.constant 0 : index
    %c0_71 = arith.constant 0 : index
    %69 = vector.load %arg4[%c1_69, %c0_70, %c0_71] : memref<3x144x128xbf16, #tpu.memory_space<vmem>>, vector<1x144x128xbf16>
    %70 = vector.shape_cast %69 : vector<1x144x128xbf16> to vector<144x128xbf16>
    %cst_72 = arith.constant dense<0.000000e+00> : vector<8x128xf32>
    %71 = tpu.matmul %68, %70, %cst_72 {dimension_numbers = #tpu.dot_dimension_numbers<[1], [0], [0], [1], [0, 0, 1, 1], [], []>} : vector<8x144xbf16>, vector<144x128xbf16>, vector<8x128xf32> -> vector<8x128xf32>
    %72 = arith.addf %66, %71 : vector<8x128xf32>
    %c0_73 = arith.constant 0 : index
    %c1_74 = arith.constant 1 : index
    %c0_75 = arith.constant 0 : index
    %73 = vector.load %arg11[%c0_73, %c1_74, %c0_75] : memref<4x9x144xbf16, #tpu.memory_space<vmem>>, vector<1x8x144xbf16>
    %74 = vector.shape_cast %73 : vector<1x8x144xbf16> to vector<8x144xbf16>
    %c2_76 = arith.constant 2 : index
    %c0_77 = arith.constant 0 : index
    %c0_78 = arith.constant 0 : index
    %75 = vector.load %arg4[%c2_76, %c0_77, %c0_78] : memref<3x144x128xbf16, #tpu.memory_space<vmem>>, vector<1x144x128xbf16>
    %76 = vector.shape_cast %75 : vector<1x144x128xbf16> to vector<144x128xbf16>
    %cst_79 = arith.constant dense<0.000000e+00> : vector<8x128xf32>
    %77 = tpu.matmul %74, %76, %cst_79 {dimension_numbers = #tpu.dot_dimension_numbers<[1], [0], [0], [1], [0, 0, 1, 1], [], []>} : vector<8x144xbf16>, vector<144x128xbf16>, vector<8x128xf32> -> vector<8x128xf32>
    %78 = arith.addf %72, %77 : vector<8x128xf32>
    %c0_80 = arith.constant 0 : index
    %c0_81 = arith.constant 0 : index
    %79 = vector.load %arg5[%c0_80, %c0_81] : memref<1x128xf32, #tpu.memory_space<vmem>>, vector<1x128xf32>
    %80 = vector.broadcast %79 : vector<1x128xf32> to vector<8x128xf32>
    %81 = arith.addf %78, %80 : vector<8x128xf32>
    %cst_82 = arith.constant 0.000000e+00 : f32
    %82 = vector.broadcast %cst_82 : f32 to vector<8x128xf32>
    %83 = arith.cmpf oge, %81, %82 : vector<8x128xf32>
    %cst_83 = arith.constant 2.000000e-01 : f32
    %84 = vector.broadcast %cst_83 : f32 to vector<8x128xf32>
    %85 = arith.mulf %81, %84 : vector<8x128xf32>
    %86 = arith.select %83, %81, %85 : vector<8x128xi1>, vector<8x128xf32>
    %87 = arith.truncf %86 : vector<8x128xf32> to vector<8x128xbf16>
    %c1_84 = arith.constant 1 : index
    %c0_85 = arith.constant 0 : index
    %c0_86 = arith.constant 0 : index
    %88 = vector.load %arg0[%c1_84, %c0_85, %c0_86] : memref<4x9x128xbf16, #tpu.memory_space<vmem>>, vector<1x8x128xbf16>
    %89 = vector.shape_cast %88 : vector<1x8x128xbf16> to vector<8x128xbf16>
    %c0_87 = arith.constant 0 : index
    %c0_88 = arith.constant 0 : index
    %c0_89 = arith.constant 0 : index
    %90 = vector.load %arg2[%c0_87, %c0_88, %c0_89] : memref<3x128x128xbf16, #tpu.memory_space<vmem>>, vector<1x128x128xbf16>
    %91 = vector.shape_cast %90 : vector<1x128x128xbf16> to vector<128x128xbf16>
    %cst_90 = arith.constant dense<0.000000e+00> : vector<8x128xf32>
    %92 = tpu.matmul %89, %91, %cst_90 {dimension_numbers = #tpu.dot_dimension_numbers<[1], [0], [0], [1], [0, 0, 1, 1], [], []>} : vector<8x128xbf16>, vector<128x128xbf16>, vector<8x128xf32> -> vector<8x128xf32>
    %c1_91 = arith.constant 1 : index
    %c0_92 = arith.constant 0 : index
    %c0_93 = arith.constant 0 : index
    %93 = vector.load %arg1[%c1_91, %c0_92, %c0_93] : memref<4x9x128xbf16, #tpu.memory_space<vmem>>, vector<1x8x128xbf16>
    %94 = vector.shape_cast %93 : vector<1x8x128xbf16> to vector<8x128xbf16>
    %c1_94 = arith.constant 1 : index
    %c0_95 = arith.constant 0 : index
    %c0_96 = arith.constant 0 : index
    %95 = vector.load %arg2[%c1_94, %c0_95, %c0_96] : memref<3x128x128xbf16, #tpu.memory_space<vmem>>, vector<1x128x128xbf16>
    %96 = vector.shape_cast %95 : vector<1x128x128xbf16> to vector<128x128xbf16>
    %cst_97 = arith.constant dense<0.000000e+00> : vector<8x128xf32>
    %97 = tpu.matmul %94, %96, %cst_97 {dimension_numbers = #tpu.dot_dimension_numbers<[1], [0], [0], [1], [0, 0, 1, 1], [], []>} : vector<8x128xbf16>, vector<128x128xbf16>, vector<8x128xf32> -> vector<8x128xf32>
    %98 = arith.addf %92, %97 : vector<8x128xf32>
    %c1_98 = arith.constant 1 : index
    %c1_99 = arith.constant 1 : index
    %c0_100 = arith.constant 0 : index
    %99 = vector.load %arg0[%c1_98, %c1_99, %c0_100] : memref<4x9x128xbf16, #tpu.memory_space<vmem>>, vector<1x8x128xbf16>
    %100 = vector.shape_cast %99 : vector<1x8x128xbf16> to vector<8x128xbf16>
    %c2_101 = arith.constant 2 : index
    %c0_102 = arith.constant 0 : index
    %c0_103 = arith.constant 0 : index
    %101 = vector.load %arg2[%c2_101, %c0_102, %c0_103] : memref<3x128x128xbf16, #tpu.memory_space<vmem>>, vector<1x128x128xbf16>
    %102 = vector.shape_cast %101 : vector<1x128x128xbf16> to vector<128x128xbf16>
    %cst_104 = arith.constant dense<0.000000e+00> : vector<8x128xf32>
    %103 = tpu.matmul %100, %102, %cst_104 {dimension_numbers = #tpu.dot_dimension_numbers<[1], [0], [0], [1], [0, 0, 1, 1], [], []>} : vector<8x128xbf16>, vector<128x128xbf16>, vector<8x128xf32> -> vector<8x128xf32>
    %104 = arith.addf %98, %103 : vector<8x128xf32>
    %c1_105 = arith.constant 1 : index
    %c0_106 = arith.constant 0 : index
    %c0_107 = arith.constant 0 : index
    %105 = vector.load %arg1[%c1_105, %c0_106, %c0_107] : memref<4x9x128xbf16, #tpu.memory_space<vmem>>, vector<1x8x128xbf16>
    %106 = vector.shape_cast %105 : vector<1x8x128xbf16> to vector<8x128xbf16>
    %c0_108 = arith.constant 0 : index
    %c0_109 = arith.constant 0 : index
    %c0_110 = arith.constant 0 : index
    %107 = vector.load %arg2[%c0_108, %c0_109, %c0_110] : memref<3x128x128xbf16, #tpu.memory_space<vmem>>, vector<1x128x128xbf16>
    %108 = vector.shape_cast %107 : vector<1x128x128xbf16> to vector<128x128xbf16>
    %cst_111 = arith.constant dense<0.000000e+00> : vector<8x128xf32>
    %109 = tpu.matmul %106, %108, %cst_111 {dimension_numbers = #tpu.dot_dimension_numbers<[1], [0], [0], [1], [0, 0, 1, 1], [], []>} : vector<8x128xbf16>, vector<128x128xbf16>, vector<8x128xf32> -> vector<8x128xf32>
    %c1_112 = arith.constant 1 : index
    %c1_113 = arith.constant 1 : index
    %c0_114 = arith.constant 0 : index
    %110 = vector.load %arg0[%c1_112, %c1_113, %c0_114] : memref<4x9x128xbf16, #tpu.memory_space<vmem>>, vector<1x8x128xbf16>
    %111 = vector.shape_cast %110 : vector<1x8x128xbf16> to vector<8x128xbf16>
    %c1_115 = arith.constant 1 : index
    %c0_116 = arith.constant 0 : index
    %c0_117 = arith.constant 0 : index
    %112 = vector.load %arg2[%c1_115, %c0_116, %c0_117] : memref<3x128x128xbf16, #tpu.memory_space<vmem>>, vector<1x128x128xbf16>
    %113 = vector.shape_cast %112 : vector<1x128x128xbf16> to vector<128x128xbf16>
    %cst_118 = arith.constant dense<0.000000e+00> : vector<8x128xf32>
    %114 = tpu.matmul %111, %113, %cst_118 {dimension_numbers = #tpu.dot_dimension_numbers<[1], [0], [0], [1], [0, 0, 1, 1], [], []>} : vector<8x128xbf16>, vector<128x128xbf16>, vector<8x128xf32> -> vector<8x128xf32>
    %115 = arith.addf %109, %114 : vector<8x128xf32>
    %c1_119 = arith.constant 1 : index
    %c1_120 = arith.constant 1 : index
    %c0_121 = arith.constant 0 : index
    %116 = vector.load %arg1[%c1_119, %c1_120, %c0_121] : memref<4x9x128xbf16, #tpu.memory_space<vmem>>, vector<1x8x128xbf16>
    %117 = vector.shape_cast %116 : vector<1x8x128xbf16> to vector<8x128xbf16>
    %c2_122 = arith.constant 2 : index
    %c0_123 = arith.constant 0 : index
    %c0_124 = arith.constant 0 : index
    %118 = vector.load %arg2[%c2_122, %c0_123, %c0_124] : memref<3x128x128xbf16, #tpu.memory_space<vmem>>, vector<1x128x128xbf16>
    %119 = vector.shape_cast %118 : vector<1x128x128xbf16> to vector<128x128xbf16>
    %cst_125 = arith.constant dense<0.000000e+00> : vector<8x128xf32>
    %120 = tpu.matmul %117, %119, %cst_125 {dimension_numbers = #tpu.dot_dimension_numbers<[1], [0], [0], [1], [0, 0, 1, 1], [], []>} : vector<8x128xbf16>, vector<128x128xbf16>, vector<8x128xf32> -> vector<8x128xf32>
    %121 = arith.addf %115, %120 : vector<8x128xf32>
    %c0_126 = arith.constant 0 : index
    %c0_127 = arith.constant 0 : index
    %122 = vector.load %arg3[%c0_126, %c0_127] : memref<1x128xf32, #tpu.memory_space<vmem>>, vector<1x128xf32>
    %123 = vector.broadcast %122 : vector<1x128xf32> to vector<8x128xf32>
    %124 = arith.addf %104, %123 : vector<8x128xf32>
    %cst_128 = arith.constant 0.000000e+00 : f32
    %125 = vector.broadcast %cst_128 : f32 to vector<8x128xf32>
    %126 = arith.cmpf oge, %124, %125 : vector<8x128xf32>
    %cst_129 = arith.constant 2.000000e-01 : f32
    %127 = vector.broadcast %cst_129 : f32 to vector<8x128xf32>
    %128 = arith.mulf %124, %127 : vector<8x128xf32>
    %129 = arith.select %126, %124, %128 : vector<8x128xi1>, vector<8x128xf32>
    %c0_130 = arith.constant 0 : index
    %c0_131 = arith.constant 0 : index
    %130 = vector.load %arg3[%c0_130, %c0_131] : memref<1x128xf32, #tpu.memory_space<vmem>>, vector<1x128xf32>
    %131 = vector.broadcast %130 : vector<1x128xf32> to vector<8x128xf32>
    %132 = arith.addf %121, %131 : vector<8x128xf32>
    %cst_132 = arith.constant 0.000000e+00 : f32
    %133 = vector.broadcast %cst_132 : f32 to vector<8x128xf32>
    %134 = arith.cmpf oge, %132, %133 : vector<8x128xf32>
    %cst_133 = arith.constant 2.000000e-01 : f32
    %135 = vector.broadcast %cst_133 : f32 to vector<8x128xf32>
    %136 = arith.mulf %132, %135 : vector<8x128xf32>
    %137 = arith.select %134, %132, %136 : vector<8x128xi1>, vector<8x128xf32>
    %138 = arith.truncf %137 : vector<8x128xf32> to vector<8x128xbf16>
    %c1_134 = arith.constant 1 : index
    %c1_135 = arith.constant 1 : index
    %c8_136 = arith.constant 8 : index
    %139 = vector.load %arg11[%c1_134, %c1_135, %c8_136] : memref<4x9x144xbf16, #tpu.memory_space<vmem>>, vector<1x8x128xbf16>
    %140 = vector.shape_cast %139 : vector<1x8x128xbf16> to vector<8x128xbf16>
    %141 = vector.shape_cast %138 : vector<8x128xbf16> to vector<1x8x128xbf16>
    tpu.vector_store %arg11[%c1_134, %c1_135, %c8_136], %141 {strides = array<i32>} : memref<4x9x144xbf16, #tpu.memory_space<vmem>>, vector<1x8x128xbf16>,
    %142 = arith.truncf %129 : vector<8x128xf32> to vector<8x128xbf16>
    %c1_137 = arith.constant 1 : index
    %c0_138 = arith.constant 0 : index
    %c8_139 = arith.constant 8 : index
    %143 = vector.load %arg12[%c1_137, %c0_138, %c8_139] : memref<4x9x144xbf16, #tpu.memory_space<vmem>>, vector<1x8x128xbf16>
    %144 = vector.shape_cast %143 : vector<1x8x128xbf16> to vector<8x128xbf16>
    %145 = vector.shape_cast %142 : vector<8x128xbf16> to vector<1x8x128xbf16>
    tpu.vector_store %arg12[%c1_137, %c0_138, %c8_139], %145 {strides = array<i32>} : memref<4x9x144xbf16, #tpu.memory_space<vmem>>, vector<1x8x128xbf16>,
    %c1_140 = arith.constant 1 : index
    %c0_141 = arith.constant 0 : index
    %c0_142 = arith.constant 0 : index
    %146 = vector.load %arg11[%c1_140, %c0_141, %c0_142] : memref<4x9x144xbf16, #tpu.memory_space<vmem>>, vector<1x8x144xbf16>
    %147 = vector.shape_cast %146 : vector<1x8x144xbf16> to vector<8x144xbf16>
    %c0_143 = arith.constant 0 : index
    %c0_144 = arith.constant 0 : index
    %c0_145 = arith.constant 0 : index
    %148 = vector.load %arg4[%c0_143, %c0_144, %c0_145] : memref<3x144x128xbf16, #tpu.memory_space<vmem>>, vector<1x144x128xbf16>
    %149 = vector.shape_cast %148 : vector<1x144x128xbf16> to vector<144x128xbf16>
    %cst_146 = arith.constant dense<0.000000e+00> : vector<8x128xf32>
    %150 = tpu.matmul %147, %149, %cst_146 {dimension_numbers = #tpu.dot_dimension_numbers<[1], [0], [0], [1], [0, 0, 1, 1], [], []>} : vector<8x144xbf16>, vector<144x128xbf16>, vector<8x128xf32> -> vector<8x128xf32>
    %c1_147 = arith.constant 1 : index
    %c0_148 = arith.constant 0 : index
    %c0_149 = arith.constant 0 : index
    %151 = vector.load %arg12[%c1_147, %c0_148, %c0_149] : memref<4x9x144xbf16, #tpu.memory_space<vmem>>, vector<1x8x144xbf16>
    %152 = vector.shape_cast %151 : vector<1x8x144xbf16> to vector<8x144xbf16>
    %c1_150 = arith.constant 1 : index
    %c0_151 = arith.constant 0 : index
    %c0_152 = arith.constant 0 : index
    %153 = vector.load %arg4[%c1_150, %c0_151, %c0_152] : memref<3x144x128xbf16, #tpu.memory_space<vmem>>, vector<1x144x128xbf16>
    %154 = vector.shape_cast %153 : vector<1x144x128xbf16> to vector<144x128xbf16>
    %cst_153 = arith.constant dense<0.000000e+00> : vector<8x128xf32>
    %155 = tpu.matmul %152, %154, %cst_153 {dimension_numbers = #tpu.dot_dimension_numbers<[1], [0], [0], [1], [0, 0, 1, 1], [], []>} : vector<8x144xbf16>, vector<144x128xbf16>, vector<8x128xf32> -> vector<8x128xf32>
    %156 = arith.addf %150, %155 : vector<8x128xf32>
    %c1_154 = arith.constant 1 : index
    %c1_155 = arith.constant 1 : index
    %c0_156 = arith.constant 0 : index
    %157 = vector.load %arg11[%c1_154, %c1_155, %c0_156] : memref<4x9x144xbf16, #tpu.memory_space<vmem>>, vector<1x8x144xbf16>
    %158 = vector.shape_cast %157 : vector<1x8x144xbf16> to vector<8x144xbf16>
    %c2_157 = arith.constant 2 : index
    %c0_158 = arith.constant 0 : index
    %c0_159 = arith.constant 0 : index
    %159 = vector.load %arg4[%c2_157, %c0_158, %c0_159] : memref<3x144x128xbf16, #tpu.memory_space<vmem>>, vector<1x144x128xbf16>
    %160 = vector.shape_cast %159 : vector<1x144x128xbf16> to vector<144x128xbf16>
    %cst_160 = arith.constant dense<0.000000e+00> : vector<8x128xf32>
    %161 = tpu.matmul %158, %160, %cst_160 {dimension_numbers = #tpu.dot_dimension_numbers<[1], [0], [0], [1], [0, 0, 1, 1], [], []>} : vector<8x144xbf16>, vector<144x128xbf16>, vector<8x128xf32> -> vector<8x128xf32>
    %162 = arith.addf %156, %161 : vector<8x128xf32>
    %c0_161 = arith.constant 0 : index
    %c0_162 = arith.constant 0 : index
    %163 = vector.load %arg5[%c0_161, %c0_162] : memref<1x128xf32, #tpu.memory_space<vmem>>, vector<1x128xf32>
    %164 = vector.broadcast %163 : vector<1x128xf32> to vector<8x128xf32>
    %165 = arith.addf %162, %164 : vector<8x128xf32>
    %cst_163 = arith.constant 0.000000e+00 : f32
    %166 = vector.broadcast %cst_163 : f32 to vector<8x128xf32>
    %167 = arith.cmpf oge, %165, %166 : vector<8x128xf32>
    %cst_164 = arith.constant 2.000000e-01 : f32
    %168 = vector.broadcast %cst_164 : f32 to vector<8x128xf32>
    %169 = arith.mulf %165, %168 : vector<8x128xf32>
    %170 = arith.select %167, %165, %169 : vector<8x128xi1>, vector<8x128xf32>
    %171 = arith.truncf %170 : vector<8x128xf32> to vector<8x128xbf16>
    %c2_165 = arith.constant 2 : index
    %c0_166 = arith.constant 0 : index
    %c0_167 = arith.constant 0 : index
    %172 = vector.load %arg0[%c2_165, %c0_166, %c0_167] : memref<4x9x128xbf16, #tpu.memory_space<vmem>>, vector<1x8x128xbf16>
    %173 = vector.shape_cast %172 : vector<1x8x128xbf16> to vector<8x128xbf16>
    %c0_168 = arith.constant 0 : index
    %c0_169 = arith.constant 0 : index
    %c0_170 = arith.constant 0 : index
    %174 = vector.load %arg2[%c0_168, %c0_169, %c0_170] : memref<3x128x128xbf16, #tpu.memory_space<vmem>>, vector<1x128x128xbf16>
    %175 = vector.shape_cast %174 : vector<1x128x128xbf16> to vector<128x128xbf16>
    %cst_171 = arith.constant dense<0.000000e+00> : vector<8x128xf32>
    %176 = tpu.matmul %173, %175, %cst_171 {dimension_numbers = #tpu.dot_dimension_numbers<[1], [0], [0], [1], [0, 0, 1, 1], [], []>} : vector<8x128xbf16>, vector<128x128xbf16>, vector<8x128xf32> -> vector<8x128xf32>
    %c2_172 = arith.constant 2 : index
    %c0_173 = arith.constant 0 : index
    %c0_174 = arith.constant 0 : index
    %177 = vector.load %arg1[%c2_172, %c0_173, %c0_174] : memref<4x9x128xbf16, #tpu.memory_space<vmem>>, vector<1x8x128xbf16>
    %178 = vector.shape_cast %177 : vector<1x8x128xbf16> to vector<8x128xbf16>
    %c1_175 = arith.constant 1 : index
    %c0_176 = arith.constant 0 : index
    %c0_177 = arith.constant 0 : index
    %179 = vector.load %arg2[%c1_175, %c0_176, %c0_177] : memref<3x128x128xbf16, #tpu.memory_space<vmem>>, vector<1x128x128xbf16>
    %180 = vector.shape_cast %179 : vector<1x128x128xbf16> to vector<128x128xbf16>
    %cst_178 = arith.constant dense<0.000000e+00> : vector<8x128xf32>
    %181 = tpu.matmul %178, %180, %cst_178 {dimension_numbers = #tpu.dot_dimension_numbers<[1], [0], [0], [1], [0, 0, 1, 1], [], []>} : vector<8x128xbf16>, vector<128x128xbf16>, vector<8x128xf32> -> vector<8x128xf32>
    %182 = arith.addf %176, %181 : vector<8x128xf32>
    %c2_179 = arith.constant 2 : index
    %c1_180 = arith.constant 1 : index
    %c0_181 = arith.constant 0 : index
    %183 = vector.load %arg0[%c2_179, %c1_180, %c0_181] : memref<4x9x128xbf16, #tpu.memory_space<vmem>>, vector<1x8x128xbf16>
    %184 = vector.shape_cast %183 : vector<1x8x128xbf16> to vector<8x128xbf16>
    %c2_182 = arith.constant 2 : index
    %c0_183 = arith.constant 0 : index
    %c0_184 = arith.constant 0 : index
    %185 = vector.load %arg2[%c2_182, %c0_183, %c0_184] : memref<3x128x128xbf16, #tpu.memory_space<vmem>>, vector<1x128x128xbf16>
    %186 = vector.shape_cast %185 : vector<1x128x128xbf16> to vector<128x128xbf16>
    %cst_185 = arith.constant dense<0.000000e+00> : vector<8x128xf32>
    %187 = tpu.matmul %184, %186, %cst_185 {dimension_numbers = #tpu.dot_dimension_numbers<[1], [0], [0], [1], [0, 0, 1, 1], [], []>} : vector<8x128xbf16>, vector<128x128xbf16>, vector<8x128xf32> -> vector<8x128xf32>
    %188 = arith.addf %182, %187 : vector<8x128xf32>
    %c2_186 = arith.constant 2 : index
    %c0_187 = arith.constant 0 : index
    %c0_188 = arith.constant 0 : index
    %189 = vector.load %arg1[%c2_186, %c0_187, %c0_188] : memref<4x9x128xbf16, #tpu.memory_space<vmem>>, vector<1x8x128xbf16>
    %190 = vector.shape_cast %189 : vector<1x8x128xbf16> to vector<8x128xbf16>
    %c0_189 = arith.constant 0 : index
    %c0_190 = arith.constant 0 : index
    %c0_191 = arith.constant 0 : index
    %191 = vector.load %arg2[%c0_189, %c0_190, %c0_191] : memref<3x128x128xbf16, #tpu.memory_space<vmem>>, vector<1x128x128xbf16>
    %192 = vector.shape_cast %191 : vector<1x128x128xbf16> to vector<128x128xbf16>
    %cst_192 = arith.constant dense<0.000000e+00> : vector<8x128xf32>
    %193 = tpu.matmul %190, %192, %cst_192 {dimension_numbers = #tpu.dot_dimension_numbers<[1], [0], [0], [1], [0, 0, 1, 1], [], []>} : vector<8x128xbf16>, vector<128x128xbf16>, vector<8x128xf32> -> vector<8x128xf32>
    %c2_193 = arith.constant 2 : index
    %c1_194 = arith.constant 1 : index
    %c0_195 = arith.constant 0 : index
    %194 = vector.load %arg0[%c2_193, %c1_194, %c0_195] : memref<4x9x128xbf16, #tpu.memory_space<vmem>>, vector<1x8x128xbf16>
    %195 = vector.shape_cast %194 : vector<1x8x128xbf16> to vector<8x128xbf16>
    %c1_196 = arith.constant 1 : index
    %c0_197 = arith.constant 0 : index
    %c0_198 = arith.constant 0 : index
    %196 = vector.load %arg2[%c1_196, %c0_197, %c0_198] : memref<3x128x128xbf16, #tpu.memory_space<vmem>>, vector<1x128x128xbf16>
    %197 = vector.shape_cast %196 : vector<1x128x128xbf16> to vector<128x128xbf16>
    %cst_199 = arith.constant dense<0.000000e+00> : vector<8x128xf32>
    %198 = tpu.matmul %195, %197, %cst_199 {dimension_numbers = #tpu.dot_dimension_numbers<[1], [0], [0], [1], [0, 0, 1, 1], [], []>} : vector<8x128xbf16>, vector<128x128xbf16>, vector<8x128xf32> -> vector<8x128xf32>
    %199 = arith.addf %193, %198 : vector<8x128xf32>
    %c2_200 = arith.constant 2 : index
    %c1_201 = arith.constant 1 : index
    %c0_202 = arith.constant 0 : index
    %200 = vector.load %arg1[%c2_200, %c1_201, %c0_202] : memref<4x9x128xbf16, #tpu.memory_space<vmem>>, vector<1x8x128xbf16>
    %201 = vector.shape_cast %200 : vector<1x8x128xbf16> to vector<8x128xbf16>
    %c2_203 = arith.constant 2 : index
    %c0_204 = arith.constant 0 : index
    %c0_205 = arith.constant 0 : index
    %202 = vector.load %arg2[%c2_203, %c0_204, %c0_205] : memref<3x128x128xbf16, #tpu.memory_space<vmem>>, vector<1x128x128xbf16>
    %203 = vector.shape_cast %202 : vector<1x128x128xbf16> to vector<128x128xbf16>
    %cst_206 = arith.constant dense<0.000000e+00> : vector<8x128xf32>
    %204 = tpu.matmul %201, %203, %cst_206 {dimension_numbers = #tpu.dot_dimension_numbers<[1], [0], [0], [1], [0, 0, 1, 1], [], []>} : vector<8x128xbf16>, vector<128x128xbf16>, vector<8x128xf32> -> vector<8x128xf32>
    %205 = arith.addf %199, %204 : vector<8x128xf32>
    %c0_207 = arith.constant 0 : index
    %c0_208 = arith.constant 0 : index
    %206 = vector.load %arg3[%c0_207, %c0_208] : memref<1x128xf32, #tpu.memory_space<vmem>>, vector<1x128xf32>
    %207 = vector.broadcast %206 : vector<1x128xf32> to vector<8x128xf32>
    %208 = arith.addf %188, %207 : vector<8x128xf32>
    %cst_209 = arith.constant 0.000000e+00 : f32
    %209 = vector.broadcast %cst_209 : f32 to vector<8x128xf32>
    %210 = arith.cmpf oge, %208, %209 : vector<8x128xf32>
    %cst_210 = arith.constant 2.000000e-01 : f32
    %211 = vector.broadcast %cst_210 : f32 to vector<8x128xf32>
    %212 = arith.mulf %208, %211 : vector<8x128xf32>
    %213 = arith.select %210, %208, %212 : vector<8x128xi1>, vector<8x128xf32>
    %c0_211 = arith.constant 0 : index
    %c0_212 = arith.constant 0 : index
    %214 = vector.load %arg3[%c0_211, %c0_212] : memref<1x128xf32, #tpu.memory_space<vmem>>, vector<1x128xf32>
    %215 = vector.broadcast %214 : vector<1x128xf32> to vector<8x128xf32>
    %216 = arith.addf %205, %215 : vector<8x128xf32>
    %cst_213 = arith.constant 0.000000e+00 : f32
    %217 = vector.broadcast %cst_213 : f32 to vector<8x128xf32>
    %218 = arith.cmpf oge, %216, %217 : vector<8x128xf32>
    %cst_214 = arith.constant 2.000000e-01 : f32
    %219 = vector.broadcast %cst_214 : f32 to vector<8x128xf32>
    %220 = arith.mulf %216, %219 : vector<8x128xf32>
    %221 = arith.select %218, %216, %220 : vector<8x128xi1>, vector<8x128xf32>
    %222 = arith.truncf %221 : vector<8x128xf32> to vector<8x128xbf16>
    %c2_215 = arith.constant 2 : index
    %c1_216 = arith.constant 1 : index
    %c8_217 = arith.constant 8 : index
    %223 = vector.load %arg11[%c2_215, %c1_216, %c8_217] : memref<4x9x144xbf16, #tpu.memory_space<vmem>>, vector<1x8x128xbf16>
    %224 = vector.shape_cast %223 : vector<1x8x128xbf16> to vector<8x128xbf16>
    %225 = vector.shape_cast %222 : vector<8x128xbf16> to vector<1x8x128xbf16>
    tpu.vector_store %arg11[%c2_215, %c1_216, %c8_217], %225 {strides = array<i32>} : memref<4x9x144xbf16, #tpu.memory_space<vmem>>, vector<1x8x128xbf16>,
    %226 = arith.truncf %213 : vector<8x128xf32> to vector<8x128xbf16>
    %c2_218 = arith.constant 2 : index
    %c0_219 = arith.constant 0 : index
    %c8_220 = arith.constant 8 : index
    %227 = vector.load %arg12[%c2_218, %c0_219, %c8_220] : memref<4x9x144xbf16, #tpu.memory_space<vmem>>, vector<1x8x128xbf16>
    %228 = vector.shape_cast %227 : vector<1x8x128xbf16> to vector<8x128xbf16>
    %229 = vector.shape_cast %226 : vector<8x128xbf16> to vector<1x8x128xbf16>
    tpu.vector_store %arg12[%c2_218, %c0_219, %c8_220], %229 {strides = array<i32>} : memref<4x9x144xbf16, #tpu.memory_space<vmem>>, vector<1x8x128xbf16>,
    %c2_221 = arith.constant 2 : index
    %c0_222 = arith.constant 0 : index
    %c0_223 = arith.constant 0 : index
    %230 = vector.load %arg11[%c2_221, %c0_222, %c0_223] : memref<4x9x144xbf16, #tpu.memory_space<vmem>>, vector<1x8x144xbf16>
    %231 = vector.shape_cast %230 : vector<1x8x144xbf16> to vector<8x144xbf16>
    %c0_224 = arith.constant 0 : index
    %c0_225 = arith.constant 0 : index
    %c0_226 = arith.constant 0 : index
    %232 = vector.load %arg4[%c0_224, %c0_225, %c0_226] : memref<3x144x128xbf16, #tpu.memory_space<vmem>>, vector<1x144x128xbf16>
    %233 = vector.shape_cast %232 : vector<1x144x128xbf16> to vector<144x128xbf16>
    %cst_227 = arith.constant dense<0.000000e+00> : vector<8x128xf32>
    %234 = tpu.matmul %231, %233, %cst_227 {dimension_numbers = #tpu.dot_dimension_numbers<[1], [0], [0], [1], [0, 0, 1, 1], [], []>} : vector<8x144xbf16>, vector<144x128xbf16>, vector<8x128xf32> -> vector<8x128xf32>
    %c2_228 = arith.constant 2 : index
    %c0_229 = arith.constant 0 : index
    %c0_230 = arith.constant 0 : index
    %235 = vector.load %arg12[%c2_228, %c0_229, %c0_230] : memref<4x9x144xbf16, #tpu.memory_space<vmem>>, vector<1x8x144xbf16>
    %236 = vector.shape_cast %235 : vector<1x8x144xbf16> to vector<8x144xbf16>
    %c1_231 = arith.constant 1 : index
    %c0_232 = arith.constant 0 : index
    %c0_233 = arith.constant 0 : index
    %237 = vector.load %arg4[%c1_231, %c0_232, %c0_233] : memref<3x144x128xbf16, #tpu.memory_space<vmem>>, vector<1x144x128xbf16>
    %238 = vector.shape_cast %237 : vector<1x144x128xbf16> to vector<144x128xbf16>
    %cst_234 = arith.constant dense<0.000000e+00> : vector<8x128xf32>
    %239 = tpu.matmul %236, %238, %cst_234 {dimension_numbers = #tpu.dot_dimension_numbers<[1], [0], [0], [1], [0, 0, 1, 1], [], []>} : vector<8x144xbf16>, vector<144x128xbf16>, vector<8x128xf32> -> vector<8x128xf32>
    %240 = arith.addf %234, %239 : vector<8x128xf32>
    %c2_235 = arith.constant 2 : index
    %c1_236 = arith.constant 1 : index
    %c0_237 = arith.constant 0 : index
    %241 = vector.load %arg11[%c2_235, %c1_236, %c0_237] : memref<4x9x144xbf16, #tpu.memory_space<vmem>>, vector<1x8x144xbf16>
    %242 = vector.shape_cast %241 : vector<1x8x144xbf16> to vector<8x144xbf16>
    %c2_238 = arith.constant 2 : index
    %c0_239 = arith.constant 0 : index
    %c0_240 = arith.constant 0 : index
    %243 = vector.load %arg4[%c2_238, %c0_239, %c0_240] : memref<3x144x128xbf16, #tpu.memory_space<vmem>>, vector<1x144x128xbf16>
    %244 = vector.shape_cast %243 : vector<1x144x128xbf16> to vector<144x128xbf16>
    %cst_241 = arith.constant dense<0.000000e+00> : vector<8x128xf32>
    %245 = tpu.matmul %242, %244, %cst_241 {dimension_numbers = #tpu.dot_dimension_numbers<[1], [0], [0], [1], [0, 0, 1, 1], [], []>} : vector<8x144xbf16>, vector<144x128xbf16>, vector<8x128xf32> -> vector<8x128xf32>
    %246 = arith.addf %240, %245 : vector<8x128xf32>
    %c0_242 = arith.constant 0 : index
    %c0_243 = arith.constant 0 : index
    %247 = vector.load %arg5[%c0_242, %c0_243] : memref<1x128xf32, #tpu.memory_space<vmem>>, vector<1x128xf32>
    %248 = vector.broadcast %247 : vector<1x128xf32> to vector<8x128xf32>
    %249 = arith.addf %246, %248 : vector<8x128xf32>
    %cst_244 = arith.constant 0.000000e+00 : f32
    %250 = vector.broadcast %cst_244 : f32 to vector<8x128xf32>
    %251 = arith.cmpf oge, %249, %250 : vector<8x128xf32>
    %cst_245 = arith.constant 2.000000e-01 : f32
    %252 = vector.broadcast %cst_245 : f32 to vector<8x128xf32>
    %253 = arith.mulf %249, %252 : vector<8x128xf32>
    %254 = arith.select %251, %249, %253 : vector<8x128xi1>, vector<8x128xf32>
    %255 = arith.truncf %254 : vector<8x128xf32> to vector<8x128xbf16>
    %c3 = arith.constant 3 : index
    %c0_246 = arith.constant 0 : index
    %c0_247 = arith.constant 0 : index
    %256 = vector.load %arg0[%c3, %c0_246, %c0_247] : memref<4x9x128xbf16, #tpu.memory_space<vmem>>, vector<1x8x128xbf16>
    %257 = vector.shape_cast %256 : vector<1x8x128xbf16> to vector<8x128xbf16>
    %c0_248 = arith.constant 0 : index
    %c0_249 = arith.constant 0 : index
    %c0_250 = arith.constant 0 : index
    %258 = vector.load %arg2[%c0_248, %c0_249, %c0_250] : memref<3x128x128xbf16, #tpu.memory_space<vmem>>, vector<1x128x128xbf16>
    %259 = vector.shape_cast %258 : vector<1x128x128xbf16> to vector<128x128xbf16>
    %cst_251 = arith.constant dense<0.000000e+00> : vector<8x128xf32>
    %260 = tpu.matmul %257, %259, %cst_251 {dimension_numbers = #tpu.dot_dimension_numbers<[1], [0], [0], [1], [0, 0, 1, 1], [], []>} : vector<8x128xbf16>, vector<128x128xbf16>, vector<8x128xf32> -> vector<8x128xf32>
    %c3_252 = arith.constant 3 : index
    %c0_253 = arith.constant 0 : index
    %c0_254 = arith.constant 0 : index
    %261 = vector.load %arg1[%c3_252, %c0_253, %c0_254] : memref<4x9x128xbf16, #tpu.memory_space<vmem>>, vector<1x8x128xbf16>
    %262 = vector.shape_cast %261 : vector<1x8x128xbf16> to vector<8x128xbf16>
    %c1_255 = arith.constant 1 : index
    %c0_256 = arith.constant 0 : index
    %c0_257 = arith.constant 0 : index
    %263 = vector.load %arg2[%c1_255, %c0_256, %c0_257] : memref<3x128x128xbf16, #tpu.memory_space<vmem>>, vector<1x128x128xbf16>
    %264 = vector.shape_cast %263 : vector<1x128x128xbf16> to vector<128x128xbf16>
    %cst_258 = arith.constant dense<0.000000e+00> : vector<8x128xf32>
    %265 = tpu.matmul %262, %264, %cst_258 {dimension_numbers = #tpu.dot_dimension_numbers<[1], [0], [0], [1], [0, 0, 1, 1], [], []>} : vector<8x128xbf16>, vector<128x128xbf16>, vector<8x128xf32> -> vector<8x128xf32>
    %266 = arith.addf %260, %265 : vector<8x128xf32>
    %c3_259 = arith.constant 3 : index
    %c1_260 = arith.constant 1 : index
    %c0_261 = arith.constant 0 : index
    %267 = vector.load %arg0[%c3_259, %c1_260, %c0_261] : memref<4x9x128xbf16, #tpu.memory_space<vmem>>, vector<1x8x128xbf16>
    %268 = vector.shape_cast %267 : vector<1x8x128xbf16> to vector<8x128xbf16>
    %c2_262 = arith.constant 2 : index
    %c0_263 = arith.constant 0 : index
    %c0_264 = arith.constant 0 : index
    %269 = vector.load %arg2[%c2_262, %c0_263, %c0_264] : memref<3x128x128xbf16, #tpu.memory_space<vmem>>, vector<1x128x128xbf16>
    %270 = vector.shape_cast %269 : vector<1x128x128xbf16> to vector<128x128xbf16>
    %cst_265 = arith.constant dense<0.000000e+00> : vector<8x128xf32>
    %271 = tpu.matmul %268, %270, %cst_265 {dimension_numbers = #tpu.dot_dimension_numbers<[1], [0], [0], [1], [0, 0, 1, 1], [], []>} : vector<8x128xbf16>, vector<128x128xbf16>, vector<8x128xf32> -> vector<8x128xf32>
    %272 = arith.addf %266, %271 : vector<8x128xf32>
    %c3_266 = arith.constant 3 : index
    %c0_267 = arith.constant 0 : index
    %c0_268 = arith.constant 0 : index
    %273 = vector.load %arg1[%c3_266, %c0_267, %c0_268] : memref<4x9x128xbf16, #tpu.memory_space<vmem>>, vector<1x8x128xbf16>
    %274 = vector.shape_cast %273 : vector<1x8x128xbf16> to vector<8x128xbf16>
    %c0_269 = arith.constant 0 : index
    %c0_270 = arith.constant 0 : index
    %c0_271 = arith.constant 0 : index
    %275 = vector.load %arg2[%c0_269, %c0_270, %c0_271] : memref<3x128x128xbf16, #tpu.memory_space<vmem>>, vector<1x128x128xbf16>
    %276 = vector.shape_cast %275 : vector<1x128x128xbf16> to vector<128x128xbf16>
    %cst_272 = arith.constant dense<0.000000e+00> : vector<8x128xf32>
    %277 = tpu.matmul %274, %276, %cst_272 {dimension_numbers = #tpu.dot_dimension_numbers<[1], [0], [0], [1], [0, 0, 1, 1], [], []>} : vector<8x128xbf16>, vector<128x128xbf16>, vector<8x128xf32> -> vector<8x128xf32>
    %c3_273 = arith.constant 3 : index
    %c1_274 = arith.constant 1 : index
    %c0_275 = arith.constant 0 : index
    %278 = vector.load %arg0[%c3_273, %c1_274, %c0_275] : memref<4x9x128xbf16, #tpu.memory_space<vmem>>, vector<1x8x128xbf16>
    %279 = vector.shape_cast %278 : vector<1x8x128xbf16> to vector<8x128xbf16>
    %c1_276 = arith.constant 1 : index
    %c0_277 = arith.constant 0 : index
    %c0_278 = arith.constant 0 : index
    %280 = vector.load %arg2[%c1_276, %c0_277, %c0_278] : memref<3x128x128xbf16, #tpu.memory_space<vmem>>, vector<1x128x128xbf16>
    %281 = vector.shape_cast %280 : vector<1x128x128xbf16> to vector<128x128xbf16>
    %cst_279 = arith.constant dense<0.000000e+00> : vector<8x128xf32>
    %282 = tpu.matmul %279, %281, %cst_279 {dimension_numbers = #tpu.dot_dimension_numbers<[1], [0], [0], [1], [0, 0, 1, 1], [], []>} : vector<8x128xbf16>, vector<128x128xbf16>, vector<8x128xf32> -> vector<8x128xf32>
    %283 = arith.addf %277, %282 : vector<8x128xf32>
    %c3_280 = arith.constant 3 : index
    %c1_281 = arith.constant 1 : index
    %c0_282 = arith.constant 0 : index
    %284 = vector.load %arg1[%c3_280, %c1_281, %c0_282] : memref<4x9x128xbf16, #tpu.memory_space<vmem>>, vector<1x8x128xbf16>
    %285 = vector.shape_cast %284 : vector<1x8x128xbf16> to vector<8x128xbf16>
    %c2_283 = arith.constant 2 : index
    %c0_284 = arith.constant 0 : index
    %c0_285 = arith.constant 0 : index
    %286 = vector.load %arg2[%c2_283, %c0_284, %c0_285] : memref<3x128x128xbf16, #tpu.memory_space<vmem>>, vector<1x128x128xbf16>
    %287 = vector.shape_cast %286 : vector<1x128x128xbf16> to vector<128x128xbf16>
    %cst_286 = arith.constant dense<0.000000e+00> : vector<8x128xf32>
    %288 = tpu.matmul %285, %287, %cst_286 {dimension_numbers = #tpu.dot_dimension_numbers<[1], [0], [0], [1], [0, 0, 1, 1], [], []>} : vector<8x128xbf16>, vector<128x128xbf16>, vector<8x128xf32> -> vector<8x128xf32>
    %289 = arith.addf %283, %288 : vector<8x128xf32>
    %c0_287 = arith.constant 0 : index
    %c0_288 = arith.constant 0 : index
    %290 = vector.load %arg3[%c0_287, %c0_288] : memref<1x128xf32, #tpu.memory_space<vmem>>, vector<1x128xf32>
    %291 = vector.broadcast %290 : vector<1x128xf32> to vector<8x128xf32>
    %292 = arith.addf %272, %291 : vector<8x128xf32>
    %cst_289 = arith.constant 0.000000e+00 : f32
    %293 = vector.broadcast %cst_289 : f32 to vector<8x128xf32>
    %294 = arith.cmpf oge, %292, %293 : vector<8x128xf32>
    %cst_290 = arith.constant 2.000000e-01 : f32
    %295 = vector.broadcast %cst_290 : f32 to vector<8x128xf32>
    %296 = arith.mulf %292, %295 : vector<8x128xf32>
    %297 = arith.select %294, %292, %296 : vector<8x128xi1>, vector<8x128xf32>
    %c0_291 = arith.constant 0 : index
    %c0_292 = arith.constant 0 : index
    %298 = vector.load %arg3[%c0_291, %c0_292] : memref<1x128xf32, #tpu.memory_space<vmem>>, vector<1x128xf32>
    %299 = vector.broadcast %298 : vector<1x128xf32> to vector<8x128xf32>
    %300 = arith.addf %289, %299 : vector<8x128xf32>
    %cst_293 = arith.constant 0.000000e+00 : f32
    %301 = vector.broadcast %cst_293 : f32 to vector<8x128xf32>
    %302 = arith.cmpf oge, %300, %301 : vector<8x128xf32>
    %cst_294 = arith.constant 2.000000e-01 : f32
    %303 = vector.broadcast %cst_294 : f32 to vector<8x128xf32>
    %304 = arith.mulf %300, %303 : vector<8x128xf32>
    %305 = arith.select %302, %300, %304 : vector<8x128xi1>, vector<8x128xf32>
    %306 = arith.truncf %305 : vector<8x128xf32> to vector<8x128xbf16>
    %c3_295 = arith.constant 3 : index
    %c1_296 = arith.constant 1 : index
    %c8_297 = arith.constant 8 : index
    %307 = vector.load %arg11[%c3_295, %c1_296, %c8_297] : memref<4x9x144xbf16, #tpu.memory_space<vmem>>, vector<1x8x128xbf16>
    %308 = vector.shape_cast %307 : vector<1x8x128xbf16> to vector<8x128xbf16>
    %309 = vector.shape_cast %306 : vector<8x128xbf16> to vector<1x8x128xbf16>
    tpu.vector_store %arg11[%c3_295, %c1_296, %c8_297], %309 {strides = array<i32>} : memref<4x9x144xbf16, #tpu.memory_space<vmem>>, vector<1x8x128xbf16>,
    %310 = arith.truncf %297 : vector<8x128xf32> to vector<8x128xbf16>
    %c3_298 = arith.constant 3 : index
    %c0_299 = arith.constant 0 : index
    %c8_300 = arith.constant 8 : index
    %311 = vector.load %arg12[%c3_298, %c0_299, %c8_300] : memref<4x9x144xbf16, #tpu.memory_space<vmem>>, vector<1x8x128xbf16>
    %312 = vector.shape_cast %311 : vector<1x8x128xbf16> to vector<8x128xbf16>
    %313 = vector.shape_cast %310 : vector<8x128xbf16> to vector<1x8x128xbf16>
    tpu.vector_store %arg12[%c3_298, %c0_299, %c8_300], %313 {strides = array<i32>} : memref<4x9x144xbf16, #tpu.memory_space<vmem>>, vector<1x8x128xbf16>,
    %c3_301 = arith.constant 3 : index
    %c0_302 = arith.constant 0 : index
    %c0_303 = arith.constant 0 : index
    %314 = vector.load %arg11[%c3_301, %c0_302, %c0_303] : memref<4x9x144xbf16, #tpu.memory_space<vmem>>, vector<1x8x144xbf16>
    %315 = vector.shape_cast %314 : vector<1x8x144xbf16> to vector<8x144xbf16>
    %c0_304 = arith.constant 0 : index
    %c0_305 = arith.constant 0 : index
    %c0_306 = arith.constant 0 : index
    %316 = vector.load %arg4[%c0_304, %c0_305, %c0_306] : memref<3x144x128xbf16, #tpu.memory_space<vmem>>, vector<1x144x128xbf16>
    %317 = vector.shape_cast %316 : vector<1x144x128xbf16> to vector<144x128xbf16>
    %cst_307 = arith.constant dense<0.000000e+00> : vector<8x128xf32>
    %318 = tpu.matmul %315, %317, %cst_307 {dimension_numbers = #tpu.dot_dimension_numbers<[1], [0], [0], [1], [0, 0, 1, 1], [], []>} : vector<8x144xbf16>, vector<144x128xbf16>, vector<8x128xf32> -> vector<8x128xf32>
    %c3_308 = arith.constant 3 : index
    %c0_309 = arith.constant 0 : index
    %c0_310 = arith.constant 0 : index
    %319 = vector.load %arg12[%c3_308, %c0_309, %c0_310] : memref<4x9x144xbf16, #tpu.memory_space<vmem>>, vector<1x8x144xbf16>
    %320 = vector.shape_cast %319 : vector<1x8x144xbf16> to vector<8x144xbf16>
    %c1_311 = arith.constant 1 : index
    %c0_312 = arith.constant 0 : index
    %c0_313 = arith.constant 0 : index
    %321 = vector.load %arg4[%c1_311, %c0_312, %c0_313] : memref<3x144x128xbf16, #tpu.memory_space<vmem>>, vector<1x144x128xbf16>
    %322 = vector.shape_cast %321 : vector<1x144x128xbf16> to vector<144x128xbf16>
    %cst_314 = arith.constant dense<0.000000e+00> : vector<8x128xf32>
    %323 = tpu.matmul %320, %322, %cst_314 {dimension_numbers = #tpu.dot_dimension_numbers<[1], [0], [0], [1], [0, 0, 1, 1], [], []>} : vector<8x144xbf16>, vector<144x128xbf16>, vector<8x128xf32> -> vector<8x128xf32>
    %324 = arith.addf %318, %323 : vector<8x128xf32>
    %c3_315 = arith.constant 3 : index
    %c1_316 = arith.constant 1 : index
    %c0_317 = arith.constant 0 : index
    %325 = vector.load %arg11[%c3_315, %c1_316, %c0_317] : memref<4x9x144xbf16, #tpu.memory_space<vmem>>, vector<1x8x144xbf16>
    %326 = vector.shape_cast %325 : vector<1x8x144xbf16> to vector<8x144xbf16>
    %c2_318 = arith.constant 2 : index
    %c0_319 = arith.constant 0 : index
    %c0_320 = arith.constant 0 : index
    %327 = vector.load %arg4[%c2_318, %c0_319, %c0_320] : memref<3x144x128xbf16, #tpu.memory_space<vmem>>, vector<1x144x128xbf16>
    %328 = vector.shape_cast %327 : vector<1x144x128xbf16> to vector<144x128xbf16>
    %cst_321 = arith.constant dense<0.000000e+00> : vector<8x128xf32>
    %329 = tpu.matmul %326, %328, %cst_321 {dimension_numbers = #tpu.dot_dimension_numbers<[1], [0], [0], [1], [0, 0, 1, 1], [], []>} : vector<8x144xbf16>, vector<144x128xbf16>, vector<8x128xf32> -> vector<8x128xf32>
    %330 = arith.addf %324, %329 : vector<8x128xf32>
    %c0_322 = arith.constant 0 : index
    %c0_323 = arith.constant 0 : index
    %331 = vector.load %arg5[%c0_322, %c0_323] : memref<1x128xf32, #tpu.memory_space<vmem>>, vector<1x128xf32>
    %332 = vector.broadcast %331 : vector<1x128xf32> to vector<8x128xf32>
    %333 = arith.addf %330, %332 : vector<8x128xf32>
    %cst_324 = arith.constant 0.000000e+00 : f32
    %334 = vector.broadcast %cst_324 : f32 to vector<8x128xf32>
    %335 = arith.cmpf oge, %333, %334 : vector<8x128xf32>
    %cst_325 = arith.constant 2.000000e-01 : f32
    %336 = vector.broadcast %cst_325 : f32 to vector<8x128xf32>
    %337 = arith.mulf %333, %336 : vector<8x128xf32>
    %338 = arith.select %335, %333, %337 : vector<8x128xi1>, vector<8x128xf32>
    %339 = arith.truncf %338 : vector<8x128xf32> to vector<8x128xbf16>
    %cst_326 = arith.constant 0.000000e+00 : f32
    %340 = vector.broadcast %cst_326 : f32 to vector<4x128xf32>
    %341 = vector.extract_strided_slice %87 {offsets = [0, 0], sizes = [1, 128], strides = [1, 1]} : vector<8x128xbf16> to vector<1x128xbf16>
    %342 = vector.extract_strided_slice %171 {offsets = [0, 0], sizes = [1, 128], strides = [1, 1]} : vector<8x128xbf16> to vector<1x128xbf16>
    %343 = vector.extract_strided_slice %255 {offsets = [0, 0], sizes = [1, 128], strides = [1, 1]} : vector<8x128xbf16> to vector<1x128xbf16>
    %344 = vector.extract_strided_slice %339 {offsets = [0, 0], sizes = [1, 128], strides = [1, 1]} : vector<8x128xbf16> to vector<1x128xbf16>
    %345 = tpu.concatenate %341, %342, %343, %344 in 0 : vector<1x128xbf16>, vector<1x128xbf16>, vector<1x128xbf16>, vector<1x128xbf16> -> vector<4x128xbf16>
    %c0_327 = arith.constant 0 : index
    %c0_328 = arith.constant 0 : index
    %c0_329 = arith.constant 0 : index
    %346 = vector.load %arg6[%c0_327, %c0_328, %c0_329] : memref<8x128x128xbf16, #tpu.memory_space<vmem>>, vector<1x128x128xbf16>
    %347 = vector.shape_cast %346 : vector<1x128x128xbf16> to vector<128x128xbf16>
    %cst_330 = arith.constant dense<0.000000e+00> : vector<4x128xf32>
    %348 = tpu.matmul %345, %347, %cst_330 {dimension_numbers = #tpu.dot_dimension_numbers<[1], [0], [0], [1], [0, 0, 1, 1], [], []>} : vector<4x128xbf16>, vector<128x128xbf16>, vector<4x128xf32> -> vector<4x128xf32>
    %349 = arith.addf %340, %348 : vector<4x128xf32>
    %350 = vector.extract_strided_slice %87 {offsets = [1, 0], sizes = [1, 128], strides = [1, 1]} : vector<8x128xbf16> to vector<1x128xbf16>
    %351 = vector.extract_strided_slice %171 {offsets = [1, 0], sizes = [1, 128], strides = [1, 1]} : vector<8x128xbf16> to vector<1x128xbf16>
    %352 = vector.extract_strided_slice %255 {offsets = [1, 0], sizes = [1, 128], strides = [1, 1]} : vector<8x128xbf16> to vector<1x128xbf16>
    %353 = vector.extract_strided_slice %339 {offsets = [1, 0], sizes = [1, 128], strides = [1, 1]} : vector<8x128xbf16> to vector<1x128xbf16>
    %354 = tpu.concatenate %350, %351, %352, %353 in 0 : vector<1x128xbf16>, vector<1x128xbf16>, vector<1x128xbf16>, vector<1x128xbf16> -> vector<4x128xbf16>
    %c1_331 = arith.constant 1 : index
    %c0_332 = arith.constant 0 : index
    %c0_333 = arith.constant 0 : index
    %355 = vector.load %arg6[%c1_331, %c0_332, %c0_333] : memref<8x128x128xbf16, #tpu.memory_space<vmem>>, vector<1x128x128xbf16>
    %356 = vector.shape_cast %355 : vector<1x128x128xbf16> to vector<128x128xbf16>
    %cst_334 = arith.constant dense<0.000000e+00> : vector<4x128xf32>
    %357 = tpu.matmul %354, %356, %cst_334 {dimension_numbers = #tpu.dot_dimension_numbers<[1], [0], [0], [1], [0, 0, 1, 1], [], []>} : vector<4x128xbf16>, vector<128x128xbf16>, vector<4x128xf32> -> vector<4x128xf32>
    %358 = arith.addf %349, %357 : vector<4x128xf32>
    %359 = vector.extract_strided_slice %87 {offsets = [2, 0], sizes = [1, 128], strides = [1, 1]} : vector<8x128xbf16> to vector<1x128xbf16>
    %360 = vector.extract_strided_slice %171 {offsets = [2, 0], sizes = [1, 128], strides = [1, 1]} : vector<8x128xbf16> to vector<1x128xbf16>
    %361 = vector.extract_strided_slice %255 {offsets = [2, 0], sizes = [1, 128], strides = [1, 1]} : vector<8x128xbf16> to vector<1x128xbf16>
    %362 = vector.extract_strided_slice %339 {offsets = [2, 0], sizes = [1, 128], strides = [1, 1]} : vector<8x128xbf16> to vector<1x128xbf16>
    %363 = tpu.concatenate %359, %360, %361, %362 in 0 : vector<1x128xbf16>, vector<1x128xbf16>, vector<1x128xbf16>, vector<1x128xbf16> -> vector<4x128xbf16>
    %c2_335 = arith.constant 2 : index
    %c0_336 = arith.constant 0 : index
    %c0_337 = arith.constant 0 : index
    %364 = vector.load %arg6[%c2_335, %c0_336, %c0_337] : memref<8x128x128xbf16, #tpu.memory_space<vmem>>, vector<1x128x128xbf16>
    %365 = vector.shape_cast %364 : vector<1x128x128xbf16> to vector<128x128xbf16>
    %cst_338 = arith.constant dense<0.000000e+00> : vector<4x128xf32>
    %366 = tpu.matmul %363, %365, %cst_338 {dimension_numbers = #tpu.dot_dimension_numbers<[1], [0], [0], [1], [0, 0, 1, 1], [], []>} : vector<4x128xbf16>, vector<128x128xbf16>, vector<4x128xf32> -> vector<4x128xf32>
    %367 = arith.addf %358, %366 : vector<4x128xf32>
    %368 = vector.extract_strided_slice %87 {offsets = [3, 0], sizes = [1, 128], strides = [1, 1]} : vector<8x128xbf16> to vector<1x128xbf16>
    %369 = vector.extract_strided_slice %171 {offsets = [3, 0], sizes = [1, 128], strides = [1, 1]} : vector<8x128xbf16> to vector<1x128xbf16>
    %370 = vector.extract_strided_slice %255 {offsets = [3, 0], sizes = [1, 128], strides = [1, 1]} : vector<8x128xbf16> to vector<1x128xbf16>
    %371 = vector.extract_strided_slice %339 {offsets = [3, 0], sizes = [1, 128], strides = [1, 1]} : vector<8x128xbf16> to vector<1x128xbf16>
    %372 = tpu.concatenate %368, %369, %370, %371 in 0 : vector<1x128xbf16>, vector<1x128xbf16>, vector<1x128xbf16>, vector<1x128xbf16> -> vector<4x128xbf16>
    %c3_339 = arith.constant 3 : index
    %c0_340 = arith.constant 0 : index
    %c0_341 = arith.constant 0 : index
    %373 = vector.load %arg6[%c3_339, %c0_340, %c0_341] : memref<8x128x128xbf16, #tpu.memory_space<vmem>>, vector<1x128x128xbf16>
    %374 = vector.shape_cast %373 : vector<1x128x128xbf16> to vector<128x128xbf16>
    %cst_342 = arith.constant dense<0.000000e+00> : vector<4x128xf32>
    %375 = tpu.matmul %372, %374, %cst_342 {dimension_numbers = #tpu.dot_dimension_numbers<[1], [0], [0], [1], [0, 0, 1, 1], [], []>} : vector<4x128xbf16>, vector<128x128xbf16>, vector<4x128xf32> -> vector<4x128xf32>
    %376 = arith.addf %367, %375 : vector<4x128xf32>
    %377 = vector.extract_strided_slice %87 {offsets = [4, 0], sizes = [1, 128], strides = [1, 1]} : vector<8x128xbf16> to vector<1x128xbf16>
    %378 = vector.extract_strided_slice %171 {offsets = [4, 0], sizes = [1, 128], strides = [1, 1]} : vector<8x128xbf16> to vector<1x128xbf16>
    %379 = vector.extract_strided_slice %255 {offsets = [4, 0], sizes = [1, 128], strides = [1, 1]} : vector<8x128xbf16> to vector<1x128xbf16>
    %380 = vector.extract_strided_slice %339 {offsets = [4, 0], sizes = [1, 128], strides = [1, 1]} : vector<8x128xbf16> to vector<1x128xbf16>
    %381 = tpu.concatenate %377, %378, %379, %380 in 0 : vector<1x128xbf16>, vector<1x128xbf16>, vector<1x128xbf16>, vector<1x128xbf16> -> vector<4x128xbf16>
    %c4 = arith.constant 4 : index
    %c0_343 = arith.constant 0 : index
    %c0_344 = arith.constant 0 : index
    %382 = vector.load %arg6[%c4, %c0_343, %c0_344] : memref<8x128x128xbf16, #tpu.memory_space<vmem>>, vector<1x128x128xbf16>
    %383 = vector.shape_cast %382 : vector<1x128x128xbf16> to vector<128x128xbf16>
    %cst_345 = arith.constant dense<0.000000e+00> : vector<4x128xf32>
    %384 = tpu.matmul %381, %383, %cst_345 {dimension_numbers = #tpu.dot_dimension_numbers<[1], [0], [0], [1], [0, 0, 1, 1], [], []>} : vector<4x128xbf16>, vector<128x128xbf16>, vector<4x128xf32> -> vector<4x128xf32>
    %385 = arith.addf %376, %384 : vector<4x128xf32>
    %386 = vector.extract_strided_slice %87 {offsets = [5, 0], sizes = [1, 128], strides = [1, 1]} : vector<8x128xbf16> to vector<1x128xbf16>
    %387 = vector.extract_strided_slice %171 {offsets = [5, 0], sizes = [1, 128], strides = [1, 1]} : vector<8x128xbf16> to vector<1x128xbf16>
    %388 = vector.extract_strided_slice %255 {offsets = [5, 0], sizes = [1, 128], strides = [1, 1]} : vector<8x128xbf16> to vector<1x128xbf16>
    %389 = vector.extract_strided_slice %339 {offsets = [5, 0], sizes = [1, 128], strides = [1, 1]} : vector<8x128xbf16> to vector<1x128xbf16>
    %390 = tpu.concatenate %386, %387, %388, %389 in 0 : vector<1x128xbf16>, vector<1x128xbf16>, vector<1x128xbf16>, vector<1x128xbf16> -> vector<4x128xbf16>
    %c5 = arith.constant 5 : index
    %c0_346 = arith.constant 0 : index
    %c0_347 = arith.constant 0 : index
    %391 = vector.load %arg6[%c5, %c0_346, %c0_347] : memref<8x128x128xbf16, #tpu.memory_space<vmem>>, vector<1x128x128xbf16>
    %392 = vector.shape_cast %391 : vector<1x128x128xbf16> to vector<128x128xbf16>
    %cst_348 = arith.constant dense<0.000000e+00> : vector<4x128xf32>
    %393 = tpu.matmul %390, %392, %cst_348 {dimension_numbers = #tpu.dot_dimension_numbers<[1], [0], [0], [1], [0, 0, 1, 1], [], []>} : vector<4x128xbf16>, vector<128x128xbf16>, vector<4x128xf32> -> vector<4x128xf32>
    %394 = arith.addf %385, %393 : vector<4x128xf32>
    %395 = vector.extract_strided_slice %87 {offsets = [6, 0], sizes = [1, 128], strides = [1, 1]} : vector<8x128xbf16> to vector<1x128xbf16>
    %396 = vector.extract_strided_slice %171 {offsets = [6, 0], sizes = [1, 128], strides = [1, 1]} : vector<8x128xbf16> to vector<1x128xbf16>
    %397 = vector.extract_strided_slice %255 {offsets = [6, 0], sizes = [1, 128], strides = [1, 1]} : vector<8x128xbf16> to vector<1x128xbf16>
    %398 = vector.extract_strided_slice %339 {offsets = [6, 0], sizes = [1, 128], strides = [1, 1]} : vector<8x128xbf16> to vector<1x128xbf16>
    %399 = tpu.concatenate %395, %396, %397, %398 in 0 : vector<1x128xbf16>, vector<1x128xbf16>, vector<1x128xbf16>, vector<1x128xbf16> -> vector<4x128xbf16>
    %c6 = arith.constant 6 : index
    %c0_349 = arith.constant 0 : index
    %c0_350 = arith.constant 0 : index
    %400 = vector.load %arg6[%c6, %c0_349, %c0_350] : memref<8x128x128xbf16, #tpu.memory_space<vmem>>, vector<1x128x128xbf16>
    %401 = vector.shape_cast %400 : vector<1x128x128xbf16> to vector<128x128xbf16>
    %cst_351 = arith.constant dense<0.000000e+00> : vector<4x128xf32>
    %402 = tpu.matmul %399, %401, %cst_351 {dimension_numbers = #tpu.dot_dimension_numbers<[1], [0], [0], [1], [0, 0, 1, 1], [], []>} : vector<4x128xbf16>, vector<128x128xbf16>, vector<4x128xf32> -> vector<4x128xf32>
    %403 = arith.addf %394, %402 : vector<4x128xf32>
    %404 = vector.extract_strided_slice %87 {offsets = [7, 0], sizes = [1, 128], strides = [1, 1]} : vector<8x128xbf16> to vector<1x128xbf16>
    %405 = vector.extract_strided_slice %171 {offsets = [7, 0], sizes = [1, 128], strides = [1, 1]} : vector<8x128xbf16> to vector<1x128xbf16>
    %406 = vector.extract_strided_slice %255 {offsets = [7, 0], sizes = [1, 128], strides = [1, 1]} : vector<8x128xbf16> to vector<1x128xbf16>
    %407 = vector.extract_strided_slice %339 {offsets = [7, 0], sizes = [1, 128], strides = [1, 1]} : vector<8x128xbf16> to vector<1x128xbf16>
    %408 = tpu.concatenate %404, %405, %406, %407 in 0 : vector<1x128xbf16>, vector<1x128xbf16>, vector<1x128xbf16>, vector<1x128xbf16> -> vector<4x128xbf16>
    %c7 = arith.constant 7 : index
    %c0_352 = arith.constant 0 : index
    %c0_353 = arith.constant 0 : index
    %409 = vector.load %arg6[%c7, %c0_352, %c0_353] : memref<8x128x128xbf16, #tpu.memory_space<vmem>>, vector<1x128x128xbf16>
    %410 = vector.shape_cast %409 : vector<1x128x128xbf16> to vector<128x128xbf16>
    %cst_354 = arith.constant dense<0.000000e+00> : vector<4x128xf32>
    %411 = tpu.matmul %408, %410, %cst_354 {dimension_numbers = #tpu.dot_dimension_numbers<[1], [0], [0], [1], [0, 0, 1, 1], [], []>} : vector<4x128xbf16>, vector<128x128xbf16>, vector<4x128xf32> -> vector<4x128xf32>
    %412 = arith.addf %403, %411 : vector<4x128xf32>
    %c0_355 = arith.constant 0 : index
    %c0_356 = arith.constant 0 : index
    %413 = vector.load %arg7[%c0_355, %c0_356] : memref<1x128xf32, #tpu.memory_space<vmem>>, vector<1x128xf32>
    %414 = vector.broadcast %413 : vector<1x128xf32> to vector<4x128xf32>
    %415 = arith.addf %412, %414 : vector<4x128xf32>
    %cst_357 = arith.constant 0.000000e+00 : f32
    %416 = vector.broadcast %cst_357 : f32 to vector<4x128xf32>
    %417 = arith.cmpf oge, %415, %416 : vector<4x128xf32>
    %cst_358 = arith.constant 2.000000e-01 : f32
    %418 = vector.broadcast %cst_358 : f32 to vector<4x128xf32>
    %419 = arith.mulf %415, %418 : vector<4x128xf32>
    %420 = arith.select %417, %415, %419 : vector<4x128xi1>, vector<4x128xf32>
    %c0_359 = arith.constant 0 : index
    %c0_360 = arith.constant 0 : index
    %421 = vector.load %arg8[%c0_359, %c0_360] : memref<1x128xf32, #tpu.memory_space<vmem>>, vector<1x128xf32>
    %422 = vector.broadcast %421 : vector<1x128xf32> to vector<4x128xf32>
    %423 = arith.mulf %420, %422 : vector<4x128xf32>
    %cst_361 = arith.constant dense<0.000000e+00> : vector<4xf32>
    %424 = vector.multi_reduction <add>, %423, %cst_361 [1] : vector<4x128xf32> to vector<4xf32>
    %425 = vector.shape_cast %424 : vector<4xf32> to vector<4x1xf32>
    %c0_362 = arith.constant 0 : index
    %c0_363 = arith.constant 0 : index
    %426 = vector.load %arg9[%c0_362, %c0_363] : memref<1x1xf32, #tpu.memory_space<vmem>>, vector<1x1xf32>
    %427 = vector.broadcast %426 : vector<1x1xf32> to vector<4x1xf32>
    %428 = arith.addf %425, %427 : vector<4x1xf32>
    %429 = vector.extract_strided_slice %428 {offsets = [0, 0], sizes = [2, 1], strides = [1, 1]} : vector<4x1xf32> to vector<2x1xf32>
    %430 = vector.extract_strided_slice %428 {offsets = [2, 0], sizes = [2, 1], strides = [1, 1]} : vector<4x1xf32> to vector<2x1xf32>
    %cst_364 = arith.constant 0.000000e+00 : f32
    %431 = vector.broadcast %cst_364 : f32 to vector<2x1xf32>
    %432 = arith.maximumf %429, %431 : vector<2x1xf32>
    %cst_365 = arith.constant 1.000000e+00 : f32
    %433 = vector.broadcast %cst_365 : f32 to vector<2x1xf32>
    %434 = arith.mulf %429, %433 : vector<2x1xf32>
    %435 = arith.subf %432, %434 : vector<2x1xf32>
    %436 = math.absf %429 : vector<2x1xf32>
    %cst_366 = arith.constant 0.000000e+00 : f32
    %437 = vector.broadcast %cst_366 : f32 to vector<2x1xf32>
    %438 = arith.subf %437, %436 : vector<2x1xf32>
    %439 = math.exp %438 : vector<2x1xf32>
    %440 = math.log1p %439 : vector<2x1xf32>
    %441 = arith.addf %435, %440 : vector<2x1xf32>
    %442 = vector.shape_cast %441 : vector<2x1xf32> to vector<1x2x1xf32>
    %cst_367 = arith.constant dense<0.000000e+00> : vector<1xf32>
    %443 = vector.multi_reduction <add>, %442, %cst_367 [1, 2] : vector<1x2x1xf32> to vector<1xf32>
    %444 = vector.shape_cast %443 : vector<1xf32> to vector<1x1x1xf32>
    %445 = vector.extract %444[0, 0, 0] : f32 from vector<1x1x1xf32>
    %cst_368 = arith.constant 5.000000e-01 : f32
    %446 = arith.mulf %445, %cst_368 : f32
    %c0_369 = arith.constant 0 : index
    %c0_370 = arith.constant 0 : index
    %447 = memref.load %arg10[%c0_369, %c0_370] : memref<1x3xf32, #tpu.memory_space<smem>>
    memref.store %446, %arg10[%c0_369, %c0_370] : memref<1x3xf32, #tpu.memory_space<smem>>
    %cst_371 = arith.constant 0.000000e+00 : f32
    %448 = vector.broadcast %cst_371 : f32 to vector<2x1xf32>
    %449 = arith.maximumf %430, %448 : vector<2x1xf32>
    %cst_372 = arith.constant 1.000000e+00 : f32
    %450 = vector.broadcast %cst_372 : f32 to vector<2x1xf32>
    %451 = arith.mulf %430, %450 : vector<2x1xf32>
    %452 = arith.subf %449, %451 : vector<2x1xf32>
    %453 = math.absf %430 : vector<2x1xf32>
    %cst_373 = arith.constant 0.000000e+00 : f32
    %454 = vector.broadcast %cst_373 : f32 to vector<2x1xf32>
    %455 = arith.subf %454, %453 : vector<2x1xf32>
    %456 = math.exp %455 : vector<2x1xf32>
    %457 = math.log1p %456 : vector<2x1xf32>
    %458 = arith.addf %452, %457 : vector<2x1xf32>
    %459 = vector.shape_cast %458 : vector<2x1xf32> to vector<1x2x1xf32>
    %cst_374 = arith.constant dense<0.000000e+00> : vector<1xf32>
    %460 = vector.multi_reduction <add>, %459, %cst_374 [1, 2] : vector<1x2x1xf32> to vector<1xf32>
    %461 = vector.shape_cast %460 : vector<1xf32> to vector<1x1x1xf32>
    %462 = vector.extract %461[0, 0, 0] : f32 from vector<1x1x1xf32>
    %cst_375 = arith.constant 5.000000e-01 : f32
    %463 = arith.mulf %462, %cst_375 : f32
    %c0_376 = arith.constant 0 : index
    %c1_377 = arith.constant 1 : index
    %464 = memref.load %arg10[%c0_376, %c1_377] : memref<1x3xf32, #tpu.memory_space<smem>>
    memref.store %463, %arg10[%c0_376, %c1_377] : memref<1x3xf32, #tpu.memory_space<smem>>
    %cst_378 = arith.constant 0.000000e+00 : f32
    %465 = vector.broadcast %cst_378 : f32 to vector<2x1xf32>
    %466 = arith.maximumf %429, %465 : vector<2x1xf32>
    %cst_379 = arith.constant 0.000000e+00 : f32
    %467 = vector.broadcast %cst_379 : f32 to vector<2x1xf32>
    %468 = arith.mulf %429, %467 : vector<2x1xf32>
    %469 = arith.subf %466, %468 : vector<2x1xf32>
    %470 = math.absf %429 : vector<2x1xf32>
    %cst_380 = arith.constant 0.000000e+00 : f32
    %471 = vector.broadcast %cst_380 : f32 to vector<2x1xf32>
    %472 = arith.subf %471, %470 : vector<2x1xf32>
    %473 = math.exp %472 : vector<2x1xf32>
    %474 = math.log1p %473 : vector<2x1xf32>
    %475 = arith.addf %469, %474 : vector<2x1xf32>
    %476 = vector.shape_cast %475 : vector<2x1xf32> to vector<1x2x1xf32>
    %cst_381 = arith.constant dense<0.000000e+00> : vector<1xf32>
    %477 = vector.multi_reduction <add>, %476, %cst_381 [1, 2] : vector<1x2x1xf32> to vector<1xf32>
    %478 = vector.shape_cast %477 : vector<1xf32> to vector<1x1x1xf32>
    %479 = vector.extract %478[0, 0, 0] : f32 from vector<1x1x1xf32>
    %cst_382 = arith.constant 5.000000e-01 : f32
    %480 = arith.mulf %479, %cst_382 : f32
    %c0_383 = arith.constant 0 : index
    %c2_384 = arith.constant 2 : index
    %481 = memref.load %arg10[%c0_383, %c2_384] : memref<1x3xf32, #tpu.memory_space<smem>>
    memref.store %480, %arg10[%c0_383, %c2_384] : memref<1x3xf32, #tpu.memory_space<smem>>
    return
  }
}

</mosaic_0001>

<llo_original>
// kernel: adversarial_forward.1
$region0: #{adversarial_forward.1}
  #allocation0 [shape = 'u32[]', space=smem, size = 0x4, offset = 0x4, fixed_abs, tag = 'smem constant byte address 0x4 - core index']
  #allocation1 [shape = 'u32[144,128]{1,0:T(1,128)}', space=vmem, size = 0x12000, scoped, tag = 'internal scratch']
  #allocation2 [shape = 'bf16[4,9,144]{2,1,0:T(8,128)(2,1)}', space=vmem, size = 0x8000, scoped, tag = 'scratch operand']
  #allocation3 [shape = 'bf16[4,9,144]{2,1,0:T(8,128)(2,1)}', space=vmem, size = 0x8000, scoped, tag = 'scratch operand']
  #allocation4 [shape = 'f32[1,1]{1,0:T(1,128)S(1)}', space=vmem, size = 0x200, scoped, tag = 'scoped memory for adversarial_forward.1']
  %s0 = inlined_call_operand.vmem [shape: bf16[4,9,128], index: 0, kind: input, shape index: {}]
  %s1 = inlined_call_operand.vmem [shape: bf16[4,9,128], index: 1, kind: input, shape index: {}]
  %s2 = inlined_call_operand.vmem [shape: bf16[3,128,128], index: 2, kind: input, shape index: {}]
  %s3 = inlined_call_operand.vmem [shape: f32[1,128], index: 3, kind: input, shape index: {}]
  %s4 = inlined_call_operand.vmem [shape: bf16[3,144,128], index: 4, kind: input, shape index: {}]
  %s5 = inlined_call_operand.vmem [shape: f32[1,128], index: 5, kind: input, shape index: {}]
  %s6 = inlined_call_operand.vmem [shape: bf16[8,128,128], index: 6, kind: input, shape index: {}]
  %s7 = inlined_call_operand.vmem [shape: f32[1,128], index: 7, kind: input, shape index: {}]
  %s8 = inlined_call_operand.vmem [shape: f32[1,128], index: 8, kind: input, shape index: {}]
  %s9 = inlined_call_operand.<no memory space> [shape: f32[1,1], index: 9, kind: input, shape index: {}]
  %s10 = inlined_call_operand.vmem [shape: f32[1,3], index: 10, kind: output, shape index: {}]
  %s11 = sld [smem:[#allocation0]]
  $region50: #{adversarial_forward.1} parent=0
    _
  %s13 = ssub.s32 1, %s11
  %s14 = scalar_select 0, %s13, %s11
  %v15 = vstv %s9
  %16 = vst [vmem:[#allocation4] sm:$0x1] %v15
  $region1: #{adversarial_forward.1} parent=0
    #allocation5 [shape = 'u8[512]{0}', space=smem, size = 0x200, scoped, tag = 'output window, operand 0, single buffered']
    #allocation6 [shape = 's32[1]{0}', space=sflag, size = 0x4, scoped, tag = 'scoped memory for adversarial_forward.1']
    %17 = vsyncpa [#allocation6], 0
    // Predicated region
    $region2: #{adversarial_forward.1} parent=1 // pred_check
      _
    $region3: #{adversarial_forward.1} parent=1 // pred_check_branch
      %19 = sbr.rel (0) target = $region5
    $region4: #{adversarial_forward.1} parent=1 // pred_region
      _
    $region5: #{adversarial_forward.1} parent=1 // pred_fallthru
      _
    // Predicated region
    $region6: #{adversarial_forward.1} parent=1 // pred_check
      _
    $region7: #{adversarial_forward.1} parent=1 // pred_check_branch
      %21 = sbr.rel (0) target = $region9
    $region8: #{adversarial_forward.1} parent=1 // pred_region
      _
    $region9: #{adversarial_forward.1} parent=1 // pred_fallthru
      _
    // Predicated region
    $region10: #{adversarial_forward.1} parent=1 // pred_check
      _
    $region11: #{adversarial_forward.1} parent=1 // pred_check_branch
      %23 = sbr.rel (0) target = $region13
    $region12: #{adversarial_forward.1} parent=1 // pred_region
      _
    $region13: #{adversarial_forward.1} parent=1 // pred_fallthru
      _
    // Predicated region
    $region14: #{adversarial_forward.1} parent=1 // pred_check
      _
    $region15: #{adversarial_forward.1} parent=1 // pred_check_branch
      %25 = sbr.rel (0) target = $region17
    $region16: #{adversarial_forward.1} parent=1 // pred_region
      _
    $region17: #{adversarial_forward.1} parent=1 // pred_fallthru
      _
    // Predicated region
    $region18: #{adversarial_forward.1} parent=1 // pred_check
      _
    $region19: #{adversarial_forward.1} parent=1 // pred_check_branch
      %27 = sbr.rel (0) target = $region21
    $region20: #{adversarial_forward.1} parent=1 // pred_region
      _
    $region21: #{adversarial_forward.1} parent=1 // pred_fallthru
      _
    // Predicated region
    $region22: #{adversarial_forward.1} parent=1 // pred_check
      _
    $region23: #{adversarial_forward.1} parent=1 // pred_check_branch
      %29 = sbr.rel (0) target = $region25
    $region24: #{adversarial_forward.1} parent=1 // pred_region
      _
    $region25: #{adversarial_forward.1} parent=1 // pred_fallthru
      _
    // Predicated region
    $region26: #{adversarial_forward.1} parent=1 // pred_check
      _
    $region27: #{adversarial_forward.1} parent=1 // pred_check_branch
      %31 = sbr.rel (0) target = $region29
    $region28: #{adversarial_forward.1} parent=1 // pred_region
      _
    $region29: #{adversarial_forward.1} parent=1 // pred_fallthru
      _
    // Predicated region
    $region30: #{adversarial_forward.1} parent=1 // pred_check
      _
    $region31: #{adversarial_forward.1} parent=1 // pred_check_branch
      %33 = sbr.rel (0) target = $region33
    $region32: #{adversarial_forward.1} parent=1 // pred_region
      _
    $region33: #{adversarial_forward.1} parent=1 // pred_fallthru
      _
    // Predicated region
    $region34: #{adversarial_forward.1} parent=1 // pred_check
      _
    $region35: #{adversarial_forward.1} parent=1 // pred_check_branch
      %35 = sbr.rel (0) target = $region37
    $region36: #{adversarial_forward.1} parent=1 // pred_region
      _
    $region37: #{adversarial_forward.1} parent=1 // pred_fallthru
      _
    // Predicated region
    $region38: #{adversarial_forward.1} parent=1 // pred_check
      _
    $region39: #{adversarial_forward.1} parent=1 // pred_check_branch
      %37 = sbr.rel (0) target = $region41
    $region40: #{adversarial_forward.1} parent=1 // pred_region
      _
    $region41: #{adversarial_forward.1} parent=1 // pred_fallthru
      _
    %vm39 = vcmask 1043456
    %vm40 = vcmask 130052
    %vm41 = vmor %vm40, %vm39
    %42 = vst.msk [vmem:[#allocation2] sm:$0xff] %vm41, 0
    %vm43 = vcmask 1040384
    %vm44 = vsmask.f32 256
    %vm45 = vmand %vm43, %vm44
    %vm46 = vcmask 126980
    %vm47 = vsmask.f32 4352
    %vm48 = vmand %vm46, %vm47
    %vm49 = vmor %vm48, %vm45
    %v50 = vld [vmem:[#allocation2 + $0x8] sm:$0x11]
    %v51 = vsel %vm49, 0, %v50
    %52 = vst [vmem:[#allocation2 + $0x8] sm:$0x11] %v51
    %53 = vst.msk [vmem:[#allocation2 + $0x10] sm:$0xff] %vm41, 0
    %v54 = vld [vmem:[#allocation2 + $0x18] sm:$0x11]
    %v55 = vsel %vm49, 0, %v54
    %56 = vst [vmem:[#allocation2 + $0x18] sm:$0x11] %v55
    %57 = vst.msk [vmem:[#allocation2 + $0x20] sm:$0xff] %vm41, 0
    %v58 = vld [vmem:[#allocation2 + $0x28] sm:$0x11]
    %v59 = vsel %vm49, 0, %v58
    %60 = vst [vmem:[#allocation2 + $0x28] sm:$0x11] %v59
    %61 = vst.msk [vmem:[#allocation2 + $0x30] sm:$0xff] %vm41, 0
    %v62 = vld [vmem:[#allocation2 + $0x38] sm:$0x11]
    %v63 = vsel %vm49, 0, %v62
    %64 = vst [vmem:[#allocation2 + $0x38] sm:$0x11] %v63
    %65 = vst.msk [vmem:[#allocation3] sm:$0xff] %vm41, 0
    %v66 = vld [vmem:[#allocation3 + $0x8] sm:$0x11]
    %v67 = vsel %vm49, 0, %v66
    %68 = vst [vmem:[#allocation3 + $0x8] sm:$0x11] %v67
    %69 = vst.msk [vmem:[#allocation3 + $0x10] sm:$0xff] %vm41, 0
    %v70 = vld [vmem:[#allocation3 + $0x18] sm:$0x11]
    %v71 = vsel %vm49, 0, %v70
    %72 = vst [vmem:[#allocation3 + $0x18] sm:$0x11] %v71
    %73 = vst.msk [vmem:[#allocation3 + $0x20] sm:$0xff] %vm41, 0
    %v74 = vld [vmem:[#allocation3 + $0x28] sm:$0x11]
    %v75 = vsel %vm49, 0, %v74
    %76 = vst [vmem:[#allocation3 + $0x28] sm:$0x11] %v75
    %77 = vst.msk [vmem:[#allocation3 + $0x30] sm:$0xff] %vm41, 0
    %v78 = vld [vmem:[#allocation3 + $0x38] sm:$0x11]
    %v79 = vsel %vm49, 0, %v78
    %80 = vst [vmem:[#allocation3 + $0x38] sm:$0x11] %v79
    %v81 = vld [vmem:[%s0] sm:$0xf]
    %v82 = vld [vmem:[%s2] sm:$0xf]
    %v83 = vld [vmem:[%s2 + $0x4] sm:$0xf]
    %v84 = vld [vmem:[%s2 + $0x8] sm:$0xf]
    %v85 = vld [vmem:[%s2 + $0xc] sm:$0xf]
    %v86 = vld [vmem:[%s2 + $0x10] sm:$0xf]
    %v87 = vld [vmem:[%s2 + $0x14] sm:$0xf]
    %v88 = vld [vmem:[%s2 + $0x18] sm:$0xf]
    %v89 = vld [vmem:[%s2 + $0x1c] sm:$0xf]
    %v90 = vld [vmem:[%s2 + $0x20] sm:$0xf]
    %v91 = vld [vmem:[%s2 + $0x24] sm:$0xf]
    %v92 = vld [vmem:[%s2 + $0x28] sm:$0xf]
    %v93 = vld [vmem:[%s2 + $0x2c] sm:$0xf]
    %v94 = vld [vmem:[%s2 + $0x30] sm:$0xf]
    %v95 = vld [vmem:[%s2 + $0x34] sm:$0xf]
    %v96 = vld [vmem:[%s2 + $0x38] sm:$0xf]
    %v97 = vld [vmem:[%s2 + $0x3c] sm:$0xf]
    %v98 = vld [vmem:[%s1] sm:$0xf]
    %s99 = scalar_lea.vmem %s2, 64
    %v100 = vld [vmem:[%s99] sm:$0xf]
    %v101 = vld [vmem:[%s99 + $0x4] sm:$0xf]
    %v102 = vld [vmem:[%s99 + $0x8] sm:$0xf]
    %v103 = vld [vmem:[%s99 + $0xc] sm:$0xf]
    %v104 = vld [vmem:[%s99 + $0x10] sm:$0xf]
    %v105 = vld [vmem:[%s99 + $0x14] sm:$0xf]
    %v106 = vld [vmem:[%s99 + $0x18] sm:$0xf]
    %v107 = vld [vmem:[%s99 + $0x1c] sm:$0xf]
    %v108 = vld [vmem:[%s99 + $0x20] sm:$0xf]
    %v109 = vld [vmem:[%s99 + $0x24] sm:$0xf]
    %v110 = vld [vmem:[%s99 + $0x28] sm:$0xf]
    %v111 = vld [vmem:[%s99 + $0x2c] sm:$0xf]
    %v112 = vld [vmem:[%s99 + $0x30] sm:$0xf]
    %v113 = vld [vmem:[%s99 + $0x34] sm:$0xf]
    %v114 = vld [vmem:[%s99 + $0x38] sm:$0xf]
    %v115 = vld [vmem:[%s99 + $0x3c] sm:$0xf]
    %v132 = vunpack.c.l.b16 %v100
    %v133 = vunpack.c.l.b16 %v101
    %v134 = vunpack.c.l.b16 %v102
    %v135 = vunpack.c.l.b16 %v103
    %v136 = vunpack.c.l.b16 %v104
    %v137 = vunpack.c.l.b16 %v105
    %v138 = vunpack.c.l.b16 %v106
    %v139 = vunpack.c.l.b16 %v107
    %v140 = vunpack.c.l.b16 %v108
    %v141 = vunpack.c.l.b16 %v109
    %v142 = vunpack.c.l.b16 %v110
    %v143 = vunpack.c.l.b16 %v111
    %v144 = vunpack.c.l.b16 %v112
    %v145 = vunpack.c.l.b16 %v113
    %v146 = vunpack.c.l.b16 %v114
    %v147 = vunpack.c.l.b16 %v115
    %v148 = vpack.c.b16 %v133, %v132
    %v149 = vpack.c.b16 %v135, %v134
    %v150 = vpack.c.b16 %v137, %v136
    %v151 = vpack.c.b16 %v139, %v138
    %v152 = vpack.c.b16 %v141, %v140
    %v153 = vpack.c.b16 %v143, %v142
    %v154 = vpack.c.b16 %v145, %v144
    %v155 = vpack.c.b16 %v147, %v146
    %164 = vmatprep.subr.bf16.mxu0 0
    %165 = vmatpush1.bf16.msra.mxu0 %v155
    %166 = vmatprep.subr.bf16.mxu0 0
    %167 = vmatpush1.bf16.msra.mxu0 %v154
    %168 = vmatprep.subr.bf16.mxu0 0
    %169 = vmatpush1.bf16.msra.mxu0 %v153
    %170 = vmatprep.subr.bf16.mxu0 0
    %171 = vmatpush1.bf16.msra.mxu0 %v152
    %172 = vmatprep.subr.bf16.mxu0 0
    %173 = vmatpush1.bf16.msra.mxu0 %v151
    %174 = vmatprep.subr.bf16.mxu0 0
    %175 = vmatpush1.bf16.msra.mxu0 %v150
    %176 = vmatprep.subr.bf16.mxu0 0
    %177 = vmatpush1.bf16.msra.mxu0 %v149
    %178 = vmatprep.subr.bf16.mxu0 0
    %179 = vmatpush1.bf16.msra.mxu0 %v148
    %180 = vmatprep.subr.bf16.mxu0 0
    %181 = vmatpush2.bf16.msra.mxu0 0
    %182 = vmatprep.subr.bf16.mxu0 0
    %183 = vmatpush2.bf16.msra.mxu0 0
    %184 = vmatprep.subr.bf16.mxu0 0
    %185 = vmatpush2.bf16.msra.mxu0 0
    %186 = vmatprep.subr.bf16.mxu0 0
    %187 = vmatpush2.bf16.msra.mxu0 0
    %188 = vmatprep.subr.bf16.mxu0 0
    %189 = vmatpush2.bf16.msra.mxu0 0
    %190 = vmatprep.subr.bf16.mxu0 0
    %191 = vmatpush2.bf16.msra.mxu0 0
    %192 = vmatprep.subr.bf16.mxu0 0
    %193 = vmatpush2.bf16.msra.mxu0 0
    %194 = vmatprep.subr.bf16.mxu0 0
    %195 = vmatpush2.bf16.msra.mxu0 0
    %196 = vmatprep.mubr.bf16.mxu0 0
    %197 = vmatmul.mubr.bf16.gmra.mxu0 %v98
    %v198 = vpop.f32.mrf.mxu0
    %v199 = vadd.f32 0.0, %v198
    %v200 = vpop.f32.mrf.mxu0
    %v201 = vpop.f32.mrf.mxu0
    %v202 = vpop.f32.mrf.mxu0
    %203 = vdwg.mxu0
    %v220 = vunpack.c.l.b16 %v82
    %v221 = vunpack.c.l.b16 %v83
    %v222 = vunpack.c.l.b16 %v84
    %v223 = vunpack.c.l.b16 %v85
    %v224 = vunpack.c.l.b16 %v86
    %v225 = vunpack.c.l.b16 %v87
    %v226 = vunpack.c.l.b16 %v88
    %v227 = vunpack.c.l.b16 %v89
    %v228 = vunpack.c.l.b16 %v90
    %v229 = vunpack.c.l.b16 %v91
    %v230 = vunpack.c.l.b16 %v92
    %v231 = vunpack.c.l.b16 %v93
    %v232 = vunpack.c.l.b16 %v94
    %v233 = vunpack.c.l.b16 %v95
    %v234 = vunpack.c.l.b16 %v96
    %v235 = vunpack.c.l.b16 %v97
    %v236 = vpack.c.b16 %v221, %v220
    %v237 = vpack.c.b16 %v223, %v222
    %v238 = vpack.c.b16 %v225, %v224
    %v239 = vpack.c.b16 %v227, %v226
    %v240 = vpack.c.b16 %v229, %v228
    %v241 = vpack.c.b16 %v231, %v230
    %v242 = vpack.c.b16 %v233, %v232
    %v243 = vpack.c.b16 %v235, %v234
    %252 = vmatprep.subr.bf16.mxu0 0
    %253 = vmatpush1.bf16.msra.mxu0 %v243
    %254 = vmatprep.subr.bf16.mxu0 0
    %255 = vmatpush1.bf16.msra.mxu0 %v242
    %256 = vmatprep.subr.bf16.mxu0 0
    %257 = vmatpush1.bf16.msra.mxu0 %v241
    %258 = vmatprep.subr.bf16.mxu0 0
    %259 = vmatpush1.bf16.msra.mxu0 %v240
    %260 = vmatprep.subr.bf16.mxu0 0
    %261 = vmatpush1.bf16.msra.mxu0 %v239
    %262 = vmatprep.subr.bf16.mxu0 0
    %263 = vmatpush1.bf16.msra.mxu0 %v238
    %264 = vmatprep.subr.bf16.mxu0 0
    %265 = vmatpush1.bf16.msra.mxu0 %v237
    %266 = vmatprep.subr.bf16.mxu0 0
    %267 = vmatpush1.bf16.msra.mxu0 %v236
    %268 = vmatprep.subr.bf16.mxu0 0
    %269 = vmatpush2.bf16.msra.mxu0 0
    %270 = vmatprep.subr.bf16.mxu0 0
    %271 = vmatpush2.bf16.msra.mxu0 0
    %272 = vmatprep.subr.bf16.mxu0 0
    %273 = vmatpush2.bf16.msra.mxu0 0
    %274 = vmatprep.subr.bf16.mxu0 0
    %275 = vmatpush2.bf16.msra.mxu0 0
    %276 = vmatprep.subr.bf16.mxu0 0
    %277 = vmatpush2.bf16.msra.mxu0 0
    %278 = vmatprep.subr.bf16.mxu0 0
    %279 = vmatpush2.bf16.msra.mxu0 0
    %280 = vmatprep.subr.bf16.mxu0 0
    %281 = vmatpush2.bf16.msra.mxu0 0
    %282 = vmatprep.subr.bf16.mxu0 0
    %283 = vmatpush2.bf16.msra.mxu0 0
    %284 = vmatprep.mubr.bf16.mxu0 0
    %285 = vmatmul.mubr.bf16.gmra.mxu0 %v81
    %v286 = vpop.f32.mrf.mxu0
    %v287 = vadd.f32 %v199, %v286
    %v288 = vpop.f32.mrf.mxu0
    %v289 = vpop.f32.mrf.mxu0
    %v290 = vpop.f32.mrf.mxu0
    %291 = vdwg.mxu0
    %v292 = vld [vmem:[%s0] sm:$0xf]
    %v293 = vld [vmem:[%s0 + $0x4] sm:$0x1]
    %s294 = scalar_lea.vmem %s2, 128
    %v295 = vld [vmem:[%s294] sm:$0xf]
    %v296 = vld [vmem:[%s294 + $0x4] sm:$0xf]
    %v297 = vld [vmem:[%s294 + $0x8] sm:$0xf]
    %v298 = vld [vmem:[%s294 + $0xc] sm:$0xf]
    %v299 = vld [vmem:[%s294 + $0x10] sm:$0xf]
    %v300 = vld [vmem:[%s294 + $0x14] sm:$0xf]
    %v301 = vld [vmem:[%s294 + $0x18] sm:$0xf]
    %v302 = vld [vmem:[%s294 + $0x1c] sm:$0xf]
    %v303 = vld [vmem:[%s294 + $0x20] sm:$0xf]
    %v304 = vld [vmem:[%s294 + $0x24] sm:$0xf]
    %v305 = vld [vmem:[%s294 + $0x28] sm:$0xf]
    %v306 = vld [vmem:[%s294 + $0x2c] sm:$0xf]
    %v307 = vld [vmem:[%s294 + $0x30] sm:$0xf]
    %v308 = vld [vmem:[%s294 + $0x34] sm:$0xf]
    %v309 = vld [vmem:[%s294 + $0x38] sm:$0xf]
    %v310 = vld [vmem:[%s294 + $0x3c] sm:$0xf]
    %v313 = vunpack.c.l.b16 %v292
    %v314 = vunpack.c.l.b16 %v293
    %v315 = vpack.c.b16 %v314, %v313
    %v317 = vshrl.u32 %v315, 16
    %v319 = vshll.u32 %v315, 16
    %v321 = vrot.slane %v319, 1
    %v322 = vor.u32 %v317, %v321
    %v340 = vunpack.c.l.b16 %v295
    %v341 = vunpack.c.l.b16 %v296
    %v342 = vunpack.c.l.b16 %v297
    %v343 = vunpack.c.l.b16 %v298
    %v344 = vunpack.c.l.b16 %v299
    %v345 = vunpack.c.l.b16 %v300
    %v346 = vunpack.c.l.b16 %v301
    %v347 = vunpack.c.l.b16 %v302
    %v348 = vunpack.c.l.b16 %v303
    %v349 = vunpack.c.l.b16 %v304
    %v350 = vunpack.c.l.b16 %v305
    %v351 = vunpack.c.l.b16 %v306
    %v352 = vunpack.c.l.b16 %v307
    %v353 = vunpack.c.l.b16 %v308
    %v354 = vunpack.c.l.b16 %v309
    %v355 = vunpack.c.l.b16 %v310
    %v356 = vpack.c.b16 %v341, %v340
    %v357 = vpack.c.b16 %v343, %v342
    %v358 = vpack.c.b16 %v345, %v344
    %v359 = vpack.c.b16 %v347, %v346
    %v360 = vpack.c.b16 %v349, %v348
    %v361 = vpack.c.b16 %v351, %v350
    %v362 = vpack.c.b16 %v353, %v352
    %v363 = vpack.c.b16 %v355, %v354
    %372 = vmatprep.subr.bf16.mxu0 0
    %373 = vmatpush1.bf16.msra.mxu0 %v363
    %374 = vmatprep.subr.bf16.mxu0 0
    %375 = vmatpush1.bf16.msra.mxu0 %v362
    %376 = vmatprep.subr.bf16.mxu0 0
    %377 = vmatpush1.bf16.msra.mxu0 %v361
    %378 = vmatprep.subr.bf16.mxu0 0
    %379 = vmatpush1.bf16.msra.mxu0 %v360
    %380 = vmatprep.subr.bf16.mxu0 0
    %381 = vmatpush1.bf16.msra.mxu0 %v359
    %382 = vmatprep.subr.bf16.mxu0 0
    %383 = vmatpush1.bf16.msra.mxu0 %v358
    %384 = vmatprep.subr.bf16.mxu0 0
    %385 = vmatpush1.bf16.msra.mxu0 %v357
    %386 = vmatprep.subr.bf16.mxu0 0
    %387 = vmatpush1.bf16.msra.mxu0 %v356
    %388 = vmatprep.subr.bf16.mxu0 0
    %389 = vmatpush2.bf16.msra.mxu0 0
    %390 = vmatprep.subr.bf16.mxu0 0
    %391 = vmatpush2.bf16.msra.mxu0 0
    %392 = vmatprep.subr.bf16.mxu0 0
    %393 = vmatpush2.bf16.msra.mxu0 0
    %394 = vmatprep.subr.bf16.mxu0 0
    %395 = vmatpush2.bf16.msra.mxu0 0
    %396 = vmatprep.subr.bf16.mxu0 0
    %397 = vmatpush2.bf16.msra.mxu0 0
    %398 = vmatprep.subr.bf16.mxu0 0
    %399 = vmatpush2.bf16.msra.mxu0 0
    %400 = vmatprep.subr.bf16.mxu0 0
    %401 = vmatpush2.bf16.msra.mxu0 0
    %402 = vmatprep.subr.bf16.mxu0 0
    %403 = vmatpush2.bf16.msra.mxu0 0
    %404 = vmatprep.mubr.bf16.mxu0 0
    %405 = vmatmul.mubr.bf16.gmra.mxu0 %v322
    %v406 = vpop.f32.mrf.mxu0
    %v407 = vadd.f32 0.0, %v406
    %v408 = vpop.f32.mrf.mxu0
    %v409 = vpop.f32.mrf.mxu0
    %v410 = vpop.f32.mrf.mxu0
    %411 = vdwg.mxu0
    %v412 = vadd.f32 %v287, %v407
    %413 = vmatprep.subr.bf16.mxu0 0
    %414 = vmatpush1.bf16.msra.mxu0 %v155
    %415 = vmatprep.subr.bf16.mxu0 0
    %416 = vmatpush1.bf16.msra.mxu0 %v154
    %417 = vmatprep.subr.bf16.mxu0 0
    %418 = vmatpush1.bf16.msra.mxu0 %v153
    %419 = vmatprep.subr.bf16.mxu0 0
    %420 = vmatpush1.bf16.msra.mxu0 %v152
    %421 = vmatprep.subr.bf16.mxu0 0
    %422 = vmatpush1.bf16.msra.mxu0 %v151
    %423 = vmatprep.subr.bf16.mxu0 0
    %424 = vmatpush1.bf16.msra.mxu0 %v150
    %425 = vmatprep.subr.bf16.mxu0 0
    %426 = vmatpush1.bf16.msra.mxu0 %v149
    %427 = vmatprep.subr.bf16.mxu0 0
    %428 = vmatpush1.bf16.msra.mxu0 %v148
    %429 = vmatprep.subr.bf16.mxu0 0
    %430 = vmatpush2.bf16.msra.mxu0 0
    %431 = vmatprep.subr.bf16.mxu0 0
    %432 = vmatpush2.bf16.msra.mxu0 0
    %433 = vmatprep.subr.bf16.mxu0 0
    %434 = vmatpush2.bf16.msra.mxu0 0
    %435 = vmatprep.subr.bf16.mxu0 0
    %436 = vmatpush2.bf16.msra.mxu0 0
    %437 = vmatprep.subr.bf16.mxu0 0
    %438 = vmatpush2.bf16.msra.mxu0 0
    %439 = vmatprep.subr.bf16.mxu0 0
    %440 = vmatpush2.bf16.msra.mxu0 0
    %441 = vmatprep.subr.bf16.mxu0 0
    %442 = vmatpush2.bf16.msra.mxu0 0
    %443 = vmatprep.subr.bf16.mxu0 0
    %444 = vmatpush2.bf16.msra.mxu0 0
    %445 = vmatprep.mubr.bf16.mxu0 0
    %446 = vmatmul.mubr.bf16.gmra.mxu0 %v322
    %v447 = vpop.f32.mrf.mxu0
    %v448 = vadd.f32 0.0, %v447
    %v449 = vpop.f32.mrf.mxu0
    %v450 = vpop.f32.mrf.mxu0
    %v451 = vpop.f32.mrf.mxu0
    %452 = vdwg.mxu0
    %453 = vmatprep.subr.bf16.mxu0 0
    %454 = vmatpush1.bf16.msra.mxu0 %v243
    %455 = vmatprep.subr.bf16.mxu0 0
    %456 = vmatpush1.bf16.msra.mxu0 %v242
    %457 = vmatprep.subr.bf16.mxu0 0
    %458 = vmatpush1.bf16.msra.mxu0 %v241
    %459 = vmatprep.subr.bf16.mxu0 0
    %460 = vmatpush1.bf16.msra.mxu0 %v240
    %461 = vmatprep.subr.bf16.mxu0 0
    %462 = vmatpush1.bf16.msra.mxu0 %v239
    %463 = vmatprep.subr.bf16.mxu0 0
    %464 = vmatpush1.bf16.msra.mxu0 %v238
    %465 = vmatprep.subr.bf16.mxu0 0
    %466 = vmatpush1.bf16.msra.mxu0 %v237
    %467 = vmatprep.subr.bf16.mxu0 0
    %468 = vmatpush1.bf16.msra.mxu0 %v236
    %469 = vmatprep.subr.bf16.mxu0 0
    %470 = vmatpush2.bf16.msra.mxu0 0
    %471 = vmatprep.subr.bf16.mxu0 0
    %472 = vmatpush2.bf16.msra.mxu0 0
    %473 = vmatprep.subr.bf16.mxu0 0
    %474 = vmatpush2.bf16.msra.mxu0 0
    %475 = vmatprep.subr.bf16.mxu0 0
    %476 = vmatpush2.bf16.msra.mxu0 0
    %477 = vmatprep.subr.bf16.mxu0 0
    %478 = vmatpush2.bf16.msra.mxu0 0
    %479 = vmatprep.subr.bf16.mxu0 0
    %480 = vmatpush2.bf16.msra.mxu0 0
    %481 = vmatprep.subr.bf16.mxu0 0
    %482 = vmatpush2.bf16.msra.mxu0 0
    %483 = vmatprep.subr.bf16.mxu0 0
    %484 = vmatpush2.bf16.msra.mxu0 0
    %485 = vmatprep.mubr.bf16.mxu0 0
    %486 = vmatmul.mubr.bf16.gmra.mxu0 %v98
    %v487 = vpop.f32.mrf.mxu0
    %v488 = vadd.f32 %v448, %v487
    %v489 = vpop.f32.mrf.mxu0
    %v490 = vpop.f32.mrf.mxu0
    %v491 = vpop.f32.mrf.mxu0
    %492 = vdwg.mxu0
    %v493 = vld [vmem:[%s1] sm:$0xf]
    %v494 = vld [vmem:[%s1 + $0x4] sm:$0x1]
    %v497 = vunpack.c.l.b16 %v493
    %v498 = vunpack.c.l.b16 %v494
    %v499 = vpack.c.b16 %v498, %v497
    %v501 = vshrl.u32 %v499, 16
    %v503 = vshll.u32 %v499, 16
    %v505 = vrot.slane %v503, 1
    %v506 = vor.u32 %v501, %v505
    %508 = vmatprep.subr.bf16.mxu0 0
    %509 = vmatpush1.bf16.msra.mxu0 %v363
    %510 = vmatprep.subr.bf16.mxu0 0
    %511 = vmatpush1.bf16.msra.mxu0 %v362
    %512 = vmatprep.subr.bf16.mxu0 0
    %513 = vmatpush1.bf16.msra.mxu0 %v361
    %514 = vmatprep.subr.bf16.mxu0 0
    %515 = vmatpush1.bf16.msra.mxu0 %v360
    %516 = vmatprep.subr.bf16.mxu0 0
    %517 = vmatpush1.bf16.msra.mxu0 %v359
    %518 = vmatprep.subr.bf16.mxu0 0
    %519 = vmatpush1.bf16.msra.mxu0 %v358
    %520 = vmatprep.subr.bf16.mxu0 0
    %521 = vmatpush1.bf16.msra.mxu0 %v357
    %522 = vmatprep.subr.bf16.mxu0 0
    %523 = vmatpush1.bf16.msra.mxu0 %v356
    %524 = vmatprep.subr.bf16.mxu0 0
    %525 = vmatpush2.bf16.msra.mxu0 0
    %526 = vmatprep.subr.bf16.mxu0 0
    %527 = vmatpush2.bf16.msra.mxu0 0
    %528 = vmatprep.subr.bf16.mxu0 0
    %529 = vmatpush2.bf16.msra.mxu0 0
    %530 = vmatprep.subr.bf16.mxu0 0
    %531 = vmatpush2.bf16.msra.mxu0 0
    %532 = vmatprep.subr.bf16.mxu0 0
    %533 = vmatpush2.bf16.msra.mxu0 0
    %534 = vmatprep.subr.bf16.mxu0 0
    %535 = vmatpush2.bf16.msra.mxu0 0
    %536 = vmatprep.subr.bf16.mxu0 0
    %537 = vmatpush2.bf16.msra.mxu0 0
    %538 = vmatprep.subr.bf16.mxu0 0
    %539 = vmatpush2.bf16.msra.mxu0 0
    %540 = vmatprep.mubr.bf16.mxu0 0
    %541 = vmatmul.mubr.bf16.gmra.mxu0 %v506
    %v542 = vpop.f32.mrf.mxu0
    %v543 = vadd.f32 0.0, %v542
    %v544 = vpop.f32.mrf.mxu0
    %v545 = vpop.f32.mrf.mxu0
    %v546 = vpop.f32.mrf.mxu0
    %547 = vdwg.mxu0
    %v548 = vadd.f32 %v488, %v543
    %v549 = vld [vmem:[%s3] sm:$0x1]
    %v551 = vlaneseq
    %v552 = vshrl.u32 %v551, 7
    %v553 = vsub.s32 0, %v552
    %v554 = vrot.slane %v549, %v553
    %v556 = vadd.f32 %v412, %v554
    %vm557 = vcmp.ge.f32.partialorder %v556, 0.0
    %v558 = vmul.f32 %v556, 0.2
    %v559 = vsel %vm557, %v556, %v558
    %v560 = vadd.f32 %v548, %v554
    %vm561 = vcmp.ge.f32.partialorder %v560, 0.0
    %v562 = vmul.f32 %v560, 0.2
    %v563 = vsel %vm561, %v560, %v562
    %v564 = vpack.c.bf16 %v563, %v563
    %v566 = vunpack.c.l.b16 %v564
    %v567 = vpack.c.b16 %v566, %v566
    %v569 = vshrl.u32 %v567, 16
    %v571 = vrot.slane %v569, 7
    %v572 = vshll.u32 %v567, 16
    %v574 = vor.u32 %v571, %v572
    %v575 = vrot.slane %v571, 4
    %576 = vrot.lane.b32.xlu0 %v574, 8
    %v577 = vpop.permute.xlu0 %576
    %578 = vrot.lane.b32.xlu0 %v575, 8
    %v579 = vpop.permute.xlu0 %578
    %v580 = vrot.slane %v577, 4
    %v581 = vrot.slane %v579, 4
    %vm582 = vcmask 64512
    %v583 = vsel %vm582, %v580, %v577
    %v584 = vsel %vm582, %v581, %v579
    %vm587 = vcmask 1043520
    %vm588 = vsmask.f32 7938
    %vm589 = vmand %vm587, %vm588
    %vm590 = vcmask 64516
    %vm591 = vsmask.f32 7954
    %vm592 = vmand %vm590, %vm591
    %vm593 = vmor %vm592, %vm589
    %v594 = vld [vmem:[#allocation2] sm:$0xff]
    %v595 = vsel %vm593, %v583, %v594
    %596 = vst [vmem:[#allocation2] sm:$0xff] %v595
    %vm597 = vcmask 1040448
    %vm598 = vmand %vm597, %vm44
    %vm599 = vcmask 61444
    %vm600 = vmand %vm599, %vm47
    %vm601 = vmor %vm600, %vm598
    %v602 = vld [vmem:[#allocation2 + $0x8] sm:$0x11]
    %v603 = vsel %vm601, %v584, %v602
    %604 = vst [vmem:[#allocation2 + $0x8] sm:$0x11] %v603
    %v605 = vpack.c.bf16 %v559, %v559
    %v607 = vunpack.c.l.b16 %v605
    %v608 = vpack.c.b16 %v607, %v607
    %609 = vrot.lane.b32.xlu0 %v608, 8
    %v610 = vpop.permute.xlu0 %609
    %v611 = vrot.slane %v610, 4
    %v612 = vsel %vm582, %v611, %v610
    %vm614 = vcmask 1043520
    %vm615 = vcmask 64516
    %vm616 = vmor %vm615, %vm614
    %617 = vst.msk [vmem:[#allocation3] sm:$0xff] %vm616, %v612
    %v618 = vld [vmem:[#allocation2] sm:$0xff]
    %v619 = vld [vmem:[%s4] sm:$0xf]
    %v620 = vld [vmem:[%s4 + $0x4] sm:$0xf]
    %v621 = vld [vmem:[%s4 + $0x8] sm:$0xf]
    %v622 = vld [vmem:[%s4 + $0xc] sm:$0xf]
    %v623 = vld [vmem:[%s4 + $0x10] sm:$0xf]
    %v624 = vld [vmem:[%s4 + $0x14] sm:$0xf]
    %v625 = vld [vmem:[%s4 + $0x18] sm:$0xf]
    %v626 = vld [vmem:[%s4 + $0x1c] sm:$0xf]
    %v627 = vld [vmem:[%s4 + $0x20] sm:$0xf]
    %v628 = vld [vmem:[%s4 + $0x24] sm:$0xf]
    %v629 = vld [vmem:[%s4 + $0x28] sm:$0xf]
    %v630 = vld [vmem:[%s4 + $0x2c] sm:$0xf]
    %v631 = vld [vmem:[%s4 + $0x30] sm:$0xf]
    %v632 = vld [vmem:[%s4 + $0x34] sm:$0xf]
    %v633 = vld [vmem:[%s4 + $0x38] sm:$0xf]
    %v634 = vld [vmem:[%s4 + $0x3c] sm:$0xf]
    %v635 = vld [vmem:[%s4 + $0x40] sm:$0xf]
    %v636 = vld [vmem:[%s4 + $0x44] sm:$0xf]
    %v637 = vld [vmem:[#allocation3] sm:$0xff]
    %s638 = scalar_lea.vmem %s4, 72
    %v639 = vld [vmem:[%s638] sm:$0xf]
    %v640 = vld [vmem:[%s638 + $0x4] sm:$0xf]
    %v641 = vld [vmem:[%s638 + $0x8] sm:$0xf]
    %v642 = vld [vmem:[%s638 + $0xc] sm:$0xf]
    %v643 = vld [vmem:[%s638 + $0x10] sm:$0xf]
    %v644 = vld [vmem:[%s638 + $0x14] sm:$0xf]
    %v645 = vld [vmem:[%s638 + $0x18] sm:$0xf]
    %v646 = vld [vmem:[%s638 + $0x1c] sm:$0xf]
    %v647 = vld [vmem:[%s638 + $0x20] sm:$0xf]
    %v648 = vld [vmem:[%s638 + $0x24] sm:$0xf]
    %v649 = vld [vmem:[%s638 + $0x28] sm:$0xf]
    %v650 = vld [vmem:[%s638 + $0x2c] sm:$0xf]
    %v651 = vld [vmem:[%s638 + $0x30] sm:$0xf]
    %v652 = vld [vmem:[%s638 + $0x34] sm:$0xf]
    %v653 = vld [vmem:[%s638 + $0x38] sm:$0xf]
    %v654 = vld [vmem:[%s638 + $0x3c] sm:$0xf]
    %v655 = vld [vmem:[%s638 + $0x40] sm:$0xf]
    %v656 = vld [vmem:[%s638 + $0x44] sm:$0xf]
    %v658 = vunpack.c.l.b16 %v637
    %v659 = vunpack.c.h.b16 %v637
    %v660 = vpack.c.b16 %v658, %v658
    %v661 = vpack.c.b16 %v659, %v659
    %v681 = vunpack.c.l.b16 %v639
    %v682 = vunpack.c.l.b16 %v640
    %v683 = vunpack.c.l.b16 %v641
    %v684 = vunpack.c.l.b16 %v642
    %v685 = vunpack.c.l.b16 %v643
    %v686 = vunpack.c.l.b16 %v644
    %v687 = vunpack.c.l.b16 %v645
    %v688 = vunpack.c.l.b16 %v646
    %v689 = vunpack.c.l.b16 %v647
    %v690 = vunpack.c.l.b16 %v648
    %v691 = vunpack.c.l.b16 %v649
    %v692 = vunpack.c.l.b16 %v650
    %v693 = vunpack.c.l.b16 %v651
    %v694 = vunpack.c.l.b16 %v652
    %v695 = vunpack.c.l.b16 %v653
    %v696 = vunpack.c.l.b16 %v654
    %v697 = vunpack.c.l.b16 %v655
    %v698 = vunpack.c.l.b16 %v656
    %v699 = vpack.c.b16 %v682, %v681
    %v700 = vpack.c.b16 %v684, %v683
    %v701 = vpack.c.b16 %v686, %v685
    %v702 = vpack.c.b16 %v688, %v687
    %v703 = vpack.c.b16 %v690, %v689
    %v704 = vpack.c.b16 %v692, %v691
    %v705 = vpack.c.b16 %v694, %v693
    %v706 = vpack.c.b16 %v696, %v695
    %v707 = vpack.c.b16 %v698, %v697
    %vm717 = vcmask 130048
    %v719 = vsel %vm717, %v661, 0
    %721 = vmatprep.subr.bf16.mxu0 0
    %722 = vmatpush1.bf16.msra.mxu0 %v706
    %723 = vmatprep.subr.bf16.mxu0 0
    %724 = vmatpush1.bf16.msra.mxu0 %v705
    %725 = vmatprep.subr.bf16.mxu0 0
    %726 = vmatpush1.bf16.msra.mxu0 %v704
    %727 = vmatprep.subr.bf16.mxu0 0
    %728 = vmatpush1.bf16.msra.mxu0 %v703
    %729 = vmatprep.subr.bf16.mxu0 0
    %730 = vmatpush1.bf16.msra.mxu0 %v702
    %731 = vmatprep.subr.bf16.mxu0 0
    %732 = vmatpush1.bf16.msra.mxu0 %v701
    %733 = vmatprep.subr.bf16.mxu0 0
    %734 = vmatpush1.bf16.msra.mxu0 %v700
    %735 = vmatprep.subr.bf16.mxu0 0
    %736 = vmatpush1.bf16.msra.mxu0 %v699
    %737 = vmatprep.subr.bf16.mxu0 0
    %738 = vmatpush2.bf16.msra.mxu0 0
    %739 = vmatprep.subr.bf16.mxu0 0
    %740 = vmatpush2.bf16.msra.mxu0 0
    %741 = vmatprep.subr.bf16.mxu0 0
    %742 = vmatpush2.bf16.msra.mxu0 0
    %743 = vmatprep.subr.bf16.mxu0 0
    %744 = vmatpush2.bf16.msra.mxu0 0
    %745 = vmatprep.subr.bf16.mxu0 0
    %746 = vmatpush2.bf16.msra.mxu0 0
    %747 = vmatprep.subr.bf16.mxu0 0
    %748 = vmatpush2.bf16.msra.mxu0 0
    %749 = vmatprep.subr.bf16.mxu0 0
    %750 = vmatpush2.bf16.msra.mxu0 0
    %751 = vmatprep.subr.bf16.mxu0 0
    %752 = vmatpush2.bf16.msra.mxu0 %v707
    %753 = vmatprep.mubr.bf16.mxu0 %v719
    %754 = vmatmul.mubr.bf16.gmra.mxu0 %v660
    %v755 = vpop.f32.mrf.mxu0
    %v756 = vadd.f32 0.0, %v755
    %v757 = vpop.f32.mrf.mxu0
    %v758 = vpop.f32.mrf.mxu0
    %v759 = vpop.f32.mrf.mxu0
    %760 = vdwg.mxu0
    %v762 = vunpack.c.l.b16 %v618
    %v763 = vunpack.c.h.b16 %v618
    %v764 = vpack.c.b16 %v762, %v762
    %v765 = vpack.c.b16 %v763, %v763
    %v785 = vunpack.c.l.b16 %v619
    %v786 = vunpack.c.l.b16 %v620
    %v787 = vunpack.c.l.b16 %v621
    %v788 = vunpack.c.l.b16 %v622
    %v789 = vunpack.c.l.b16 %v623
    %v790 = vunpack.c.l.b16 %v624
    %v791 = vunpack.c.l.b16 %v625
    %v792 = vunpack.c.l.b16 %v626
    %v793 = vunpack.c.l.b16 %v627
    %v794 = vunpack.c.l.b16 %v628
    %v795 = vunpack.c.l.b16 %v629
    %v796 = vunpack.c.l.b16 %v630
    %v797 = vunpack.c.l.b16 %v631
    %v798 = vunpack.c.l.b16 %v632
    %v799 = vunpack.c.l.b16 %v633
    %v800 = vunpack.c.l.b16 %v634
    %v801 = vunpack.c.l.b16 %v635
    %v802 = vunpack.c.l.b16 %v636
    %v803 = vpack.c.b16 %v786, %v785
    %v804 = vpack.c.b16 %v788, %v787
    %v805 = vpack.c.b16 %v790, %v789
    %v806 = vpack.c.b16 %v792, %v791
    %v807 = vpack.c.b16 %v794, %v793
    %v808 = vpack.c.b16 %v796, %v795
    %v809 = vpack.c.b16 %v798, %v797
    %v810 = vpack.c.b16 %v800, %v799
    %v811 = vpack.c.b16 %v802, %v801
    %v822 = vsel %vm717, %v765, 0
    %824 = vmatprep.subr.bf16.mxu0 0
    %825 = vmatpush1.bf16.msra.mxu0 %v810
    %826 = vmatprep.subr.bf16.mxu0 0
    %827 = vmatpush1.bf16.msra.mxu0 %v809
    %828 = vmatprep.subr.bf16.mxu0 0
    %829 = vmatpush1.bf16.msra.mxu0 %v808
    %830 = vmatprep.subr.bf16.mxu0 0
    %831 = vmatpush1.bf16.msra.mxu0 %v807
    %832 = vmatprep.subr.bf16.mxu0 0
    %833 = vmatpush1.bf16.msra.mxu0 %v806
    %834 = vmatprep.subr.bf16.mxu0 0
    %835 = vmatpush1.bf16.msra.mxu0 %v805
    %836 = vmatprep.subr.bf16.mxu0 0
    %837 = vmatpush1.bf16.msra.mxu0 %v804
    %838 = vmatprep.subr.bf16.mxu0 0
    %839 = vmatpush1.bf16.msra.mxu0 %v803
    %840 = vmatprep.subr.bf16.mxu0 0
    %841 = vmatpush2.bf16.msra.mxu0 0
    %842 = vmatprep.subr.bf16.mxu0 0
    %843 = vmatpush2.bf16.msra.mxu0 0
    %844 = vmatprep.subr.bf16.mxu0 0
    %845 = vmatpush2.bf16.msra.mxu0 0
    %846 = vmatprep.subr.bf16.mxu0 0
    %847 = vmatpush2.bf16.msra.mxu0 0
    %848 = vmatprep.subr.bf16.mxu0 0
    %849 = vmatpush2.bf16.msra.mxu0 0
    %850 = vmatprep.subr.bf16.mxu0 0
    %851 = vmatpush2.bf16.msra.mxu0 0
    %852 = vmatprep.subr.bf16.mxu0 0
    %853 = vmatpush2.bf16.msra.mxu0 0
    %854 = vmatprep.subr.bf16.mxu0 0
    %855 = vmatpush2.bf16.msra.mxu0 %v811
    %856 = vmatprep.mubr.bf16.mxu0 %v822
    %857 = vmatmul.mubr.bf16.gmra.mxu0 %v764
    %v858 = vpop.f32.mrf.mxu0
    %v859 = vadd.f32 %v756, %v858
    %v860 = vpop.f32.mrf.mxu0
    %v861 = vpop.f32.mrf.mxu0
    %v862 = vpop.f32.mrf.mxu0
    %863 = vdwg.mxu0
    %v864 = vld [vmem:[#allocation2] sm:$0xff]
    %v865 = vld [vmem:[#allocation2 + $0x8] sm:$0x11]
    %s866 = scalar_lea.vmem %s4, 144
    %v867 = vld [vmem:[%s866] sm:$0xf]
    %v868 = vld [vmem:[%s866 + $0x4] sm:$0xf]
    %v869 = vld [vmem:[%s866 + $0x8] sm:$0xf]
    %v870 = vld [vmem:[%s866 + $0xc] sm:$0xf]
    %v871 = vld [vmem:[%s866 + $0x10] sm:$0xf]
    %v872 = vld [vmem:[%s866 + $0x14] sm:$0xf]
    %v873 = vld [vmem:[%s866 + $0x18] sm:$0xf]
    %v874 = vld [vmem:[%s866 + $0x1c] sm:$0xf]
    %v875 = vld [vmem:[%s866 + $0x20] sm:$0xf]
    %v876 = vld [vmem:[%s866 + $0x24] sm:$0xf]
    %v877 = vld [vmem:[%s866 + $0x28] sm:$0xf]
    %v878 = vld [vmem:[%s866 + $0x2c] sm:$0xf]
    %v879 = vld [vmem:[%s866 + $0x30] sm:$0xf]
    %v880 = vld [vmem:[%s866 + $0x34] sm:$0xf]
    %v881 = vld [vmem:[%s866 + $0x38] sm:$0xf]
    %v882 = vld [vmem:[%s866 + $0x3c] sm:$0xf]
    %v883 = vld [vmem:[%s866 + $0x40] sm:$0xf]
    %v884 = vld [vmem:[%s866 + $0x44] sm:$0xf]
    %v887 = vunpack.c.l.b16 %v864
    %v888 = vunpack.c.h.b16 %v864
    %v889 = vunpack.c.l.b16 %v865
    %v890 = vunpack.c.h.b16 %v865
    %v891 = vpack.c.b16 %v889, %v887
    %v892 = vpack.c.b16 %v890, %v888
    %v894 = vshrl.u32 %v891, 16
    %v896 = vshll.u32 %v891, 16
    %v898 = vrot.slane %v896, 1
    %v899 = vor.u32 %v894, %v898
    %v901 = vshrl.u32 %v892, 16
    %v903 = vshll.u32 %v892, 16
    %v905 = vrot.slane %v903, 1
    %v906 = vor.u32 %v901, %v905
    %v926 = vunpack.c.l.b16 %v867
    %v927 = vunpack.c.l.b16 %v868
    %v928 = vunpack.c.l.b16 %v869
    %v929 = vunpack.c.l.b16 %v870
    %v930 = vunpack.c.l.b16 %v871
    %v931 = vunpack.c.l.b16 %v872
    %v932 = vunpack.c.l.b16 %v873
    %v933 = vunpack.c.l.b16 %v874
    %v934 = vunpack.c.l.b16 %v875
    %v935 = vunpack.c.l.b16 %v876
    %v936 = vunpack.c.l.b16 %v877
    %v937 = vunpack.c.l.b16 %v878
    %v938 = vunpack.c.l.b16 %v879
    %v939 = vunpack.c.l.b16 %v880
    %v940 = vunpack.c.l.b16 %v881
    %v941 = vunpack.c.l.b16 %v882
    %v942 = vunpack.c.l.b16 %v883
    %v943 = vunpack.c.l.b16 %v884
    %v944 = vpack.c.b16 %v927, %v926
    %v945 = vpack.c.b16 %v929, %v928
    %v946 = vpack.c.b16 %v931, %v930
    %v947 = vpack.c.b16 %v933, %v932
    %v948 = vpack.c.b16 %v935, %v934
    %v949 = vpack.c.b16 %v937, %v936
    %v950 = vpack.c.b16 %v939, %v938
    %v951 = vpack.c.b16 %v941, %v940
    %v952 = vpack.c.b16 %v943, %v942
    %v963 = vsel %vm717, %v906, 0
    %965 = vmatprep.subr.bf16.mxu0 0
    %966 = vmatpush1.bf16.msra.mxu0 %v951
    %967 = vmatprep.subr.bf16.mxu0 0
    %968 = vmatpush1.bf16.msra.mxu0 %v950
    %969 = vmatprep.subr.bf16.mxu0 0
    %970 = vmatpush1.bf16.msra.mxu0 %v949
    %971 = vmatprep.subr.bf16.mxu0 0
    %972 = vmatpush1.bf16.msra.mxu0 %v948
    %973 = vmatprep.subr.bf16.mxu0 0
    %974 = vmatpush1.bf16.msra.mxu0 %v947
    %975 = vmatprep.subr.bf16.mxu0 0
    %976 = vmatpush1.bf16.msra.mxu0 %v946
    %977 = vmatprep.subr.bf16.mxu0 0
    %978 = vmatpush1.bf16.msra.mxu0 %v945
    %979 = vmatprep.subr.bf16.mxu0 0
    %980 = vmatpush1.bf16.msra.mxu0 %v944
    %981 = vmatprep.subr.bf16.mxu0 0
    %982 = vmatpush2.bf16.msra.mxu0 0
    %983 = vmatprep.subr.bf16.mxu0 0
    %984 = vmatpush2.bf16.msra.mxu0 0
    %985 = vmatprep.subr.bf16.mxu0 0
    %986 = vmatpush2.bf16.msra.mxu0 0
    %987 = vmatprep.subr.bf16.mxu0 0
    %988 = vmatpush2.bf16.msra.mxu0 0
    %989 = vmatprep.subr.bf16.mxu0 0
    %990 = vmatpush2.bf16.msra.mxu0 0
    %991 = vmatprep.subr.bf16.mxu0 0
    %992 = vmatpush2.bf16.msra.mxu0 0
    %993 = vmatprep.subr.bf16.mxu0 0
    %994 = vmatpush2.bf16.msra.mxu0 0
    %995 = vmatprep.subr.bf16.mxu0 0
    %996 = vmatpush2.bf16.msra.mxu0 %v952
    %997 = vmatprep.mubr.bf16.mxu0 %v963
    %998 = vmatmul.mubr.bf16.gmra.mxu0 %v899
    %v999 = vpop.f32.mrf.mxu0
    %v1000 = vadd.f32 0.0, %v999
    %v1001 = vpop.f32.mrf.mxu0
    %v1002 = vpop.f32.mrf.mxu0
    %v1003 = vpop.f32.mrf.mxu0
    %1004 = vdwg.mxu0
    %v1005 = vadd.f32 %v859, %v1000
    %v1006 = vld [vmem:[%s5] sm:$0x1]
    %v1008 = vlaneseq
    %v1009 = vshrl.u32 %v1008, 7
    %v1010 = vsub.s32 0, %v1009
    %v1011 = vrot.slane %v1006, %v1010
    %v1013 = vadd.f32 %v1005, %v1011
    %vm1014 = vcmp.ge.f32.partialorder %v1013, 0.0
    %v1015 = vmul.f32 %v1013, 0.2
    %v1016 = vsel %vm1014, %v1013, %v1015
    %v1017 = vpack.c.bf16 %v1016, %v1016
    %s1018 = scalar_lea.vmem %s0, 8
    %v1019 = vld [vmem:[%s1018] sm:$0xf]
    %v1020 = vld [vmem:[%s2] sm:$0xf]
    %v1021 = vld [vmem:[%s2 + $0x4] sm:$0xf]
    %v1022 = vld [vmem:[%s2 + $0x8] sm:$0xf]
    %v1023 = vld [vmem:[%s2 + $0xc] sm:$0xf]
    %v1024 = vld [vmem:[%s2 + $0x10] sm:$0xf]
    %v1025 = vld [vmem:[%s2 + $0x14] sm:$0xf]
    %v1026 = vld [vmem:[%s2 + $0x18] sm:$0xf]
    %v1027 = vld [vmem:[%s2 + $0x1c] sm:$0xf]
    %v1028 = vld [vmem:[%s2 + $0x20] sm:$0xf]
    %v1029 = vld [vmem:[%s2 + $0x24] sm:$0xf]
    %v1030 = vld [vmem:[%s2 + $0x28] sm:$0xf]
    %v1031 = vld [vmem:[%s2 + $0x2c] sm:$0xf]
    %v1032 = vld [vmem:[%s2 + $0x30] sm:$0xf]
    %v1033 = vld [vmem:[%s2 + $0x34] sm:$0xf]
    %v1034 = vld [vmem:[%s2 + $0x38] sm:$0xf]
    %v1035 = vld [vmem:[%s2 + $0x3c] sm:$0xf]
    %s1036 = scalar_lea.vmem %s1, 8
    %v1037 = vld [vmem:[%s1036] sm:$0xf]
    %v1038 = vld [vmem:[%s99] sm:$0xf]
    %v1039 = vld [vmem:[%s99 + $0x4] sm:$0xf]
    %v1040 = vld [vmem:[%s99 + $0x8] sm:$0xf]
    %v1041 = vld [vmem:[%s99 + $0xc] sm:$0xf]
    %v1042 = vld [vmem:[%s99 + $0x10] sm:$0xf]
    %v1043 = vld [vmem:[%s99 + $0x14] sm:$0xf]
    %v1044 = vld [vmem:[%s99 + $0x18] sm:$0xf]
    %v1045 = vld [vmem:[%s99 + $0x1c] sm:$0xf]
    %v1046 = vld [vmem:[%s99 + $0x20] sm:$0xf]
    %v1047 = vld [vmem:[%s99 + $0x24] sm:$0xf]
    %v1048 = vld [vmem:[%s99 + $0x28] sm:$0xf]
    %v1049 = vld [vmem:[%s99 + $0x2c] sm:$0xf]
    %v1050 = vld [vmem:[%s99 + $0x30] sm:$0xf]
    %v1051 = vld [vmem:[%s99 + $0x34] sm:$0xf]
    %v1052 = vld [vmem:[%s99 + $0x38] sm:$0xf]
    %v1053 = vld [vmem:[%s99 + $0x3c] sm:$0xf]
    %v1070 = vunpack.c.l.b16 %v1038
    %v1071 = vunpack.c.l.b16 %v1039
    %v1072 = vunpack.c.l.b16 %v1040
    %v1073 = vunpack.c.l.b16 %v1041
    %v1074 = vunpack.c.l.b16 %v1042
    %v1075 = vunpack.c.l.b16 %v1043
    %v1076 = vunpack.c.l.b16 %v1044
    %v1077 = vunpack.c.l.b16 %v1045
    %v1078 = vunpack.c.l.b16 %v1046
    %v1079 = vunpack.c.l.b16 %v1047
    %v1080 = vunpack.c.l.b16 %v1048
    %v1081 = vunpack.c.l.b16 %v1049
    %v1082 = vunpack.c.l.b16 %v1050
    %v1083 = vunpack.c.l.b16 %v1051
    %v1084 = vunpack.c.l.b16 %v1052
    %v1085 = vunpack.c.l.b16 %v1053
    %v1086 = vpack.c.b16 %v1071, %v1070
    %v1087 = vpack.c.b16 %v1073, %v1072
    %v1088 = vpack.c.b16 %v1075, %v1074
    %v1089 = vpack.c.b16 %v1077, %v1076
    %v1090 = vpack.c.b16 %v1079, %v1078
    %v1091 = vpack.c.b16 %v1081, %v1080
    %v1092 = vpack.c.b16 %v1083, %v1082
    %v1093 = vpack.c.b16 %v1085, %v1084
    %1102 = vmatprep.subr.bf16.mxu0 0
    %1103 = vmatpush1.bf16.msra.mxu0 %v1093
    %1104 = vmatprep.subr.bf16.mxu0 0
    %1105 = vmatpush1.bf16.msra.mxu0 %v1092
    %1106 = vmatprep.subr.bf16.mxu0 0
    %1107 = vmatpush1.bf16.msra.mxu0 %v1091
    %1108 = vmatprep.subr.bf16.mxu0 0
    %1109 = vmatpush1.bf16.msra.mxu0 %v1090
    %1110 = vmatprep.subr.bf16.mxu0 0
    %1111 = vmatpush1.bf16.msra.mxu0 %v1089
    %1112 = vmatprep.subr.bf16.mxu0 0
    %1113 = vmatpush1.bf16.msra.mxu0 %v1088
    %1114 = vmatprep.subr.bf16.mxu0 0
    %1115 = vmatpush1.bf16.msra.mxu0 %v1087
    %1116 = vmatprep.subr.bf16.mxu0 0
    %1117 = vmatpush1.bf16.msra.mxu0 %v1086
    %1118 = vmatprep.subr.bf16.mxu0 0
    %1119 = vmatpush2.bf16.msra.mxu0 0
    %1120 = vmatprep.subr.bf16.mxu0 0
    %1121 = vmatpush2.bf16.msra.mxu0 0
    %1122 = vmatprep.subr.bf16.mxu0 0
    %1123 = vmatpush2.bf16.msra.mxu0 0
    %1124 = vmatprep.subr.bf16.mxu0 0
    %1125 = vmatpush2.bf16.msra.mxu0 0
    %1126 = vmatprep.subr.bf16.mxu0 0
    %1127 = vmatpush2.bf16.msra.mxu0 0
    %1128 = vmatprep.subr.bf16.mxu0 0
    %1129 = vmatpush2.bf16.msra.mxu0 0
    %1130 = vmatprep.subr.bf16.mxu0 0
    %1131 = vmatpush2.bf16.msra.mxu0 0
    %1132 = vmatprep.subr.bf16.mxu0 0
    %1133 = vmatpush2.bf16.msra.mxu0 0
    %1134 = vmatprep.mubr.bf16.mxu0 0
    %1135 = vmatmul.mubr.bf16.gmra.mxu0 %v1037
    %v1136 = vpop.f32.mrf.mxu0
    %v1137 = vadd.f32 0.0, %v1136
    %v1138 = vpop.f32.mrf.mxu0
    %v1139 = vpop.f32.mrf.mxu0
    %v1140 = vpop.f32.mrf.mxu0
    %1141 = vdwg.mxu0
    %v1158 = vunpack.c.l.b16 %v1020
    %v1159 = vunpack.c.l.b16 %v1021
    %v1160 = vunpack.c.l.b16 %v1022
    %v1161 = vunpack.c.l.b16 %v1023
    %v1162 = vunpack.c.l.b16 %v1024
    %v1163 = vunpack.c.l.b16 %v1025
    %v1164 = vunpack.c.l.b16 %v1026
    %v1165 = vunpack.c.l.b16 %v1027
    %v1166 = vunpack.c.l.b16 %v1028
    %v1167 = vunpack.c.l.b16 %v1029
    %v1168 = vunpack.c.l.b16 %v1030
    %v1169 = vunpack.c.l.b16 %v1031
    %v1170 = vunpack.c.l.b16 %v1032
    %v1171 = vunpack.c.l.b16 %v1033
    %v1172 = vunpack.c.l.b16 %v1034
    %v1173 = vunpack.c.l.b16 %v1035
    %v1174 = vpack.c.b16 %v1159, %v1158
    %v1175 = vpack.c.b16 %v1161, %v1160
    %v1176 = vpack.c.b16 %v1163, %v1162
    %v1177 = vpack.c.b16 %v1165, %v1164
    %v1178 = vpack.c.b16 %v1167, %v1166
    %v1179 = vpack.c.b16 %v1169, %v1168
    %v1180 = vpack.c.b16 %v1171, %v1170
    %v1181 = vpack.c.b16 %v1173, %v1172
    %1190 = vmatprep.subr.bf16.mxu0 0
    %1191 = vmatpush1.bf16.msra.mxu0 %v1181
    %1192 = vmatprep.subr.bf16.mxu0 0
    %1193 = vmatpush1.bf16.msra.mxu0 %v1180
    %1194 = vmatprep.subr.bf16.mxu0 0
    %1195 = vmatpush1.bf16.msra.mxu0 %v1179
    %1196 = vmatprep.subr.bf16.mxu0 0
    %1197 = vmatpush1.bf16.msra.mxu0 %v1178
    %1198 = vmatprep.subr.bf16.mxu0 0
    %1199 = vmatpush1.bf16.msra.mxu0 %v1177
    %1200 = vmatprep.subr.bf16.mxu0 0
    %1201 = vmatpush1.bf16.msra.mxu0 %v1176
    %1202 = vmatprep.subr.bf16.mxu0 0
    %1203 = vmatpush1.bf16.msra.mxu0 %v1175
    %1204 = vmatprep.subr.bf16.mxu0 0
    %1205 = vmatpush1.bf16.msra.mxu0 %v1174
    %1206 = vmatprep.subr.bf16.mxu0 0
    %1207 = vmatpush2.bf16.msra.mxu0 0
    %1208 = vmatprep.subr.bf16.mxu0 0
    %1209 = vmatpush2.bf16.msra.mxu0 0
    %1210 = vmatprep.subr.bf16.mxu0 0
    %1211 = vmatpush2.bf16.msra.mxu0 0
    %1212 = vmatprep.subr.bf16.mxu0 0
    %1213 = vmatpush2.bf16.msra.mxu0 0
    %1214 = vmatprep.subr.bf16.mxu0 0
    %1215 = vmatpush2.bf16.msra.mxu0 0
    %1216 = vmatprep.subr.bf16.mxu0 0
    %1217 = vmatpush2.bf16.msra.mxu0 0
    %1218 = vmatprep.subr.bf16.mxu0 0
    %1219 = vmatpush2.bf16.msra.mxu0 0
    %1220 = vmatprep.subr.bf16.mxu0 0
    %1221 = vmatpush2.bf16.msra.mxu0 0
    %1222 = vmatprep.mubr.bf16.mxu0 0
    %1223 = vmatmul.mubr.bf16.gmra.mxu0 %v1019
    %v1224 = vpop.f32.mrf.mxu0
    %v1225 = vadd.f32 %v1137, %v1224
    %v1226 = vpop.f32.mrf.mxu0
    %v1227 = vpop.f32.mrf.mxu0
    %v1228 = vpop.f32.mrf.mxu0
    %1229 = vdwg.mxu0
    %v1230 = vld [vmem:[%s1018] sm:$0xf]
    %v1231 = vld [vmem:[%s1018 + $0x4] sm:$0x1]
    %v1232 = vld [vmem:[%s294] sm:$0xf]
    %v1233 = vld [vmem:[%s294 + $0x4] sm:$0xf]
    %v1234 = vld [vmem:[%s294 + $0x8] sm:$0xf]
    %v1235 = vld [vmem:[%s294 + $0xc] sm:$0xf]
    %v1236 = vld [vmem:[%s294 + $0x10] sm:$0xf]
    %v1237 = vld [vmem:[%s294 + $0x14] sm:$0xf]
    %v1238 = vld [vmem:[%s294 + $0x18] sm:$0xf]
    %v1239 = vld [vmem:[%s294 + $0x1c] sm:$0xf]
    %v1240 = vld [vmem:[%s294 + $0x20] sm:$0xf]
    %v1241 = vld [vmem:[%s294 + $0x24] sm:$0xf]
    %v1242 = vld [vmem:[%s294 + $0x28] sm:$0xf]
    %v1243 = vld [vmem:[%s294 + $0x2c] sm:$0xf]
    %v1244 = vld [vmem:[%s294 + $0x30] sm:$0xf]
    %v1245 = vld [vmem:[%s294 + $0x34] sm:$0xf]
    %v1246 = vld [vmem:[%s294 + $0x38] sm:$0xf]
    %v1247 = vld [vmem:[%s294 + $0x3c] sm:$0xf]
    %v1250 = vunpack.c.l.b16 %v1230
    %v1251 = vunpack.c.l.b16 %v1231
    %v1252 = vpack.c.b16 %v1251, %v1250
    %v1254 = vshrl.u32 %v1252, 16
    %v1256 = vshll.u32 %v1252, 16
    %v1258 = vrot.slane %v1256, 1
    %v1259 = vor.u32 %v1254, %v1258
    %v1277 = vunpack.c.l.b16 %v1232
    %v1278 = vunpack.c.l.b16 %v1233
    %v1279 = vunpack.c.l.b16 %v1234
    %v1280 = vunpack.c.l.b16 %v1235
    %v1281 = vunpack.c.l.b16 %v1236
    %v1282 = vunpack.c.l.b16 %v1237
    %v1283 = vunpack.c.l.b16 %v1238
    %v1284 = vunpack.c.l.b16 %v1239
    %v1285 = vunpack.c.l.b16 %v1240
    %v1286 = vunpack.c.l.b16 %v1241
    %v1287 = vunpack.c.l.b16 %v1242
    %v1288 = vunpack.c.l.b16 %v1243
    %v1289 = vunpack.c.l.b16 %v1244
    %v1290 = vunpack.c.l.b16 %v1245
    %v1291 = vunpack.c.l.b16 %v1246
    %v1292 = vunpack.c.l.b16 %v1247
    %v1293 = vpack.c.b16 %v1278, %v1277
    %v1294 = vpack.c.b16 %v1280, %v1279
    %v1295 = vpack.c.b16 %v1282, %v1281
    %v1296 = vpack.c.b16 %v1284, %v1283
    %v1297 = vpack.c.b16 %v1286, %v1285
    %v1298 = vpack.c.b16 %v1288, %v1287
    %v1299 = vpack.c.b16 %v1290, %v1289
    %v1300 = vpack.c.b16 %v1292, %v1291
    %1309 = vmatprep.subr.bf16.mxu0 0
    %1310 = vmatpush1.bf16.msra.mxu0 %v1300
    %1311 = vmatprep.subr.bf16.mxu0 0
    %1312 = vmatpush1.bf16.msra.mxu0 %v1299
    %1313 = vmatprep.subr.bf16.mxu0 0
    %1314 = vmatpush1.bf16.msra.mxu0 %v1298
    %1315 = vmatprep.subr.bf16.mxu0 0
    %1316 = vmatpush1.bf16.msra.mxu0 %v1297
    %1317 = vmatprep.subr.bf16.mxu0 0
    %1318 = vmatpush1.bf16.msra.mxu0 %v1296
    %1319 = vmatprep.subr.bf16.mxu0 0
    %1320 = vmatpush1.bf16.msra.mxu0 %v1295
    %1321 = vmatprep.subr.bf16.mxu0 0
    %1322 = vmatpush1.bf16.msra.mxu0 %v1294
    %1323 = vmatprep.subr.bf16.mxu0 0
    %1324 = vmatpush1.bf16.msra.mxu0 %v1293
    %1325 = vmatprep.subr.bf16.mxu0 0
    %1326 = vmatpush2.bf16.msra.mxu0 0
    %1327 = vmatprep.subr.bf16.mxu0 0
    %1328 = vmatpush2.bf16.msra.mxu0 0
    %1329 = vmatprep.subr.bf16.mxu0 0
    %1330 = vmatpush2.bf16.msra.mxu0 0
    %1331 = vmatprep.subr.bf16.mxu0 0
    %1332 = vmatpush2.bf16.msra.mxu0 0
    %1333 = vmatprep.subr.bf16.mxu0 0
    %1334 = vmatpush2.bf16.msra.mxu0 0
    %1335 = vmatprep.subr.bf16.mxu0 0
    %1336 = vmatpush2.bf16.msra.mxu0 0
    %1337 = vmatprep.subr.bf16.mxu0 0
    %1338 = vmatpush2.bf16.msra.mxu0 0
    %1339 = vmatprep.subr.bf16.mxu0 0
    %1340 = vmatpush2.bf16.msra.mxu0 0
    %1341 = vmatprep.mubr.bf16.mxu0 0
    %1342 = vmatmul.mubr.bf16.gmra.mxu0 %v1259
    %v1343 = vpop.f32.mrf.mxu0
    %v1344 = vadd.f32 0.0, %v1343
    %v1345 = vpop.f32.mrf.mxu0
    %v1346 = vpop.f32.mrf.mxu0
    %v1347 = vpop.f32.mrf.mxu0
    %1348 = vdwg.mxu0
    %v1349 = vadd.f32 %v1225, %v1344
    %1350 = vmatprep.subr.bf16.mxu0 0
    %1351 = vmatpush1.bf16.msra.mxu0 %v1093
    %1352 = vmatprep.subr.bf16.mxu0 0
    %1353 = vmatpush1.bf16.msra.mxu0 %v1092
    %1354 = vmatprep.subr.bf16.mxu0 0
    %1355 = vmatpush1.bf16.msra.mxu0 %v1091
    %1356 = vmatprep.subr.bf16.mxu0 0
    %1357 = vmatpush1.bf16.msra.mxu0 %v1090
    %1358 = vmatprep.subr.bf16.mxu0 0
    %1359 = vmatpush1.bf16.msra.mxu0 %v1089
    %1360 = vmatprep.subr.bf16.mxu0 0
    %1361 = vmatpush1.bf16.msra.mxu0 %v1088
    %1362 = vmatprep.subr.bf16.mxu0 0
    %1363 = vmatpush1.bf16.msra.mxu0 %v1087
    %1364 = vmatprep.subr.bf16.mxu0 0
    %1365 = vmatpush1.bf16.msra.mxu0 %v1086
    %1366 = vmatprep.subr.bf16.mxu0 0
    %1367 = vmatpush2.bf16.msra.mxu0 0
    %1368 = vmatprep.subr.bf16.mxu0 0
    %1369 = vmatpush2.bf16.msra.mxu0 0
    %1370 = vmatprep.subr.bf16.mxu0 0
    %1371 = vmatpush2.bf16.msra.mxu0 0
    %1372 = vmatprep.subr.bf16.mxu0 0
    %1373 = vmatpush2.bf16.msra.mxu0 0
    %1374 = vmatprep.subr.bf16.mxu0 0
    %1375 = vmatpush2.bf16.msra.mxu0 0
    %1376 = vmatprep.subr.bf16.mxu0 0
    %1377 = vmatpush2.bf16.msra.mxu0 0
    %1378 = vmatprep.subr.bf16.mxu0 0
    %1379 = vmatpush2.bf16.msra.mxu0 0
    %1380 = vmatprep.subr.bf16.mxu0 0
    %1381 = vmatpush2.bf16.msra.mxu0 0
    %1382 = vmatprep.mubr.bf16.mxu0 0
    %1383 = vmatmul.mubr.bf16.gmra.mxu0 %v1259
    %v1384 = vpop.f32.mrf.mxu0
    %v1385 = vadd.f32 0.0, %v1384
    %v1386 = vpop.f32.mrf.mxu0
    %v1387 = vpop.f32.mrf.mxu0
    %v1388 = vpop.f32.mrf.mxu0
    %1389 = vdwg.mxu0
    %1390 = vmatprep.subr.bf16.mxu0 0
    %1391 = vmatpush1.bf16.msra.mxu0 %v1181
    %1392 = vmatprep.subr.bf16.mxu0 0
    %1393 = vmatpush1.bf16.msra.mxu0 %v1180
    %1394 = vmatprep.subr.bf16.mxu0 0
    %1395 = vmatpush1.bf16.msra.mxu0 %v1179
    %1396 = vmatprep.subr.bf16.mxu0 0
    %1397 = vmatpush1.bf16.msra.mxu0 %v1178
    %1398 = vmatprep.subr.bf16.mxu0 0
    %1399 = vmatpush1.bf16.msra.mxu0 %v1177
    %1400 = vmatprep.subr.bf16.mxu0 0
    %1401 = vmatpush1.bf16.msra.mxu0 %v1176
    %1402 = vmatprep.subr.bf16.mxu0 0
    %1403 = vmatpush1.bf16.msra.mxu0 %v1175
    %1404 = vmatprep.subr.bf16.mxu0 0
    %1405 = vmatpush1.bf16.msra.mxu0 %v1174
    %1406 = vmatprep.subr.bf16.mxu0 0
    %1407 = vmatpush2.bf16.msra.mxu0 0
    %1408 = vmatprep.subr.bf16.mxu0 0
    %1409 = vmatpush2.bf16.msra.mxu0 0
    %1410 = vmatprep.subr.bf16.mxu0 0
    %1411 = vmatpush2.bf16.msra.mxu0 0
    %1412 = vmatprep.subr.bf16.mxu0 0
    %1413 = vmatpush2.bf16.msra.mxu0 0
    %1414 = vmatprep.subr.bf16.mxu0 0
    %1415 = vmatpush2.bf16.msra.mxu0 0
    %1416 = vmatprep.subr.bf16.mxu0 0
    %1417 = vmatpush2.bf16.msra.mxu0 0
    %1418 = vmatprep.subr.bf16.mxu0 0
    %1419 = vmatpush2.bf16.msra.mxu0 0
    %1420 = vmatprep.subr.bf16.mxu0 0
    %1421 = vmatpush2.bf16.msra.mxu0 0
    %1422 = vmatprep.mubr.bf16.mxu0 0
    %1423 = vmatmul.mubr.bf16.gmra.mxu0 %v1037
    %v1424 = vpop.f32.mrf.mxu0
    %v1425 = vadd.f32 %v1385, %v1424
    %v1426 = vpop.f32.mrf.mxu0
    %v1427 = vpop.f32.mrf.mxu0
    %v1428 = vpop.f32.mrf.mxu0
    %1429 = vdwg.mxu0
    %v1430 = vld [vmem:[%s1036] sm:$0xf]
    %v1431 = vld [vmem:[%s1036 + $0x4] sm:$0x1]
    %v1434 = vunpack.c.l.b16 %v1430
    %v1435 = vunpack.c.l.b16 %v1431
    %v1436 = vpack.c.b16 %v1435, %v1434
    %v1438 = vshrl.u32 %v1436, 16
    %v1440 = vshll.u32 %v1436, 16
    %v1442 = vrot.slane %v1440, 1
    %v1443 = vor.u32 %v1438, %v1442
    %1445 = vmatprep.subr.bf16.mxu0 0
    %1446 = vmatpush1.bf16.msra.mxu0 %v1300
    %1447 = vmatprep.subr.bf16.mxu0 0
    %1448 = vmatpush1.bf16.msra.mxu0 %v1299
    %1449 = vmatprep.subr.bf16.mxu0 0
    %1450 = vmatpush1.bf16.msra.mxu0 %v1298
    %1451 = vmatprep.subr.bf16.mxu0 0
    %1452 = vmatpush1.bf16.msra.mxu0 %v1297
    %1453 = vmatprep.subr.bf16.mxu0 0
    %1454 = vmatpush1.bf16.msra.mxu0 %v1296
    %1455 = vmatprep.subr.bf16.mxu0 0
    %1456 = vmatpush1.bf16.msra.mxu0 %v1295
    %1457 = vmatprep.subr.bf16.mxu0 0
    %1458 = vmatpush1.bf16.msra.mxu0 %v1294
    %1459 = vmatprep.subr.bf16.mxu0 0
    %1460 = vmatpush1.bf16.msra.mxu0 %v1293
    %1461 = vmatprep.subr.bf16.mxu0 0
    %1462 = vmatpush2.bf16.msra.mxu0 0
    %1463 = vmatprep.subr.bf16.mxu0 0
    %1464 = vmatpush2.bf16.msra.mxu0 0
    %1465 = vmatprep.subr.bf16.mxu0 0
    %1466 = vmatpush2.bf16.msra.mxu0 0
    %1467 = vmatprep.subr.bf16.mxu0 0
    %1468 = vmatpush2.bf16.msra.mxu0 0
    %1469 = vmatprep.subr.bf16.mxu0 0
    %1470 = vmatpush2.bf16.msra.mxu0 0
    %1471 = vmatprep.subr.bf16.mxu0 0
    %1472 = vmatpush2.bf16.msra.mxu0 0
    %1473 = vmatprep.subr.bf16.mxu0 0
    %1474 = vmatpush2.bf16.msra.mxu0 0
    %1475 = vmatprep.subr.bf16.mxu0 0
    %1476 = vmatpush2.bf16.msra.mxu0 0
    %1477 = vmatprep.mubr.bf16.mxu0 0
    %1478 = vmatmul.mubr.bf16.gmra.mxu0 %v1443
    %v1479 = vpop.f32.mrf.mxu0
    %v1480 = vadd.f32 0.0, %v1479
    %v1481 = vpop.f32.mrf.mxu0
    %v1482 = vpop.f32.mrf.mxu0
    %v1483 = vpop.f32.mrf.mxu0
    %1484 = vdwg.mxu0
    %v1485 = vadd.f32 %v1425, %v1480
    %v1486 = vld [vmem:[%s3] sm:$0x1]
    %v1488 = vlaneseq
    %v1489 = vshrl.u32 %v1488, 7
    %v1490 = vsub.s32 0, %v1489
    %v1491 = vrot.slane %v1486, %v1490
    %v1493 = vadd.f32 %v1349, %v1491
    %vm1494 = vcmp.ge.f32.partialorder %v1493, 0.0
    %v1495 = vmul.f32 %v1493, 0.2
    %v1496 = vsel %vm1494, %v1493, %v1495
    %v1497 = vadd.f32 %v1485, %v1491
    %vm1498 = vcmp.ge.f32.partialorder %v1497, 0.0
    %v1499 = vmul.f32 %v1497, 0.2
    %v1500 = vsel %vm1498, %v1497, %v1499
    %v1501 = vpack.c.bf16 %v1500, %v1500
    %v1503 = vunpack.c.l.b16 %v1501
    %v1504 = vpack.c.b16 %v1503, %v1503
    %v1506 = vshrl.u32 %v1504, 16
    %v1508 = vrot.slane %v1506, 7
    %v1509 = vshll.u32 %v1504, 16
    %v1511 = vor.u32 %v1508, %v1509
    %v1512 = vrot.slane %v1508, 4
    %1513 = vrot.lane.b32.xlu0 %v1511, 8
    %v1514 = vpop.permute.xlu0 %1513
    %1515 = vrot.lane.b32.xlu0 %v1512, 8
    %v1516 = vpop.permute.xlu0 %1515
    %v1517 = vrot.slane %v1514, 4
    %v1518 = vrot.slane %v1516, 4
    %v1519 = vsel %vm582, %v1517, %v1514
    %v1520 = vsel %vm582, %v1518, %v1516
    %s1523 = scalar_lea.vmem [#allocation2], 16
    %v1524 = vld [vmem:[%s1523] sm:$0xff]
    %v1525 = vsel %vm593, %v1519, %v1524
    %1526 = vst [vmem:[%s1523] sm:$0xff] %v1525
    %v1527 = vld [vmem:[%s1523 + $0x8] sm:$0x11]
    %v1528 = vsel %vm601, %v1520, %v1527
    %1529 = vst [vmem:[%s1523 + $0x8] sm:$0x11] %v1528
    %v1530 = vpack.c.bf16 %v1496, %v1496
    %v1532 = vunpack.c.l.b16 %v1530
    %v1533 = vpack.c.b16 %v1532, %v1532
    %1534 = vrot.lane.b32.xlu0 %v1533, 8
    %v1535 = vpop.permute.xlu0 %1534
    %v1536 = vrot.slane %v1535, 4
    %v1537 = vsel %vm582, %v1536, %v1535
    %s1539 = scalar_lea.vmem [#allocation3], 16
    %1540 = vst.msk [vmem:[%s1539] sm:$0xff] %vm616, %v1537
    %v1541 = vld [vmem:[%s1523] sm:$0xff]
    %v1542 = vld [vmem:[%s4] sm:$0xf]
    %v1543 = vld [vmem:[%s4 + $0x4] sm:$0xf]
    %v1544 = vld [vmem:[%s4 + $0x8] sm:$0xf]
    %v1545 = vld [vmem:[%s4 + $0xc] sm:$0xf]
    %v1546 = vld [vmem:[%s4 + $0x10] sm:$0xf]
    %v1547 = vld [vmem:[%s4 + $0x14] sm:$0xf]
    %v1548 = vld [vmem:[%s4 + $0x18] sm:$0xf]
    %v1549 = vld [vmem:[%s4 + $0x1c] sm:$0xf]
    %v1550 = vld [vmem:[%s4 + $0x20] sm:$0xf]
    %v1551 = vld [vmem:[%s4 + $0x24] sm:$0xf]
    %v1552 = vld [vmem:[%s4 + $0x28] sm:$0xf]
    %v1553 = vld [vmem:[%s4 + $0x2c] sm:$0xf]
    %v1554 = vld [vmem:[%s4 + $0x30] sm:$0xf]
    %v1555 = vld [vmem:[%s4 + $0x34] sm:$0xf]
    %v1556 = vld [vmem:[%s4 + $0x38] sm:$0xf]
    %v1557 = vld [vmem:[%s4 + $0x3c] sm:$0xf]
    %v1558 = vld [vmem:[%s4 + $0x40] sm:$0xf]
    %v1559 = vld [vmem:[%s4 + $0x44] sm:$0xf]
    %v1560 = vld [vmem:[%s1539] sm:$0xff]
    %v1561 = vld [vmem:[%s638] sm:$0xf]
    %v1562 = vld [vmem:[%s638 + $0x4] sm:$0xf]
    %v1563 = vld [vmem:[%s638 + $0x8] sm:$0xf]
    %v1564 = vld [vmem:[%s638 + $0xc] sm:$0xf]
    %v1565 = vld [vmem:[%s638 + $0x10] sm:$0xf]
    %v1566 = vld [vmem:[%s638 + $0x14] sm:$0xf]
    %v1567 = vld [vmem:[%s638 + $0x18] sm:$0xf]
    %v1568 = vld [vmem:[%s638 + $0x1c] sm:$0xf]
    %v1569 = vld [vmem:[%s638 + $0x20] sm:$0xf]
    %v1570 = vld [vmem:[%s638 + $0x24] sm:$0xf]
    %v1571 = vld [vmem:[%s638 + $0x28] sm:$0xf]
    %v1572 = vld [vmem:[%s638 + $0x2c] sm:$0xf]
    %v1573 = vld [vmem:[%s638 + $0x30] sm:$0xf]
    %v1574 = vld [vmem:[%s638 + $0x34] sm:$0xf]
    %v1575 = vld [vmem:[%s638 + $0x38] sm:$0xf]
    %v1576 = vld [vmem:[%s638 + $0x3c] sm:$0xf]
    %v1577 = vld [vmem:[%s638 + $0x40] sm:$0xf]
    %v1578 = vld [vmem:[%s638 + $0x44] sm:$0xf]
    %v1580 = vunpack.c.l.b16 %v1560
    %v1581 = vunpack.c.h.b16 %v1560
    %v1582 = vpack.c.b16 %v1580, %v1580
    %v1583 = vpack.c.b16 %v1581, %v1581
    %v1603 = vunpack.c.l.b16 %v1561
    %v1604 = vunpack.c.l.b16 %v1562
    %v1605 = vunpack.c.l.b16 %v1563
    %v1606 = vunpack.c.l.b16 %v1564
    %v1607 = vunpack.c.l.b16 %v1565
    %v1608 = vunpack.c.l.b16 %v1566
    %v1609 = vunpack.c.l.b16 %v1567
    %v1610 = vunpack.c.l.b16 %v1568
    %v1611 = vunpack.c.l.b16 %v1569
    %v1612 = vunpack.c.l.b16 %v1570
    %v1613 = vunpack.c.l.b16 %v1571
    %v1614 = vunpack.c.l.b16 %v1572
    %v1615 = vunpack.c.l.b16 %v1573
    %v1616 = vunpack.c.l.b16 %v1574
    %v1617 = vunpack.c.l.b16 %v1575
    %v1618 = vunpack.c.l.b16 %v1576
    %v1619 = vunpack.c.l.b16 %v1577
    %v1620 = vunpack.c.l.b16 %v1578
    %v1621 = vpack.c.b16 %v1604, %v1603
    %v1622 = vpack.c.b16 %v1606, %v1605
    %v1623 = vpack.c.b16 %v1608, %v1607
    %v1624 = vpack.c.b16 %v1610, %v1609
    %v1625 = vpack.c.b16 %v1612, %v1611
    %v1626 = vpack.c.b16 %v1614, %v1613
    %v1627 = vpack.c.b16 %v1616, %v1615
    %v1628 = vpack.c.b16 %v1618, %v1617
    %v1629 = vpack.c.b16 %v1620, %v1619
    %v1640 = vsel %vm717, %v1583, 0
    %1642 = vmatprep.subr.bf16.mxu0 0
    %1643 = vmatpush1.bf16.msra.mxu0 %v1628
    %1644 = vmatprep.subr.bf16.mxu0 0
    %1645 = vmatpush1.bf16.msra.mxu0 %v1627
    %1646 = vmatprep.subr.bf16.mxu0 0
    %1647 = vmatpush1.bf16.msra.mxu0 %v1626
    %1648 = vmatprep.subr.bf16.mxu0 0
    %1649 = vmatpush1.bf16.msra.mxu0 %v1625
    %1650 = vmatprep.subr.bf16.mxu0 0
    %1651 = vmatpush1.bf16.msra.mxu0 %v1624
    %1652 = vmatprep.subr.bf16.mxu0 0
    %1653 = vmatpush1.bf16.msra.mxu0 %v1623
    %1654 = vmatprep.subr.bf16.mxu0 0
    %1655 = vmatpush1.bf16.msra.mxu0 %v1622
    %1656 = vmatprep.subr.bf16.mxu0 0
    %1657 = vmatpush1.bf16.msra.mxu0 %v1621
    %1658 = vmatprep.subr.bf16.mxu0 0
    %1659 = vmatpush2.bf16.msra.mxu0 0
    %1660 = vmatprep.subr.bf16.mxu0 0
    %1661 = vmatpush2.bf16.msra.mxu0 0
    %1662 = vmatprep.subr.bf16.mxu0 0
    %1663 = vmatpush2.bf16.msra.mxu0 0
    %1664 = vmatprep.subr.bf16.mxu0 0
    %1665 = vmatpush2.bf16.msra.mxu0 0
    %1666 = vmatprep.subr.bf16.mxu0 0
    %1667 = vmatpush2.bf16.msra.mxu0 0
    %1668 = vmatprep.subr.bf16.mxu0 0
    %1669 = vmatpush2.bf16.msra.mxu0 0
    %1670 = vmatprep.subr.bf16.mxu0 0
    %1671 = vmatpush2.bf16.msra.mxu0 0
    %1672 = vmatprep.subr.bf16.mxu0 0
    %1673 = vmatpush2.bf16.msra.mxu0 %v1629
    %1674 = vmatprep.mubr.bf16.mxu0 %v1640
    %1675 = vmatmul.mubr.bf16.gmra.mxu0 %v1582
    %v1676 = vpop.f32.mrf.mxu0
    %v1677 = vadd.f32 0.0, %v1676
    %v1678 = vpop.f32.mrf.mxu0
    %v1679 = vpop.f32.mrf.mxu0
    %v1680 = vpop.f32.mrf.mxu0
    %1681 = vdwg.mxu0
    %v1683 = vunpack.c.l.b16 %v1541
    %v1684 = vunpack.c.h.b16 %v1541
    %v1685 = vpack.c.b16 %v1683, %v1683
    %v1686 = vpack.c.b16 %v1684, %v1684
    %v1706 = vunpack.c.l.b16 %v1542
    %v1707 = vunpack.c.l.b16 %v1543
    %v1708 = vunpack.c.l.b16 %v1544
    %v1709 = vunpack.c.l.b16 %v1545
    %v1710 = vunpack.c.l.b16 %v1546
    %v1711 = vunpack.c.l.b16 %v1547
    %v1712 = vunpack.c.l.b16 %v1548
    %v1713 = vunpack.c.l.b16 %v1549
    %v1714 = vunpack.c.l.b16 %v1550
    %v1715 = vunpack.c.l.b16 %v1551
    %v1716 = vunpack.c.l.b16 %v1552
    %v1717 = vunpack.c.l.b16 %v1553
    %v1718 = vunpack.c.l.b16 %v1554
    %v1719 = vunpack.c.l.b16 %v1555
    %v1720 = vunpack.c.l.b16 %v1556
    %v1721 = vunpack.c.l.b16 %v1557
    %v1722 = vunpack.c.l.b16 %v1558
    %v1723 = vunpack.c.l.b16 %v1559
    %v1724 = vpack.c.b16 %v1707, %v1706
    %v1725 = vpack.c.b16 %v1709, %v1708
    %v1726 = vpack.c.b16 %v1711, %v1710
    %v1727 = vpack.c.b16 %v1713, %v1712
    %v1728 = vpack.c.b16 %v1715, %v1714
    %v1729 = vpack.c.b16 %v1717, %v1716
    %v1730 = vpack.c.b16 %v1719, %v1718
    %v1731 = vpack.c.b16 %v1721, %v1720
    %v1732 = vpack.c.b16 %v1723, %v1722
    %v1743 = vsel %vm717, %v1686, 0
    %1745 = vmatprep.subr.bf16.mxu0 0
    %1746 = vmatpush1.bf16.msra.mxu0 %v1731
    %1747 = vmatprep.subr.bf16.mxu0 0
    %1748 = vmatpush1.bf16.msra.mxu0 %v1730
    %1749 = vmatprep.subr.bf16.mxu0 0
    %1750 = vmatpush1.bf16.msra.mxu0 %v1729
    %1751 = vmatprep.subr.bf16.mxu0 0
    %1752 = vmatpush1.bf16.msra.mxu0 %v1728
    %1753 = vmatprep.subr.bf16.mxu0 0
    %1754 = vmatpush1.bf16.msra.mxu0 %v1727
    %1755 = vmatprep.subr.bf16.mxu0 0
    %1756 = vmatpush1.bf16.msra.mxu0 %v1726
    %1757 = vmatprep.subr.bf16.mxu0 0
    %1758 = vmatpush1.bf16.msra.mxu0 %v1725
    %1759 = vmatprep.subr.bf16.mxu0 0
    %1760 = vmatpush1.bf16.msra.mxu0 %v1724
    %1761 = vmatprep.subr.bf16.mxu0 0
    %1762 = vmatpush2.bf16.msra.mxu0 0
    %1763 = vmatprep.subr.bf16.mxu0 0
    %1764 = vmatpush2.bf16.msra.mxu0 0
    %1765 = vmatprep.subr.bf16.mxu0 0
    %1766 = vmatpush2.bf16.msra.mxu0 0
    %1767 = vmatprep.subr.bf16.mxu0 0
    %1768 = vmatpush2.bf16.msra.mxu0 0
    %1769 = vmatprep.subr.bf16.mxu0 0
    %1770 = vmatpush2.bf16.msra.mxu0 0
    %1771 = vmatprep.subr.bf16.mxu0 0
    %1772 = vmatpush2.bf16.msra.mxu0 0
    %1773 = vmatprep.subr.bf16.mxu0 0
    %1774 = vmatpush2.bf16.msra.mxu0 0
    %1775 = vmatprep.subr.bf16.mxu0 0
    %1776 = vmatpush2.bf16.msra.mxu0 %v1732
    %1777 = vmatprep.mubr.bf16.mxu0 %v1743
    %1778 = vmatmul.mubr.bf16.gmra.mxu0 %v1685
    %v1779 = vpop.f32.mrf.mxu0
    %v1780 = vadd.f32 %v1677, %v1779
    %v1781 = vpop.f32.mrf.mxu0
    %v1782 = vpop.f32.mrf.mxu0
    %v1783 = vpop.f32.mrf.mxu0
    %1784 = vdwg.mxu0
    %v1785 = vld [vmem:[%s1523] sm:$0xff]
    %v1786 = vld [vmem:[%s1523 + $0x8] sm:$0x11]
    %v1787 = vld [vmem:[%s866] sm:$0xf]
    %v1788 = vld [vmem:[%s866 + $0x4] sm:$0xf]
    %v1789 = vld [vmem:[%s866 + $0x8] sm:$0xf]
    %v1790 = vld [vmem:[%s866 + $0xc] sm:$0xf]
    %v1791 = vld [vmem:[%s866 + $0x10] sm:$0xf]
    %v1792 = vld [vmem:[%s866 + $0x14] sm:$0xf]
    %v1793 = vld [vmem:[%s866 + $0x18] sm:$0xf]
    %v1794 = vld [vmem:[%s866 + $0x1c] sm:$0xf]
    %v1795 = vld [vmem:[%s866 + $0x20] sm:$0xf]
    %v1796 = vld [vmem:[%s866 + $0x24] sm:$0xf]
    %v1797 = vld [vmem:[%s866 + $0x28] sm:$0xf]
    %v1798 = vld [vmem:[%s866 + $0x2c] sm:$0xf]
    %v1799 = vld [vmem:[%s866 + $0x30] sm:$0xf]
    %v1800 = vld [vmem:[%s866 + $0x34] sm:$0xf]
    %v1801 = vld [vmem:[%s866 + $0x38] sm:$0xf]
    %v1802 = vld [vmem:[%s866 + $0x3c] sm:$0xf]
    %v1803 = vld [vmem:[%s866 + $0x40] sm:$0xf]
    %v1804 = vld [vmem:[%s866 + $0x44] sm:$0xf]
    %v1807 = vunpack.c.l.b16 %v1785
    %v1808 = vunpack.c.h.b16 %v1785
    %v1809 = vunpack.c.l.b16 %v1786
    %v1810 = vunpack.c.h.b16 %v1786
    %v1811 = vpack.c.b16 %v1809, %v1807
    %v1812 = vpack.c.b16 %v1810, %v1808
    %v1814 = vshrl.u32 %v1811, 16
    %v1816 = vshll.u32 %v1811, 16
    %v1818 = vrot.slane %v1816, 1
    %v1819 = vor.u32 %v1814, %v1818
    %v1821 = vshrl.u32 %v1812, 16
    %v1823 = vshll.u32 %v1812, 16
    %v1825 = vrot.slane %v1823, 1
    %v1826 = vor.u32 %v1821, %v1825
    %v1846 = vunpack.c.l.b16 %v1787
    %v1847 = vunpack.c.l.b16 %v1788
    %v1848 = vunpack.c.l.b16 %v1789
    %v1849 = vunpack.c.l.b16 %v1790
    %v1850 = vunpack.c.l.b16 %v1791
    %v1851 = vunpack.c.l.b16 %v1792
    %v1852 = vunpack.c.l.b16 %v1793
    %v1853 = vunpack.c.l.b16 %v1794
    %v1854 = vunpack.c.l.b16 %v1795
    %v1855 = vunpack.c.l.b16 %v1796
    %v1856 = vunpack.c.l.b16 %v1797
    %v1857 = vunpack.c.l.b16 %v1798
    %v1858 = vunpack.c.l.b16 %v1799
    %v1859 = vunpack.c.l.b16 %v1800
    %v1860 = vunpack.c.l.b16 %v1801
    %v1861 = vunpack.c.l.b16 %v1802
    %v1862 = vunpack.c.l.b16 %v1803
    %v1863 = vunpack.c.l.b16 %v1804
    %v1864 = vpack.c.b16 %v1847, %v1846
    %v1865 = vpack.c.b16 %v1849, %v1848
    %v1866 = vpack.c.b16 %v1851, %v1850
    %v1867 = vpack.c.b16 %v1853, %v1852
    %v1868 = vpack.c.b16 %v1855, %v1854
    %v1869 = vpack.c.b16 %v1857, %v1856
    %v1870 = vpack.c.b16 %v1859, %v1858
    %v1871 = vpack.c.b16 %v1861, %v1860
    %v1872 = vpack.c.b16 %v1863, %v1862
    %v1883 = vsel %vm717, %v1826, 0
    %1885 = vmatprep.subr.bf16.mxu0 0
    %1886 = vmatpush1.bf16.msra.mxu0 %v1871
    %1887 = vmatprep.subr.bf16.mxu0 0
    %1888 = vmatpush1.bf16.msra.mxu0 %v1870
    %1889 = vmatprep.subr.bf16.mxu0 0
    %1890 = vmatpush1.bf16.msra.mxu0 %v1869
    %1891 = vmatprep.subr.bf16.mxu0 0
    %1892 = vmatpush1.bf16.msra.mxu0 %v1868
    %1893 = vmatprep.subr.bf16.mxu0 0
    %1894 = vmatpush1.bf16.msra.mxu0 %v1867
    %1895 = vmatprep.subr.bf16.mxu0 0
    %1896 = vmatpush1.bf16.msra.mxu0 %v1866
    %1897 = vmatprep.subr.bf16.mxu0 0
    %1898 = vmatpush1.bf16.msra.mxu0 %v1865
    %1899 = vmatprep.subr.bf16.mxu0 0
    %1900 = vmatpush1.bf16.msra.mxu0 %v1864
    %1901 = vmatprep.subr.bf16.mxu0 0
    %1902 = vmatpush2.bf16.msra.mxu0 0
    %1903 = vmatprep.subr.bf16.mxu0 0
    %1904 = vmatpush2.bf16.msra.mxu0 0
    %1905 = vmatprep.subr.bf16.mxu0 0
    %1906 = vmatpush2.bf16.msra.mxu0 0
    %1907 = vmatprep.subr.bf16.mxu0 0
    %1908 = vmatpush2.bf16.msra.mxu0 0
    %1909 = vmatprep.subr.bf16.mxu0 0
    %1910 = vmatpush2.bf16.msra.mxu0 0
    %1911 = vmatprep.subr.bf16.mxu0 0
    %1912 = vmatpush2.bf16.msra.mxu0 0
    %1913 = vmatprep.subr.bf16.mxu0 0
    %1914 = vmatpush2.bf16.msra.mxu0 0
    %1915 = vmatprep.subr.bf16.mxu0 0
    %1916 = vmatpush2.bf16.msra.mxu0 %v1872
    %1917 = vmatprep.mubr.bf16.mxu0 %v1883
    %1918 = vmatmul.mubr.bf16.gmra.mxu0 %v1819
    %v1919 = vpop.f32.mrf.mxu0
    %v1920 = vadd.f32 0.0, %v1919
    %v1921 = vpop.f32.mrf.mxu0
    %v1922 = vpop.f32.mrf.mxu0
    %v1923 = vpop.f32.mrf.mxu0
    %1924 = vdwg.mxu0
    %v1925 = vadd.f32 %v1780, %v1920
    %v1926 = vld [vmem:[%s5] sm:$0x1]
    %v1928 = vlaneseq
    %v1929 = vshrl.u32 %v1928, 7
    %v1930 = vsub.s32 0, %v1929
    %v1931 = vrot.slane %v1926, %v1930
    %v1933 = vadd.f32 %v1925, %v1931
    %vm1934 = vcmp.ge.f32.partialorder %v1933, 0.0
    %v1935 = vmul.f32 %v1933, 0.2
    %v1936 = vsel %vm1934, %v1933, %v1935
    %v1937 = vpack.c.bf16 %v1936, %v1936
    %s1938 = scalar_lea.vmem %s0, 16
    %v1939 = vld [vmem:[%s1938] sm:$0xf]
    %v1940 = vld [vmem:[%s2] sm:$0xf]
    %v1941 = vld [vmem:[%s2 + $0x4] sm:$0xf]
    %v1942 = vld [vmem:[%s2 + $0x8] sm:$0xf]
    %v1943 = vld [vmem:[%s2 + $0xc] sm:$0xf]
    %v1944 = vld [vmem:[%s2 + $0x10] sm:$0xf]
    %v1945 = vld [vmem:[%s2 + $0x14] sm:$0xf]
    %v1946 = vld [vmem:[%s2 + $0x18] sm:$0xf]
    %v1947 = vld [vmem:[%s2 + $0x1c] sm:$0xf]
    %v1948 = vld [vmem:[%s2 + $0x20] sm:$0xf]
    %v1949 = vld [vmem:[%s2 + $0x24] sm:$0xf]
    %v1950 = vld [vmem:[%s2 + $0x28] sm:$0xf]
    %v1951 = vld [vmem:[%s2 + $0x2c] sm:$0xf]
    %v1952 = vld [vmem:[%s2 + $0x30] sm:$0xf]
    %v1953 = vld [vmem:[%s2 + $0x34] sm:$0xf]
    %v1954 = vld [vmem:[%s2 + $0x38] sm:$0xf]
    %v1955 = vld [vmem:[%s2 + $0x3c] sm:$0xf]
    %s1956 = scalar_lea.vmem %s1, 16
    %v1957 = vld [vmem:[%s1956] sm:$0xf]
    %v1958 = vld [vmem:[%s99] sm:$0xf]
    %v1959 = vld [vmem:[%s99 + $0x4] sm:$0xf]
    %v1960 = vld [vmem:[%s99 + $0x8] sm:$0xf]
    %v1961 = vld [vmem:[%s99 + $0xc] sm:$0xf]
    %v1962 = vld [vmem:[%s99 + $0x10] sm:$0xf]
    %v1963 = vld [vmem:[%s99 + $0x14] sm:$0xf]
    %v1964 = vld [vmem:[%s99 + $0x18] sm:$0xf]
    %v1965 = vld [vmem:[%s99 + $0x1c] sm:$0xf]
    %v1966 = vld [vmem:[%s99 + $0x20] sm:$0xf]
    %v1967 = vld [vmem:[%s99 + $0x24] sm:$0xf]
    %v1968 = vld [vmem:[%s99 + $0x28] sm:$0xf]
    %v1969 = vld [vmem:[%s99 + $0x2c] sm:$0xf]
    %v1970 = vld [vmem:[%s99 + $0x30] sm:$0xf]
    %v1971 = vld [vmem:[%s99 + $0x34] sm:$0xf]
    %v1972 = vld [vmem:[%s99 + $0x38] sm:$0xf]
    %v1973 = vld [vmem:[%s99 + $0x3c] sm:$0xf]
    %v1990 = vunpack.c.l.b16 %v1958
    %v1991 = vunpack.c.l.b16 %v1959
    %v1992 = vunpack.c.l.b16 %v1960
    %v1993 = vunpack.c.l.b16 %v1961
    %v1994 = vunpack.c.l.b16 %v1962
    %v1995 = vunpack.c.l.b16 %v1963
    %v1996 = vunpack.c.l.b16 %v1964
    %v1997 = vunpack.c.l.b16 %v1965
    %v1998 = vunpack.c.l.b16 %v1966
    %v1999 = vunpack.c.l.b16 %v1967
    %v2000 = vunpack.c.l.b16 %v1968
    %v2001 = vunpack.c.l.b16 %v1969
    %v2002 = vunpack.c.l.b16 %v1970
    %v2003 = vunpack.c.l.b16 %v1971
    %v2004 = vunpack.c.l.b16 %v1972
    %v2005 = vunpack.c.l.b16 %v1973
    %v2006 = vpack.c.b16 %v1991, %v1990
    %v2007 = vpack.c.b16 %v1993, %v1992
    %v2008 = vpack.c.b16 %v1995, %v1994
    %v2009 = vpack.c.b16 %v1997, %v1996
    %v2010 = vpack.c.b16 %v1999, %v1998
    %v2011 = vpack.c.b16 %v2001, %v2000
    %v2012 = vpack.c.b16 %v2003, %v2002
    %v2013 = vpack.c.b16 %v2005, %v2004
    %2022 = vmatprep.subr.bf16.mxu0 0
    %2023 = vmatpush1.bf16.msra.mxu0 %v2013
    %2024 = vmatprep.subr.bf16.mxu0 0
    %2025 = vmatpush1.bf16.msra.mxu0 %v2012
    %2026 = vmatprep.subr.bf16.mxu0 0
    %2027 = vmatpush1.bf16.msra.mxu0 %v2011
    %2028 = vmatprep.subr.bf16.mxu0 0
    %2029 = vmatpush1.bf16.msra.mxu0 %v2010
    %2030 = vmatprep.subr.bf16.mxu0 0
    %2031 = vmatpush1.bf16.msra.mxu0 %v2009
    %2032 = vmatprep.subr.bf16.mxu0 0
    %2033 = vmatpush1.bf16.msra.mxu0 %v2008
    %2034 = vmatprep.subr.bf16.mxu0 0
    %2035 = vmatpush1.bf16.msra.mxu0 %v2007
    %2036 = vmatprep.subr.bf16.mxu0 0
    %2037 = vmatpush1.bf16.msra.mxu0 %v2006
    %2038 = vmatprep.subr.bf16.mxu0 0
    %2039 = vmatpush2.bf16.msra.mxu0 0
    %2040 = vmatprep.subr.bf16.mxu0 0
    %2041 = vmatpush2.bf16.msra.mxu0 0
    %2042 = vmatprep.subr.bf16.mxu0 0
    %2043 = vmatpush2.bf16.msra.mxu0 0
    %2044 = vmatprep.subr.bf16.mxu0 0
    %2045 = vmatpush2.bf16.msra.mxu0 0
    %2046 = vmatprep.subr.bf16.mxu0 0
    %2047 = vmatpush2.bf16.msra.mxu0 0
    %2048 = vmatprep.subr.bf16.mxu0 0
    %2049 = vmatpush2.bf16.msra.mxu0 0
    %2050 = vmatprep.subr.bf16.mxu0 0
    %2051 = vmatpush2.bf16.msra.mxu0 0
    %2052 = vmatprep.subr.bf16.mxu0 0
    %2053 = vmatpush2.bf16.msra.mxu0 0
    %2054 = vmatprep.mubr.bf16.mxu0 0
    %2055 = vmatmul.mubr.bf16.gmra.mxu0 %v1957
    %v2056 = vpop.f32.mrf.mxu0
    %v2057 = vadd.f32 0.0, %v2056
    %v2058 = vpop.f32.mrf.mxu0
    %v2059 = vpop.f32.mrf.mxu0
    %v2060 = vpop.f32.mrf.mxu0
    %2061 = vdwg.mxu0
    %v2078 = vunpack.c.l.b16 %v1940
    %v2079 = vunpack.c.l.b16 %v1941
    %v2080 = vunpack.c.l.b16 %v1942
    %v2081 = vunpack.c.l.b16 %v1943
    %v2082 = vunpack.c.l.b16 %v1944
    %v2083 = vunpack.c.l.b16 %v1945
    %v2084 = vunpack.c.l.b16 %v1946
    %v2085 = vunpack.c.l.b16 %v1947
    %v2086 = vunpack.c.l.b16 %v1948
    %v2087 = vunpack.c.l.b16 %v1949
    %v2088 = vunpack.c.l.b16 %v1950
    %v2089 = vunpack.c.l.b16 %v1951
    %v2090 = vunpack.c.l.b16 %v1952
    %v2091 = vunpack.c.l.b16 %v1953
    %v2092 = vunpack.c.l.b16 %v1954
    %v2093 = vunpack.c.l.b16 %v1955
    %v2094 = vpack.c.b16 %v2079, %v2078
    %v2095 = vpack.c.b16 %v2081, %v2080
    %v2096 = vpack.c.b16 %v2083, %v2082
    %v2097 = vpack.c.b16 %v2085, %v2084
    %v2098 = vpack.c.b16 %v2087, %v2086
    %v2099 = vpack.c.b16 %v2089, %v2088
    %v2100 = vpack.c.b16 %v2091, %v2090
    %v2101 = vpack.c.b16 %v2093, %v2092
    %2110 = vmatprep.subr.bf16.mxu0 0
    %2111 = vmatpush1.bf16.msra.mxu0 %v2101
    %2112 = vmatprep.subr.bf16.mxu0 0
    %2113 = vmatpush1.bf16.msra.mxu0 %v2100
    %2114 = vmatprep.subr.bf16.mxu0 0
    %2115 = vmatpush1.bf16.msra.mxu0 %v2099
    %2116 = vmatprep.subr.bf16.mxu0 0
    %2117 = vmatpush1.bf16.msra.mxu0 %v2098
    %2118 = vmatprep.subr.bf16.mxu0 0
    %2119 = vmatpush1.bf16.msra.mxu0 %v2097
    %2120 = vmatprep.subr.bf16.mxu0 0
    %2121 = vmatpush1.bf16.msra.mxu0 %v2096
    %2122 = vmatprep.subr.bf16.mxu0 0
    %2123 = vmatpush1.bf16.msra.mxu0 %v2095
    %2124 = vmatprep.subr.bf16.mxu0 0
    %2125 = vmatpush1.bf16.msra.mxu0 %v2094
    %2126 = vmatprep.subr.bf16.mxu0 0
    %2127 = vmatpush2.bf16.msra.mxu0 0
    %2128 = vmatprep.subr.bf16.mxu0 0
    %2129 = vmatpush2.bf16.msra.mxu0 0
    %2130 = vmatprep.subr.bf16.mxu0 0
    %2131 = vmatpush2.bf16.msra.mxu0 0
    %2132 = vmatprep.subr.bf16.mxu0 0
    %2133 = vmatpush2.bf16.msra.mxu0 0
    %2134 = vmatprep.subr.bf16.mxu0 0
    %2135 = vmatpush2.bf16.msra.mxu0 0
    %2136 = vmatprep.subr.bf16.mxu0 0
    %2137 = vmatpush2.bf16.msra.mxu0 0
    %2138 = vmatprep.subr.bf16.mxu0 0
    %2139 = vmatpush2.bf16.msra.mxu0 0
    %2140 = vmatprep.subr.bf16.mxu0 0
    %2141 = vmatpush2.bf16.msra.mxu0 0
    %2142 = vmatprep.mubr.bf16.mxu0 0
    %2143 = vmatmul.mubr.bf16.gmra.mxu0 %v1939
    %v2144 = vpop.f32.mrf.mxu0
    %v2145 = vadd.f32 %v2057, %v2144
    %v2146 = vpop.f32.mrf.mxu0
    %v2147 = vpop.f32.mrf.mxu0
    %v2148 = vpop.f32.mrf.mxu0
    %2149 = vdwg.mxu0
    %v2150 = vld [vmem:[%s1938] sm:$0xf]
    %v2151 = vld [vmem:[%s1938 + $0x4] sm:$0x1]
    %v2152 = vld [vmem:[%s294] sm:$0xf]
    %v2153 = vld [vmem:[%s294 + $0x4] sm:$0xf]
    %v2154 = vld [vmem:[%s294 + $0x8] sm:$0xf]
    %v2155 = vld [vmem:[%s294 + $0xc] sm:$0xf]
    %v2156 = vld [vmem:[%s294 + $0x10] sm:$0xf]
    %v2157 = vld [vmem:[%s294 + $0x14] sm:$0xf]
    %v2158 = vld [vmem:[%s294 + $0x18] sm:$0xf]
    %v2159 = vld [vmem:[%s294 + $0x1c] sm:$0xf]
    %v2160 = vld [vmem:[%s294 + $0x20] sm:$0xf]
    %v2161 = vld [vmem:[%s294 + $0x24] sm:$0xf]
    %v2162 = vld [vmem:[%s294 + $0x28] sm:$0xf]
    %v2163 = vld [vmem:[%s294 + $0x2c] sm:$0xf]
    %v2164 = vld [vmem:[%s294 + $0x30] sm:$0xf]
    %v2165 = vld [vmem:[%s294 + $0x34] sm:$0xf]
    %v2166 = vld [vmem:[%s294 + $0x38] sm:$0xf]
    %v2167 = vld [vmem:[%s294 + $0x3c] sm:$0xf]
    %v2170 = vunpack.c.l.b16 %v2150
    %v2171 = vunpack.c.l.b16 %v2151
    %v2172 = vpack.c.b16 %v2171, %v2170
    %v2174 = vshrl.u32 %v2172, 16
    %v2176 = vshll.u32 %v2172, 16
    %v2178 = vrot.slane %v2176, 1
    %v2179 = vor.u32 %v2174, %v2178
    %v2197 = vunpack.c.l.b16 %v2152
    %v2198 = vunpack.c.l.b16 %v2153
    %v2199 = vunpack.c.l.b16 %v2154
    %v2200 = vunpack.c.l.b16 %v2155
    %v2201 = vunpack.c.l.b16 %v2156
    %v2202 = vunpack.c.l.b16 %v2157
    %v2203 = vunpack.c.l.b16 %v2158
    %v2204 = vunpack.c.l.b16 %v2159
    %v2205 = vunpack.c.l.b16 %v2160
    %v2206 = vunpack.c.l.b16 %v2161
    %v2207 = vunpack.c.l.b16 %v2162
    %v2208 = vunpack.c.l.b16 %v2163
    %v2209 = vunpack.c.l.b16 %v2164
    %v2210 = vunpack.c.l.b16 %v2165
    %v2211 = vunpack.c.l.b16 %v2166
    %v2212 = vunpack.c.l.b16 %v2167
    %v2213 = vpack.c.b16 %v2198, %v2197
    %v2214 = vpack.c.b16 %v2200, %v2199
    %v2215 = vpack.c.b16 %v2202, %v2201
    %v2216 = vpack.c.b16 %v2204, %v2203
    %v2217 = vpack.c.b16 %v2206, %v2205
    %v2218 = vpack.c.b16 %v2208, %v2207
    %v2219 = vpack.c.b16 %v2210, %v2209
    %v2220 = vpack.c.b16 %v2212, %v2211
    %2229 = vmatprep.subr.bf16.mxu0 0
    %2230 = vmatpush1.bf16.msra.mxu0 %v2220
    %2231 = vmatprep.subr.bf16.mxu0 0
    %2232 = vmatpush1.bf16.msra.mxu0 %v2219
    %2233 = vmatprep.subr.bf16.mxu0 0
    %2234 = vmatpush1.bf16.msra.mxu0 %v2218
    %2235 = vmatprep.subr.bf16.mxu0 0
    %2236 = vmatpush1.bf16.msra.mxu0 %v2217
    %2237 = vmatprep.subr.bf16.mxu0 0
    %2238 = vmatpush1.bf16.msra.mxu0 %v2216
    %2239 = vmatprep.subr.bf16.mxu0 0
    %2240 = vmatpush1.bf16.msra.mxu0 %v2215
    %2241 = vmatprep.subr.bf16.mxu0 0
    %2242 = vmatpush1.bf16.msra.mxu0 %v2214
    %2243 = vmatprep.subr.bf16.mxu0 0
    %2244 = vmatpush1.bf16.msra.mxu0 %v2213
    %2245 = vmatprep.subr.bf16.mxu0 0
    %2246 = vmatpush2.bf16.msra.mxu0 0
    %2247 = vmatprep.subr.bf16.mxu0 0
    %2248 = vmatpush2.bf16.msra.mxu0 0
    %2249 = vmatprep.subr.bf16.mxu0 0
    %2250 = vmatpush2.bf16.msra.mxu0 0
    %2251 = vmatprep.subr.bf16.mxu0 0
    %2252 = vmatpush2.bf16.msra.mxu0 0
    %2253 = vmatprep.subr.bf16.mxu0 0
    %2254 = vmatpush2.bf16.msra.mxu0 0
    %2255 = vmatprep.subr.bf16.mxu0 0
    %2256 = vmatpush2.bf16.msra.mxu0 0
    %2257 = vmatprep.subr.bf16.mxu0 0
    %2258 = vmatpush2.bf16.msra.mxu0 0
    %2259 = vmatprep.subr.bf16.mxu0 0
    %2260 = vmatpush2.bf16.msra.mxu0 0
    %2261 = vmatprep.mubr.bf16.mxu0 0
    %2262 = vmatmul.mubr.bf16.gmra.mxu0 %v2179
    %v2263 = vpop.f32.mrf.mxu0
    %v2264 = vadd.f32 0.0, %v2263
    %v2265 = vpop.f32.mrf.mxu0
    %v2266 = vpop.f32.mrf.mxu0
    %v2267 = vpop.f32.mrf.mxu0
    %2268 = vdwg.mxu0
    %v2269 = vadd.f32 %v2145, %v2264
    %2270 = vmatprep.subr.bf16.mxu0 0
    %2271 = vmatpush1.bf16.msra.mxu0 %v2013
    %2272 = vmatprep.subr.bf16.mxu0 0
    %2273 = vmatpush1.bf16.msra.mxu0 %v2012
    %2274 = vmatprep.subr.bf16.mxu0 0
    %2275 = vmatpush1.bf16.msra.mxu0 %v2011
    %2276 = vmatprep.subr.bf16.mxu0 0
    %2277 = vmatpush1.bf16.msra.mxu0 %v2010
    %2278 = vmatprep.subr.bf16.mxu0 0
    %2279 = vmatpush1.bf16.msra.mxu0 %v2009
    %2280 = vmatprep.subr.bf16.mxu0 0
    %2281 = vmatpush1.bf16.msra.mxu0 %v2008
    %2282 = vmatprep.subr.bf16.mxu0 0
    %2283 = vmatpush1.bf16.msra.mxu0 %v2007
    %2284 = vmatprep.subr.bf16.mxu0 0
    %2285 = vmatpush1.bf16.msra.mxu0 %v2006
    %2286 = vmatprep.subr.bf16.mxu0 0
    %2287 = vmatpush2.bf16.msra.mxu0 0
    %2288 = vmatprep.subr.bf16.mxu0 0
    %2289 = vmatpush2.bf16.msra.mxu0 0
    %2290 = vmatprep.subr.bf16.mxu0 0
    %2291 = vmatpush2.bf16.msra.mxu0 0
    %2292 = vmatprep.subr.bf16.mxu0 0
    %2293 = vmatpush2.bf16.msra.mxu0 0
    %2294 = vmatprep.subr.bf16.mxu0 0
    %2295 = vmatpush2.bf16.msra.mxu0 0
    %2296 = vmatprep.subr.bf16.mxu0 0
    %2297 = vmatpush2.bf16.msra.mxu0 0
    %2298 = vmatprep.subr.bf16.mxu0 0
    %2299 = vmatpush2.bf16.msra.mxu0 0
    %2300 = vmatprep.subr.bf16.mxu0 0
    %2301 = vmatpush2.bf16.msra.mxu0 0
    %2302 = vmatprep.mubr.bf16.mxu0 0
    %2303 = vmatmul.mubr.bf16.gmra.mxu0 %v2179
    %v2304 = vpop.f32.mrf.mxu0
    %v2305 = vadd.f32 0.0, %v2304
    %v2306 = vpop.f32.mrf.mxu0
    %v2307 = vpop.f32.mrf.mxu0
    %v2308 = vpop.f32.mrf.mxu0
    %2309 = vdwg.mxu0
    %2310 = vmatprep.subr.bf16.mxu0 0
    %2311 = vmatpush1.bf16.msra.mxu0 %v2101
    %2312 = vmatprep.subr.bf16.mxu0 0
    %2313 = vmatpush1.bf16.msra.mxu0 %v2100
    %2314 = vmatprep.subr.bf16.mxu0 0
    %2315 = vmatpush1.bf16.msra.mxu0 %v2099
    %2316 = vmatprep.subr.bf16.mxu0 0
    %2317 = vmatpush1.bf16.msra.mxu0 %v2098
    %2318 = vmatprep.subr.bf16.mxu0 0
    %2319 = vmatpush1.bf16.msra.mxu0 %v2097
    %2320 = vmatprep.subr.bf16.mxu0 0
    %2321 = vmatpush1.bf16.msra.mxu0 %v2096
    %2322 = vmatprep.subr.bf16.mxu0 0
    %2323 = vmatpush1.bf16.msra.mxu0 %v2095
    %2324 = vmatprep.subr.bf16.mxu0 0
    %2325 = vmatpush1.bf16.msra.mxu0 %v2094
    %2326 = vmatprep.subr.bf16.mxu0 0
    %2327 = vmatpush2.bf16.msra.mxu0 0
    %2328 = vmatprep.subr.bf16.mxu0 0
    %2329 = vmatpush2.bf16.msra.mxu0 0
    %2330 = vmatprep.subr.bf16.mxu0 0
    %2331 = vmatpush2.bf16.msra.mxu0 0
    %2332 = vmatprep.subr.bf16.mxu0 0
    %2333 = vmatpush2.bf16.msra.mxu0 0
    %2334 = vmatprep.subr.bf16.mxu0 0
    %2335 = vmatpush2.bf16.msra.mxu0 0
    %2336 = vmatprep.subr.bf16.mxu0 0
    %2337 = vmatpush2.bf16.msra.mxu0 0
    %2338 = vmatprep.subr.bf16.mxu0 0
    %2339 = vmatpush2.bf16.msra.mxu0 0
    %2340 = vmatprep.subr.bf16.mxu0 0
    %2341 = vmatpush2.bf16.msra.mxu0 0
    %2342 = vmatprep.mubr.bf16.mxu0 0
    %2343 = vmatmul.mubr.bf16.gmra.mxu0 %v1957
    %v2344 = vpop.f32.mrf.mxu0
    %v2345 = vadd.f32 %v2305, %v2344
    %v2346 = vpop.f32.mrf.mxu0
    %v2347 = vpop.f32.mrf.mxu0
    %v2348 = vpop.f32.mrf.mxu0
    %2349 = vdwg.mxu0
    %v2350 = vld [vmem:[%s1956] sm:$0xf]
    %v2351 = vld [vmem:[%s1956 + $0x4] sm:$0x1]
    %v2354 = vunpack.c.l.b16 %v2350
    %v2355 = vunpack.c.l.b16 %v2351
    %v2356 = vpack.c.b16 %v2355, %v2354
    %v2358 = vshrl.u32 %v2356, 16
    %v2360 = vshll.u32 %v2356, 16
    %v2362 = vrot.slane %v2360, 1
    %v2363 = vor.u32 %v2358, %v2362
    %2365 = vmatprep.subr.bf16.mxu0 0
    %2366 = vmatpush1.bf16.msra.mxu0 %v2220
    %2367 = vmatprep.subr.bf16.mxu0 0
    %2368 = vmatpush1.bf16.msra.mxu0 %v2219
    %2369 = vmatprep.subr.bf16.mxu0 0
    %2370 = vmatpush1.bf16.msra.mxu0 %v2218
    %2371 = vmatprep.subr.bf16.mxu0 0
    %2372 = vmatpush1.bf16.msra.mxu0 %v2217
    %2373 = vmatprep.subr.bf16.mxu0 0
    %2374 = vmatpush1.bf16.msra.mxu0 %v2216
    %2375 = vmatprep.subr.bf16.mxu0 0
    %2376 = vmatpush1.bf16.msra.mxu0 %v2215
    %2377 = vmatprep.subr.bf16.mxu0 0
    %2378 = vmatpush1.bf16.msra.mxu0 %v2214
    %2379 = vmatprep.subr.bf16.mxu0 0
    %2380 = vmatpush1.bf16.msra.mxu0 %v2213
    %2381 = vmatprep.subr.bf16.mxu0 0
    %2382 = vmatpush2.bf16.msra.mxu0 0
    %2383 = vmatprep.subr.bf16.mxu0 0
    %2384 = vmatpush2.bf16.msra.mxu0 0
    %2385 = vmatprep.subr.bf16.mxu0 0
    %2386 = vmatpush2.bf16.msra.mxu0 0
    %2387 = vmatprep.subr.bf16.mxu0 0
    %2388 = vmatpush2.bf16.msra.mxu0 0
    %2389 = vmatprep.subr.bf16.mxu0 0
    %2390 = vmatpush2.bf16.msra.mxu0 0
    %2391 = vmatprep.subr.bf16.mxu0 0
    %2392 = vmatpush2.bf16.msra.mxu0 0
    %2393 = vmatprep.subr.bf16.mxu0 0
    %2394 = vmatpush2.bf16.msra.mxu0 0
    %2395 = vmatprep.subr.bf16.mxu0 0
    %2396 = vmatpush2.bf16.msra.mxu0 0
    %2397 = vmatprep.mubr.bf16.mxu0 0
    %2398 = vmatmul.mubr.bf16.gmra.mxu0 %v2363
    %v2399 = vpop.f32.mrf.mxu0
    %v2400 = vadd.f32 0.0, %v2399
    %v2401 = vpop.f32.mrf.mxu0
    %v2402 = vpop.f32.mrf.mxu0
    %v2403 = vpop.f32.mrf.mxu0
    %2404 = vdwg.mxu0
    %v2405 = vadd.f32 %v2345, %v2400
    %v2406 = vld [vmem:[%s3] sm:$0x1]
    %v2408 = vlaneseq
    %v2409 = vshrl.u32 %v2408, 7
    %v2410 = vsub.s32 0, %v2409
    %v2411 = vrot.slane %v2406, %v2410
    %v2413 = vadd.f32 %v2269, %v2411
    %vm2414 = vcmp.ge.f32.partialorder %v2413, 0.0
    %v2415 = vmul.f32 %v2413, 0.2
    %v2416 = vsel %vm2414, %v2413, %v2415
    %v2417 = vadd.f32 %v2405, %v2411
    %vm2418 = vcmp.ge.f32.partialorder %v2417, 0.0
    %v2419 = vmul.f32 %v2417, 0.2
    %v2420 = vsel %vm2418, %v2417, %v2419
    %v2421 = vpack.c.bf16 %v2420, %v2420
    %v2423 = vunpack.c.l.b16 %v2421
    %v2424 = vpack.c.b16 %v2423, %v2423
    %v2426 = vshrl.u32 %v2424, 16
    %v2428 = vrot.slane %v2426, 7
    %v2429 = vshll.u32 %v2424, 16
    %v2431 = vor.u32 %v2428, %v2429
    %v2432 = vrot.slane %v2428, 4
    %2433 = vrot.lane.b32.xlu0 %v2431, 8
    %v2434 = vpop.permute.xlu0 %2433
    %2435 = vrot.lane.b32.xlu0 %v2432, 8
    %v2436 = vpop.permute.xlu0 %2435
    %v2437 = vrot.slane %v2434, 4
    %v2438 = vrot.slane %v2436, 4
    %v2439 = vsel %vm582, %v2437, %v2434
    %v2440 = vsel %vm582, %v2438, %v2436
    %s2443 = scalar_lea.vmem [#allocation2], 32
    %v2444 = vld [vmem:[%s2443] sm:$0xff]
    %v2445 = vsel %vm593, %v2439, %v2444
    %2446 = vst [vmem:[%s2443] sm:$0xff] %v2445
    %v2447 = vld [vmem:[%s2443 + $0x8] sm:$0x11]
    %v2448 = vsel %vm601, %v2440, %v2447
    %2449 = vst [vmem:[%s2443 + $0x8] sm:$0x11] %v2448
    %v2450 = vpack.c.bf16 %v2416, %v2416
    %v2452 = vunpack.c.l.b16 %v2450
    %v2453 = vpack.c.b16 %v2452, %v2452
    %2454 = vrot.lane.b32.xlu0 %v2453, 8
    %v2455 = vpop.permute.xlu0 %2454
    %v2456 = vrot.slane %v2455, 4
    %v2457 = vsel %vm582, %v2456, %v2455
    %s2459 = scalar_lea.vmem [#allocation3], 32
    %2460 = vst.msk [vmem:[%s2459] sm:$0xff] %vm616, %v2457
    %v2461 = vld [vmem:[%s2443] sm:$0xff]
    %v2462 = vld [vmem:[%s4] sm:$0xf]
    %v2463 = vld [vmem:[%s4 + $0x4] sm:$0xf]
    %v2464 = vld [vmem:[%s4 + $0x8] sm:$0xf]
    %v2465 = vld [vmem:[%s4 + $0xc] sm:$0xf]
    %v2466 = vld [vmem:[%s4 + $0x10] sm:$0xf]
    %v2467 = vld [vmem:[%s4 + $0x14] sm:$0xf]
    %v2468 = vld [vmem:[%s4 + $0x18] sm:$0xf]
    %v2469 = vld [vmem:[%s4 + $0x1c] sm:$0xf]
    %v2470 = vld [vmem:[%s4 + $0x20] sm:$0xf]
    %v2471 = vld [vmem:[%s4 + $0x24] sm:$0xf]
    %v2472 = vld [vmem:[%s4 + $0x28] sm:$0xf]
    %v2473 = vld [vmem:[%s4 + $0x2c] sm:$0xf]
    %v2474 = vld [vmem:[%s4 + $0x30] sm:$0xf]
    %v2475 = vld [vmem:[%s4 + $0x34] sm:$0xf]
    %v2476 = vld [vmem:[%s4 + $0x38] sm:$0xf]
    %v2477 = vld [vmem:[%s4 + $0x3c] sm:$0xf]
    %v2478 = vld [vmem:[%s4 + $0x40] sm:$0xf]
    %v2479 = vld [vmem:[%s4 + $0x44] sm:$0xf]
    %v2480 = vld [vmem:[%s2459] sm:$0xff]
    %v2481 = vld [vmem:[%s638] sm:$0xf]
    %v2482 = vld [vmem:[%s638 + $0x4] sm:$0xf]
    %v2483 = vld [vmem:[%s638 + $0x8] sm:$0xf]
    %v2484 = vld [vmem:[%s638 + $0xc] sm:$0xf]
    %v2485 = vld [vmem:[%s638 + $0x10] sm:$0xf]
    %v2486 = vld [vmem:[%s638 + $0x14] sm:$0xf]
    %v2487 = vld [vmem:[%s638 + $0x18] sm:$0xf]
    %v2488 = vld [vmem:[%s638 + $0x1c] sm:$0xf]
    %v2489 = vld [vmem:[%s638 + $0x20] sm:$0xf]
    %v2490 = vld [vmem:[%s638 + $0x24] sm:$0xf]
    %v2491 = vld [vmem:[%s638 + $0x28] sm:$0xf]
    %v2492 = vld [vmem:[%s638 + $0x2c] sm:$0xf]
    %v2493 = vld [vmem:[%s638 + $0x30] sm:$0xf]
    %v2494 = vld [vmem:[%s638 + $0x34] sm:$0xf]
    %v2495 = vld [vmem:[%s638 + $0x38] sm:$0xf]
    %v2496 = vld [vmem:[%s638 + $0x3c] sm:$0xf]
    %v2497 = vld [vmem:[%s638 + $0x40] sm:$0xf]
    %v2498 = vld [vmem:[%s638 + $0x44] sm:$0xf]
    %v2500 = vunpack.c.l.b16 %v2480
    %v2501 = vunpack.c.h.b16 %v2480
    %v2502 = vpack.c.b16 %v2500, %v2500
    %v2503 = vpack.c.b16 %v2501, %v2501
    %v2523 = vunpack.c.l.b16 %v2481
    %v2524 = vunpack.c.l.b16 %v2482
    %v2525 = vunpack.c.l.b16 %v2483
    %v2526 = vunpack.c.l.b16 %v2484
    %v2527 = vunpack.c.l.b16 %v2485
    %v2528 = vunpack.c.l.b16 %v2486
    %v2529 = vunpack.c.l.b16 %v2487
    %v2530 = vunpack.c.l.b16 %v2488
    %v2531 = vunpack.c.l.b16 %v2489
    %v2532 = vunpack.c.l.b16 %v2490
    %v2533 = vunpack.c.l.b16 %v2491
    %v2534 = vunpack.c.l.b16 %v2492
    %v2535 = vunpack.c.l.b16 %v2493
    %v2536 = vunpack.c.l.b16 %v2494
    %v2537 = vunpack.c.l.b16 %v2495
    %v2538 = vunpack.c.l.b16 %v2496
    %v2539 = vunpack.c.l.b16 %v2497
    %v2540 = vunpack.c.l.b16 %v2498
    %v2541 = vpack.c.b16 %v2524, %v2523
    %v2542 = vpack.c.b16 %v2526, %v2525
    %v2543 = vpack.c.b16 %v2528, %v2527
    %v2544 = vpack.c.b16 %v2530, %v2529
    %v2545 = vpack.c.b16 %v2532, %v2531
    %v2546 = vpack.c.b16 %v2534, %v2533
    %v2547 = vpack.c.b16 %v2536, %v2535
    %v2548 = vpack.c.b16 %v2538, %v2537
    %v2549 = vpack.c.b16 %v2540, %v2539
    %v2560 = vsel %vm717, %v2503, 0
    %2562 = vmatprep.subr.bf16.mxu0 0
    %2563 = vmatpush1.bf16.msra.mxu0 %v2548
    %2564 = vmatprep.subr.bf16.mxu0 0
    %2565 = vmatpush1.bf16.msra.mxu0 %v2547
    %2566 = vmatprep.subr.bf16.mxu0 0
    %2567 = vmatpush1.bf16.msra.mxu0 %v2546
    %2568 = vmatprep.subr.bf16.mxu0 0
    %2569 = vmatpush1.bf16.msra.mxu0 %v2545
    %2570 = vmatprep.subr.bf16.mxu0 0
    %2571 = vmatpush1.bf16.msra.mxu0 %v2544
    %2572 = vmatprep.subr.bf16.mxu0 0
    %2573 = vmatpush1.bf16.msra.mxu0 %v2543
    %2574 = vmatprep.subr.bf16.mxu0 0
    %2575 = vmatpush1.bf16.msra.mxu0 %v2542
    %2576 = vmatprep.subr.bf16.mxu0 0
    %2577 = vmatpush1.bf16.msra.mxu0 %v2541
    %2578 = vmatprep.subr.bf16.mxu0 0
    %2579 = vmatpush2.bf16.msra.mxu0 0
    %2580 = vmatprep.subr.bf16.mxu0 0
    %2581 = vmatpush2.bf16.msra.mxu0 0
    %2582 = vmatprep.subr.bf16.mxu0 0
    %2583 = vmatpush2.bf16.msra.mxu0 0
    %2584 = vmatprep.subr.bf16.mxu0 0
    %2585 = vmatpush2.bf16.msra.mxu0 0
    %2586 = vmatprep.subr.bf16.mxu0 0
    %2587 = vmatpush2.bf16.msra.mxu0 0
    %2588 = vmatprep.subr.bf16.mxu0 0
    %2589 = vmatpush2.bf16.msra.mxu0 0
    %2590 = vmatprep.subr.bf16.mxu0 0
    %2591 = vmatpush2.bf16.msra.mxu0 0
    %2592 = vmatprep.subr.bf16.mxu0 0
    %2593 = vmatpush2.bf16.msra.mxu0 %v2549
    %2594 = vmatprep.mubr.bf16.mxu0 %v2560
    %2595 = vmatmul.mubr.bf16.gmra.mxu0 %v2502
    %v2596 = vpop.f32.mrf.mxu0
    %v2597 = vadd.f32 0.0, %v2596
    %v2598 = vpop.f32.mrf.mxu0
    %v2599 = vpop.f32.mrf.mxu0
    %v2600 = vpop.f32.mrf.mxu0
    %2601 = vdwg.mxu0
    %v2603 = vunpack.c.l.b16 %v2461
    %v2604 = vunpack.c.h.b16 %v2461
    %v2605 = vpack.c.b16 %v2603, %v2603
    %v2606 = vpack.c.b16 %v2604, %v2604
    %v2626 = vunpack.c.l.b16 %v2462
    %v2627 = vunpack.c.l.b16 %v2463
    %v2628 = vunpack.c.l.b16 %v2464
    %v2629 = vunpack.c.l.b16 %v2465
    %v2630 = vunpack.c.l.b16 %v2466
    %v2631 = vunpack.c.l.b16 %v2467
    %v2632 = vunpack.c.l.b16 %v2468
    %v2633 = vunpack.c.l.b16 %v2469
    %v2634 = vunpack.c.l.b16 %v2470
    %v2635 = vunpack.c.l.b16 %v2471
    %v2636 = vunpack.c.l.b16 %v2472
    %v2637 = vunpack.c.l.b16 %v2473
    %v2638 = vunpack.c.l.b16 %v2474
    %v2639 = vunpack.c.l.b16 %v2475
    %v2640 = vunpack.c.l.b16 %v2476
    %v2641 = vunpack.c.l.b16 %v2477
    %v2642 = vunpack.c.l.b16 %v2478
    %v2643 = vunpack.c.l.b16 %v2479
    %v2644 = vpack.c.b16 %v2627, %v2626
    %v2645 = vpack.c.b16 %v2629, %v2628
    %v2646 = vpack.c.b16 %v2631, %v2630
    %v2647 = vpack.c.b16 %v2633, %v2632
    %v2648 = vpack.c.b16 %v2635, %v2634
    %v2649 = vpack.c.b16 %v2637, %v2636
    %v2650 = vpack.c.b16 %v2639, %v2638
    %v2651 = vpack.c.b16 %v2641, %v2640
    %v2652 = vpack.c.b16 %v2643, %v2642
    %v2663 = vsel %vm717, %v2606, 0
    %2665 = vmatprep.subr.bf16.mxu0 0
    %2666 = vmatpush1.bf16.msra.mxu0 %v2651
    %2667 = vmatprep.subr.bf16.mxu0 0
    %2668 = vmatpush1.bf16.msra.mxu0 %v2650
    %2669 = vmatprep.subr.bf16.mxu0 0
    %2670 = vmatpush1.bf16.msra.mxu0 %v2649
    %2671 = vmatprep.subr.bf16.mxu0 0
    %2672 = vmatpush1.bf16.msra.mxu0 %v2648
    %2673 = vmatprep.subr.bf16.mxu0 0
    %2674 = vmatpush1.bf16.msra.mxu0 %v2647
    %2675 = vmatprep.subr.bf16.mxu0 0
    %2676 = vmatpush1.bf16.msra.mxu0 %v2646
    %2677 = vmatprep.subr.bf16.mxu0 0
    %2678 = vmatpush1.bf16.msra.mxu0 %v2645
    %2679 = vmatprep.subr.bf16.mxu0 0
    %2680 = vmatpush1.bf16.msra.mxu0 %v2644
    %2681 = vmatprep.subr.bf16.mxu0 0
    %2682 = vmatpush2.bf16.msra.mxu0 0
    %2683 = vmatprep.subr.bf16.mxu0 0
    %2684 = vmatpush2.bf16.msra.mxu0 0
    %2685 = vmatprep.subr.bf16.mxu0 0
    %2686 = vmatpush2.bf16.msra.mxu0 0
    %2687 = vmatprep.subr.bf16.mxu0 0
    %2688 = vmatpush2.bf16.msra.mxu0 0
    %2689 = vmatprep.subr.bf16.mxu0 0
    %2690 = vmatpush2.bf16.msra.mxu0 0
    %2691 = vmatprep.subr.bf16.mxu0 0
    %2692 = vmatpush2.bf16.msra.mxu0 0
    %2693 = vmatprep.subr.bf16.mxu0 0
    %2694 = vmatpush2.bf16.msra.mxu0 0
    %2695 = vmatprep.subr.bf16.mxu0 0
    %2696 = vmatpush2.bf16.msra.mxu0 %v2652
    %2697 = vmatprep.mubr.bf16.mxu0 %v2663
    %2698 = vmatmul.mubr.bf16.gmra.mxu0 %v2605
    %v2699 = vpop.f32.mrf.mxu0
    %v2700 = vadd.f32 %v2597, %v2699
    %v2701 = vpop.f32.mrf.mxu0
    %v2702 = vpop.f32.mrf.mxu0
    %v2703 = vpop.f32.mrf.mxu0
    %2704 = vdwg.mxu0
    %v2705 = vld [vmem:[%s2443] sm:$0xff]
    %v2706 = vld [vmem:[%s2443 + $0x8] sm:$0x11]
    %v2707 = vld [vmem:[%s866] sm:$0xf]
    %v2708 = vld [vmem:[%s866 + $0x4] sm:$0xf]
    %v2709 = vld [vmem:[%s866 + $0x8] sm:$0xf]
    %v2710 = vld [vmem:[%s866 + $0xc] sm:$0xf]
    %v2711 = vld [vmem:[%s866 + $0x10] sm:$0xf]
    %v2712 = vld [vmem:[%s866 + $0x14] sm:$0xf]
    %v2713 = vld [vmem:[%s866 + $0x18] sm:$0xf]
    %v2714 = vld [vmem:[%s866 + $0x1c] sm:$0xf]
    %v2715 = vld [vmem:[%s866 + $0x20] sm:$0xf]
    %v2716 = vld [vmem:[%s866 + $0x24] sm:$0xf]
    %v2717 = vld [vmem:[%s866 + $0x28] sm:$0xf]
    %v2718 = vld [vmem:[%s866 + $0x2c] sm:$0xf]
    %v2719 = vld [vmem:[%s866 + $0x30] sm:$0xf]
    %v2720 = vld [vmem:[%s866 + $0x34] sm:$0xf]
    %v2721 = vld [vmem:[%s866 + $0x38] sm:$0xf]
    %v2722 = vld [vmem:[%s866 + $0x3c] sm:$0xf]
    %v2723 = vld [vmem:[%s866 + $0x40] sm:$0xf]
    %v2724 = vld [vmem:[%s866 + $0x44] sm:$0xf]
    %v2727 = vunpack.c.l.b16 %v2705
    %v2728 = vunpack.c.h.b16 %v2705
    %v2729 = vunpack.c.l.b16 %v2706
    %v2730 = vunpack.c.h.b16 %v2706
    %v2731 = vpack.c.b16 %v2729, %v2727
    %v2732 = vpack.c.b16 %v2730, %v2728
    %v2734 = vshrl.u32 %v2731, 16
    %v2736 = vshll.u32 %v2731, 16
    %v2738 = vrot.slane %v2736, 1
    %v2739 = vor.u32 %v2734, %v2738
    %v2741 = vshrl.u32 %v2732, 16
    %v2743 = vshll.u32 %v2732, 16
    %v2745 = vrot.slane %v2743, 1
    %v2746 = vor.u32 %v2741, %v2745
    %v2766 = vunpack.c.l.b16 %v2707
    %v2767 = vunpack.c.l.b16 %v2708
    %v2768 = vunpack.c.l.b16 %v2709
    %v2769 = vunpack.c.l.b16 %v2710
    %v2770 = vunpack.c.l.b16 %v2711
    %v2771 = vunpack.c.l.b16 %v2712
    %v2772 = vunpack.c.l.b16 %v2713
    %v2773 = vunpack.c.l.b16 %v2714
    %v2774 = vunpack.c.l.b16 %v2715
    %v2775 = vunpack.c.l.b16 %v2716
    %v2776 = vunpack.c.l.b16 %v2717
    %v2777 = vunpack.c.l.b16 %v2718
    %v2778 = vunpack.c.l.b16 %v2719
    %v2779 = vunpack.c.l.b16 %v2720
    %v2780 = vunpack.c.l.b16 %v2721
    %v2781 = vunpack.c.l.b16 %v2722
    %v2782 = vunpack.c.l.b16 %v2723
    %v2783 = vunpack.c.l.b16 %v2724
    %v2784 = vpack.c.b16 %v2767, %v2766
    %v2785 = vpack.c.b16 %v2769, %v2768
    %v2786 = vpack.c.b16 %v2771, %v2770
    %v2787 = vpack.c.b16 %v2773, %v2772
    %v2788 = vpack.c.b16 %v2775, %v2774
    %v2789 = vpack.c.b16 %v2777, %v2776
    %v2790 = vpack.c.b16 %v2779, %v2778
    %v2791 = vpack.c.b16 %v2781, %v2780
    %v2792 = vpack.c.b16 %v2783, %v2782
    %v2803 = vsel %vm717, %v2746, 0
    %2805 = vmatprep.subr.bf16.mxu0 0
    %2806 = vmatpush1.bf16.msra.mxu0 %v2791
    %2807 = vmatprep.subr.bf16.mxu0 0
    %2808 = vmatpush1.bf16.msra.mxu0 %v2790
    %2809 = vmatprep.subr.bf16.mxu0 0
    %2810 = vmatpush1.bf16.msra.mxu0 %v2789
    %2811 = vmatprep.subr.bf16.mxu0 0
    %2812 = vmatpush1.bf16.msra.mxu0 %v2788
    %2813 = vmatprep.subr.bf16.mxu0 0
    %2814 = vmatpush1.bf16.msra.mxu0 %v2787
    %2815 = vmatprep.subr.bf16.mxu0 0
    %2816 = vmatpush1.bf16.msra.mxu0 %v2786
    %2817 = vmatprep.subr.bf16.mxu0 0
    %2818 = vmatpush1.bf16.msra.mxu0 %v2785
    %2819 = vmatprep.subr.bf16.mxu0 0
    %2820 = vmatpush1.bf16.msra.mxu0 %v2784
    %2821 = vmatprep.subr.bf16.mxu0 0
    %2822 = vmatpush2.bf16.msra.mxu0 0
    %2823 = vmatprep.subr.bf16.mxu0 0
    %2824 = vmatpush2.bf16.msra.mxu0 0
    %2825 = vmatprep.subr.bf16.mxu0 0
    %2826 = vmatpush2.bf16.msra.mxu0 0
    %2827 = vmatprep.subr.bf16.mxu0 0
    %2828 = vmatpush2.bf16.msra.mxu0 0
    %2829 = vmatprep.subr.bf16.mxu0 0
    %2830 = vmatpush2.bf16.msra.mxu0 0
    %2831 = vmatprep.subr.bf16.mxu0 0
    %2832 = vmatpush2.bf16.msra.mxu0 0
    %2833 = vmatprep.subr.bf16.mxu0 0
    %2834 = vmatpush2.bf16.msra.mxu0 0
    %2835 = vmatprep.subr.bf16.mxu0 0
    %2836 = vmatpush2.bf16.msra.mxu0 %v2792
    %2837 = vmatprep.mubr.bf16.mxu0 %v2803
    %2838 = vmatmul.mubr.bf16.gmra.mxu0 %v2739
    %v2839 = vpop.f32.mrf.mxu0
    %v2840 = vadd.f32 0.0, %v2839
    %v2841 = vpop.f32.mrf.mxu0
    %v2842 = vpop.f32.mrf.mxu0
    %v2843 = vpop.f32.mrf.mxu0
    %2844 = vdwg.mxu0
    %v2845 = vadd.f32 %v2700, %v2840
    %v2846 = vld [vmem:[%s5] sm:$0x1]
    %v2848 = vlaneseq
    %v2849 = vshrl.u32 %v2848, 7
    %v2850 = vsub.s32 0, %v2849
    %v2851 = vrot.slane %v2846, %v2850
    %v2853 = vadd.f32 %v2845, %v2851
    %vm2854 = vcmp.ge.f32.partialorder %v2853, 0.0
    %v2855 = vmul.f32 %v2853, 0.2
    %v2856 = vsel %vm2854, %v2853, %v2855
    %v2857 = vpack.c.bf16 %v2856, %v2856
    %s2858 = scalar_lea.vmem %s0, 24
    %v2859 = vld [vmem:[%s2858] sm:$0xf]
    %v2860 = vld [vmem:[%s2] sm:$0xf]
    %v2861 = vld [vmem:[%s2 + $0x4] sm:$0xf]
    %v2862 = vld [vmem:[%s2 + $0x8] sm:$0xf]
    %v2863 = vld [vmem:[%s2 + $0xc] sm:$0xf]
    %v2864 = vld [vmem:[%s2 + $0x10] sm:$0xf]
    %v2865 = vld [vmem:[%s2 + $0x14] sm:$0xf]
    %v2866 = vld [vmem:[%s2 + $0x18] sm:$0xf]
    %v2867 = vld [vmem:[%s2 + $0x1c] sm:$0xf]
    %v2868 = vld [vmem:[%s2 + $0x20] sm:$0xf]
    %v2869 = vld [vmem:[%s2 + $0x24] sm:$0xf]
    %v2870 = vld [vmem:[%s2 + $0x28] sm:$0xf]
    %v2871 = vld [vmem:[%s2 + $0x2c] sm:$0xf]
    %v2872 = vld [vmem:[%s2 + $0x30] sm:$0xf]
    %v2873 = vld [vmem:[%s2 + $0x34] sm:$0xf]
    %v2874 = vld [vmem:[%s2 + $0x38] sm:$0xf]
    %v2875 = vld [vmem:[%s2 + $0x3c] sm:$0xf]
    %s2876 = scalar_lea.vmem %s1, 24
    %v2877 = vld [vmem:[%s2876] sm:$0xf]
    %v2878 = vld [vmem:[%s99] sm:$0xf]
    %v2879 = vld [vmem:[%s99 + $0x4] sm:$0xf]
    %v2880 = vld [vmem:[%s99 + $0x8] sm:$0xf]
    %v2881 = vld [vmem:[%s99 + $0xc] sm:$0xf]
    %v2882 = vld [vmem:[%s99 + $0x10] sm:$0xf]
    %v2883 = vld [vmem:[%s99 + $0x14] sm:$0xf]
    %v2884 = vld [vmem:[%s99 + $0x18] sm:$0xf]
    %v2885 = vld [vmem:[%s99 + $0x1c] sm:$0xf]
    %v2886 = vld [vmem:[%s99 + $0x20] sm:$0xf]
    %v2887 = vld [vmem:[%s99 + $0x24] sm:$0xf]
    %v2888 = vld [vmem:[%s99 + $0x28] sm:$0xf]
    %v2889 = vld [vmem:[%s99 + $0x2c] sm:$0xf]
    %v2890 = vld [vmem:[%s99 + $0x30] sm:$0xf]
    %v2891 = vld [vmem:[%s99 + $0x34] sm:$0xf]
    %v2892 = vld [vmem:[%s99 + $0x38] sm:$0xf]
    %v2893 = vld [vmem:[%s99 + $0x3c] sm:$0xf]
    %v2910 = vunpack.c.l.b16 %v2878
    %v2911 = vunpack.c.l.b16 %v2879
    %v2912 = vunpack.c.l.b16 %v2880
    %v2913 = vunpack.c.l.b16 %v2881
    %v2914 = vunpack.c.l.b16 %v2882
    %v2915 = vunpack.c.l.b16 %v2883
    %v2916 = vunpack.c.l.b16 %v2884
    %v2917 = vunpack.c.l.b16 %v2885
    %v2918 = vunpack.c.l.b16 %v2886
    %v2919 = vunpack.c.l.b16 %v2887
    %v2920 = vunpack.c.l.b16 %v2888
    %v2921 = vunpack.c.l.b16 %v2889
    %v2922 = vunpack.c.l.b16 %v2890
    %v2923 = vunpack.c.l.b16 %v2891
    %v2924 = vunpack.c.l.b16 %v2892
    %v2925 = vunpack.c.l.b16 %v2893
    %v2926 = vpack.c.b16 %v2911, %v2910
    %v2927 = vpack.c.b16 %v2913, %v2912
    %v2928 = vpack.c.b16 %v2915, %v2914
    %v2929 = vpack.c.b16 %v2917, %v2916
    %v2930 = vpack.c.b16 %v2919, %v2918
    %v2931 = vpack.c.b16 %v2921, %v2920
    %v2932 = vpack.c.b16 %v2923, %v2922
    %v2933 = vpack.c.b16 %v2925, %v2924
    %2942 = vmatprep.subr.bf16.mxu0 0
    %2943 = vmatpush1.bf16.msra.mxu0 %v2933
    %2944 = vmatprep.subr.bf16.mxu0 0
    %2945 = vmatpush1.bf16.msra.mxu0 %v2932
    %2946 = vmatprep.subr.bf16.mxu0 0
    %2947 = vmatpush1.bf16.msra.mxu0 %v2931
    %2948 = vmatprep.subr.bf16.mxu0 0
    %2949 = vmatpush1.bf16.msra.mxu0 %v2930
    %2950 = vmatprep.subr.bf16.mxu0 0
    %2951 = vmatpush1.bf16.msra.mxu0 %v2929
    %2952 = vmatprep.subr.bf16.mxu0 0
    %2953 = vmatpush1.bf16.msra.mxu0 %v2928
    %2954 = vmatprep.subr.bf16.mxu0 0
    %2955 = vmatpush1.bf16.msra.mxu0 %v2927
    %2956 = vmatprep.subr.bf16.mxu0 0
    %2957 = vmatpush1.bf16.msra.mxu0 %v2926
    %2958 = vmatprep.subr.bf16.mxu0 0
    %2959 = vmatpush2.bf16.msra.mxu0 0
    %2960 = vmatprep.subr.bf16.mxu0 0
    %2961 = vmatpush2.bf16.msra.mxu0 0
    %2962 = vmatprep.subr.bf16.mxu0 0
    %2963 = vmatpush2.bf16.msra.mxu0 0
    %2964 = vmatprep.subr.bf16.mxu0 0
    %2965 = vmatpush2.bf16.msra.mxu0 0
    %2966 = vmatprep.subr.bf16.mxu0 0
    %2967 = vmatpush2.bf16.msra.mxu0 0
    %2968 = vmatprep.subr.bf16.mxu0 0
    %2969 = vmatpush2.bf16.msra.mxu0 0
    %2970 = vmatprep.subr.bf16.mxu0 0
    %2971 = vmatpush2.bf16.msra.mxu0 0
    %2972 = vmatprep.subr.bf16.mxu0 0
    %2973 = vmatpush2.bf16.msra.mxu0 0
    %2974 = vmatprep.mubr.bf16.mxu0 0
    %2975 = vmatmul.mubr.bf16.gmra.mxu0 %v2877
    %v2976 = vpop.f32.mrf.mxu0
    %v2977 = vadd.f32 0.0, %v2976
    %v2978 = vpop.f32.mrf.mxu0
    %v2979 = vpop.f32.mrf.mxu0
    %v2980 = vpop.f32.mrf.mxu0
    %2981 = vdwg.mxu0
    %v2998 = vunpack.c.l.b16 %v2860
    %v2999 = vunpack.c.l.b16 %v2861
    %v3000 = vunpack.c.l.b16 %v2862
    %v3001 = vunpack.c.l.b16 %v2863
    %v3002 = vunpack.c.l.b16 %v2864
    %v3003 = vunpack.c.l.b16 %v2865
    %v3004 = vunpack.c.l.b16 %v2866
    %v3005 = vunpack.c.l.b16 %v2867
    %v3006 = vunpack.c.l.b16 %v2868
    %v3007 = vunpack.c.l.b16 %v2869
    %v3008 = vunpack.c.l.b16 %v2870
    %v3009 = vunpack.c.l.b16 %v2871
    %v3010 = vunpack.c.l.b16 %v2872
    %v3011 = vunpack.c.l.b16 %v2873
    %v3012 = vunpack.c.l.b16 %v2874
    %v3013 = vunpack.c.l.b16 %v2875
    %v3014 = vpack.c.b16 %v2999, %v2998
    %v3015 = vpack.c.b16 %v3001, %v3000
    %v3016 = vpack.c.b16 %v3003, %v3002
    %v3017 = vpack.c.b16 %v3005, %v3004
    %v3018 = vpack.c.b16 %v3007, %v3006
    %v3019 = vpack.c.b16 %v3009, %v3008
    %v3020 = vpack.c.b16 %v3011, %v3010
    %v3021 = vpack.c.b16 %v3013, %v3012
    %3030 = vmatprep.subr.bf16.mxu0 0
    %3031 = vmatpush1.bf16.msra.mxu0 %v3021
    %3032 = vmatprep.subr.bf16.mxu0 0
    %3033 = vmatpush1.bf16.msra.mxu0 %v3020
    %3034 = vmatprep.subr.bf16.mxu0 0
    %3035 = vmatpush1.bf16.msra.mxu0 %v3019
    %3036 = vmatprep.subr.bf16.mxu0 0
    %3037 = vmatpush1.bf16.msra.mxu0 %v3018
    %3038 = vmatprep.subr.bf16.mxu0 0
    %3039 = vmatpush1.bf16.msra.mxu0 %v3017
    %3040 = vmatprep.subr.bf16.mxu0 0
    %3041 = vmatpush1.bf16.msra.mxu0 %v3016
    %3042 = vmatprep.subr.bf16.mxu0 0
    %3043 = vmatpush1.bf16.msra.mxu0 %v3015
    %3044 = vmatprep.subr.bf16.mxu0 0
    %3045 = vmatpush1.bf16.msra.mxu0 %v3014
    %3046 = vmatprep.subr.bf16.mxu0 0
    %3047 = vmatpush2.bf16.msra.mxu0 0
    %3048 = vmatprep.subr.bf16.mxu0 0
    %3049 = vmatpush2.bf16.msra.mxu0 0
    %3050 = vmatprep.subr.bf16.mxu0 0
    %3051 = vmatpush2.bf16.msra.mxu0 0
    %3052 = vmatprep.subr.bf16.mxu0 0
    %3053 = vmatpush2.bf16.msra.mxu0 0
    %3054 = vmatprep.subr.bf16.mxu0 0
    %3055 = vmatpush2.bf16.msra.mxu0 0
    %3056 = vmatprep.subr.bf16.mxu0 0
    %3057 = vmatpush2.bf16.msra.mxu0 0
    %3058 = vmatprep.subr.bf16.mxu0 0
    %3059 = vmatpush2.bf16.msra.mxu0 0
    %3060 = vmatprep.subr.bf16.mxu0 0
    %3061 = vmatpush2.bf16.msra.mxu0 0
    %3062 = vmatprep.mubr.bf16.mxu0 0
    %3063 = vmatmul.mubr.bf16.gmra.mxu0 %v2859
    %v3064 = vpop.f32.mrf.mxu0
    %v3065 = vadd.f32 %v2977, %v3064
    %v3066 = vpop.f32.mrf.mxu0
    %v3067 = vpop.f32.mrf.mxu0
    %v3068 = vpop.f32.mrf.mxu0
    %3069 = vdwg.mxu0
    %v3070 = vld [vmem:[%s2858] sm:$0xf]
    %v3071 = vld [vmem:[%s2858 + $0x4] sm:$0x1]
    %v3072 = vld [vmem:[%s294] sm:$0xf]
    %v3073 = vld [vmem:[%s294 + $0x4] sm:$0xf]
    %v3074 = vld [vmem:[%s294 + $0x8] sm:$0xf]
    %v3075 = vld [vmem:[%s294 + $0xc] sm:$0xf]
    %v3076 = vld [vmem:[%s294 + $0x10] sm:$0xf]
    %v3077 = vld [vmem:[%s294 + $0x14] sm:$0xf]
    %v3078 = vld [vmem:[%s294 + $0x18] sm:$0xf]
    %v3079 = vld [vmem:[%s294 + $0x1c] sm:$0xf]
    %v3080 = vld [vmem:[%s294 + $0x20] sm:$0xf]
    %v3081 = vld [vmem:[%s294 + $0x24] sm:$0xf]
    %v3082 = vld [vmem:[%s294 + $0x28] sm:$0xf]
    %v3083 = vld [vmem:[%s294 + $0x2c] sm:$0xf]
    %v3084 = vld [vmem:[%s294 + $0x30] sm:$0xf]
    %v3085 = vld [vmem:[%s294 + $0x34] sm:$0xf]
    %v3086 = vld [vmem:[%s294 + $0x38] sm:$0xf]
    %v3087 = vld [vmem:[%s294 + $0x3c] sm:$0xf]
    %v3090 = vunpack.c.l.b16 %v3070
    %v3091 = vunpack.c.l.b16 %v3071
    %v3092 = vpack.c.b16 %v3091, %v3090
    %v3094 = vshrl.u32 %v3092, 16
    %v3096 = vshll.u32 %v3092, 16
    %v3098 = vrot.slane %v3096, 1
    %v3099 = vor.u32 %v3094, %v3098
    %v3117 = vunpack.c.l.b16 %v3072
    %v3118 = vunpack.c.l.b16 %v3073
    %v3119 = vunpack.c.l.b16 %v3074
    %v3120 = vunpack.c.l.b16 %v3075
    %v3121 = vunpack.c.l.b16 %v3076
    %v3122 = vunpack.c.l.b16 %v3077
    %v3123 = vunpack.c.l.b16 %v3078
    %v3124 = vunpack.c.l.b16 %v3079
    %v3125 = vunpack.c.l.b16 %v3080
    %v3126 = vunpack.c.l.b16 %v3081
    %v3127 = vunpack.c.l.b16 %v3082
    %v3128 = vunpack.c.l.b16 %v3083
    %v3129 = vunpack.c.l.b16 %v3084
    %v3130 = vunpack.c.l.b16 %v3085
    %v3131 = vunpack.c.l.b16 %v3086
    %v3132 = vunpack.c.l.b16 %v3087
    %v3133 = vpack.c.b16 %v3118, %v3117
    %v3134 = vpack.c.b16 %v3120, %v3119
    %v3135 = vpack.c.b16 %v3122, %v3121
    %v3136 = vpack.c.b16 %v3124, %v3123
    %v3137 = vpack.c.b16 %v3126, %v3125
    %v3138 = vpack.c.b16 %v3128, %v3127
    %v3139 = vpack.c.b16 %v3130, %v3129
    %v3140 = vpack.c.b16 %v3132, %v3131
    %3149 = vmatprep.subr.bf16.mxu0 0
    %3150 = vmatpush1.bf16.msra.mxu0 %v3140
    %3151 = vmatprep.subr.bf16.mxu0 0
    %3152 = vmatpush1.bf16.msra.mxu0 %v3139
    %3153 = vmatprep.subr.bf16.mxu0 0
    %3154 = vmatpush1.bf16.msra.mxu0 %v3138
    %3155 = vmatprep.subr.bf16.mxu0 0
    %3156 = vmatpush1.bf16.msra.mxu0 %v3137
    %3157 = vmatprep.subr.bf16.mxu0 0
    %3158 = vmatpush1.bf16.msra.mxu0 %v3136
    %3159 = vmatprep.subr.bf16.mxu0 0
    %3160 = vmatpush1.bf16.msra.mxu0 %v3135
    %3161 = vmatprep.subr.bf16.mxu0 0
    %3162 = vmatpush1.bf16.msra.mxu0 %v3134
    %3163 = vmatprep.subr.bf16.mxu0 0
    %3164 = vmatpush1.bf16.msra.mxu0 %v3133
    %3165 = vmatprep.subr.bf16.mxu0 0
    %3166 = vmatpush2.bf16.msra.mxu0 0
    %3167 = vmatprep.subr.bf16.mxu0 0
    %3168 = vmatpush2.bf16.msra.mxu0 0
    %3169 = vmatprep.subr.bf16.mxu0 0
    %3170 = vmatpush2.bf16.msra.mxu0 0
    %3171 = vmatprep.subr.bf16.mxu0 0
    %3172 = vmatpush2.bf16.msra.mxu0 0
    %3173 = vmatprep.subr.bf16.mxu0 0
    %3174 = vmatpush2.bf16.msra.mxu0 0
    %3175 = vmatprep.subr.bf16.mxu0 0
    %3176 = vmatpush2.bf16.msra.mxu0 0
    %3177 = vmatprep.subr.bf16.mxu0 0
    %3178 = vmatpush2.bf16.msra.mxu0 0
    %3179 = vmatprep.subr.bf16.mxu0 0
    %3180 = vmatpush2.bf16.msra.mxu0 0
    %3181 = vmatprep.mubr.bf16.mxu0 0
    %3182 = vmatmul.mubr.bf16.gmra.mxu0 %v3099
    %v3183 = vpop.f32.mrf.mxu0
    %v3184 = vadd.f32 0.0, %v3183
    %v3185 = vpop.f32.mrf.mxu0
    %v3186 = vpop.f32.mrf.mxu0
    %v3187 = vpop.f32.mrf.mxu0
    %3188 = vdwg.mxu0
    %v3189 = vadd.f32 %v3065, %v3184
    %3190 = vmatprep.subr.bf16.mxu0 0
    %3191 = vmatpush1.bf16.msra.mxu0 %v2933
    %3192 = vmatprep.subr.bf16.mxu0 0
    %3193 = vmatpush1.bf16.msra.mxu0 %v2932
    %3194 = vmatprep.subr.bf16.mxu0 0
    %3195 = vmatpush1.bf16.msra.mxu0 %v2931
    %3196 = vmatprep.subr.bf16.mxu0 0
    %3197 = vmatpush1.bf16.msra.mxu0 %v2930
    %3198 = vmatprep.subr.bf16.mxu0 0
    %3199 = vmatpush1.bf16.msra.mxu0 %v2929
    %3200 = vmatprep.subr.bf16.mxu0 0
    %3201 = vmatpush1.bf16.msra.mxu0 %v2928
    %3202 = vmatprep.subr.bf16.mxu0 0
    %3203 = vmatpush1.bf16.msra.mxu0 %v2927
    %3204 = vmatprep.subr.bf16.mxu0 0
    %3205 = vmatpush1.bf16.msra.mxu0 %v2926
    %3206 = vmatprep.subr.bf16.mxu0 0
    %3207 = vmatpush2.bf16.msra.mxu0 0
    %3208 = vmatprep.subr.bf16.mxu0 0
    %3209 = vmatpush2.bf16.msra.mxu0 0
    %3210 = vmatprep.subr.bf16.mxu0 0
    %3211 = vmatpush2.bf16.msra.mxu0 0
    %3212 = vmatprep.subr.bf16.mxu0 0
    %3213 = vmatpush2.bf16.msra.mxu0 0
    %3214 = vmatprep.subr.bf16.mxu0 0
    %3215 = vmatpush2.bf16.msra.mxu0 0
    %3216 = vmatprep.subr.bf16.mxu0 0
    %3217 = vmatpush2.bf16.msra.mxu0 0
    %3218 = vmatprep.subr.bf16.mxu0 0
    %3219 = vmatpush2.bf16.msra.mxu0 0
    %3220 = vmatprep.subr.bf16.mxu0 0
    %3221 = vmatpush2.bf16.msra.mxu0 0
    %3222 = vmatprep.mubr.bf16.mxu0 0
    %3223 = vmatmul.mubr.bf16.gmra.mxu0 %v3099
    %v3224 = vpop.f32.mrf.mxu0
    %v3225 = vadd.f32 0.0, %v3224
    %v3226 = vpop.f32.mrf.mxu0
    %v3227 = vpop.f32.mrf.mxu0
    %v3228 = vpop.f32.mrf.mxu0
    %3229 = vdwg.mxu0
    %3230 = vmatprep.subr.bf16.mxu0 0
    %3231 = vmatpush1.bf16.msra.mxu0 %v3021
    %3232 = vmatprep.subr.bf16.mxu0 0
    %3233 = vmatpush1.bf16.msra.mxu0 %v3020
    %3234 = vmatprep.subr.bf16.mxu0 0
    %3235 = vmatpush1.bf16.msra.mxu0 %v3019
    %3236 = vmatprep.subr.bf16.mxu0 0
    %3237 = vmatpush1.bf16.msra.mxu0 %v3018
    %3238 = vmatprep.subr.bf16.mxu0 0
    %3239 = vmatpush1.bf16.msra.mxu0 %v3017
    %3240 = vmatprep.subr.bf16.mxu0 0
    %3241 = vmatpush1.bf16.msra.mxu0 %v3016
    %3242 = vmatprep.subr.bf16.mxu0 0
    %3243 = vmatpush1.bf16.msra.mxu0 %v3015
    %3244 = vmatprep.subr.bf16.mxu0 0
    %3245 = vmatpush1.bf16.msra.mxu0 %v3014
    %3246 = vmatprep.subr.bf16.mxu0 0
    %3247 = vmatpush2.bf16.msra.mxu0 0
    %3248 = vmatprep.subr.bf16.mxu0 0
    %3249 = vmatpush2.bf16.msra.mxu0 0
    %3250 = vmatprep.subr.bf16.mxu0 0
    %3251 = vmatpush2.bf16.msra.mxu0 0
    %3252 = vmatprep.subr.bf16.mxu0 0
    %3253 = vmatpush2.bf16.msra.mxu0 0
    %3254 = vmatprep.subr.bf16.mxu0 0
    %3255 = vmatpush2.bf16.msra.mxu0 0
    %3256 = vmatprep.subr.bf16.mxu0 0
    %3257 = vmatpush2.bf16.msra.mxu0 0
    %3258 = vmatprep.subr.bf16.mxu0 0
    %3259 = vmatpush2.bf16.msra.mxu0 0
    %3260 = vmatprep.subr.bf16.mxu0 0
    %3261 = vmatpush2.bf16.msra.mxu0 0
    %3262 = vmatprep.mubr.bf16.mxu0 0
    %3263 = vmatmul.mubr.bf16.gmra.mxu0 %v2877
    %v3264 = vpop.f32.mrf.mxu0
    %v3265 = vadd.f32 %v3225, %v3264
    %v3266 = vpop.f32.mrf.mxu0
    %v3267 = vpop.f32.mrf.mxu0
    %v3268 = vpop.f32.mrf.mxu0
    %3269 = vdwg.mxu0
    %v3270 = vld [vmem:[%s2876] sm:$0xf]
    %v3271 = vld [vmem:[%s2876 + $0x4] sm:$0x1]
    %v3274 = vunpack.c.l.b16 %v3270
    %v3275 = vunpack.c.l.b16 %v3271
    %v3276 = vpack.c.b16 %v3275, %v3274
    %v3278 = vshrl.u32 %v3276, 16
    %v3280 = vshll.u32 %v3276, 16
    %v3282 = vrot.slane %v3280, 1
    %v3283 = vor.u32 %v3278, %v3282
    %3285 = vmatprep.subr.bf16.mxu0 0
    %3286 = vmatpush1.bf16.msra.mxu0 %v3140
    %3287 = vmatprep.subr.bf16.mxu0 0
    %3288 = vmatpush1.bf16.msra.mxu0 %v3139
    %3289 = vmatprep.subr.bf16.mxu0 0
    %3290 = vmatpush1.bf16.msra.mxu0 %v3138
    %3291 = vmatprep.subr.bf16.mxu0 0
    %3292 = vmatpush1.bf16.msra.mxu0 %v3137
    %3293 = vmatprep.subr.bf16.mxu0 0
    %3294 = vmatpush1.bf16.msra.mxu0 %v3136
    %3295 = vmatprep.subr.bf16.mxu0 0
    %3296 = vmatpush1.bf16.msra.mxu0 %v3135
    %3297 = vmatprep.subr.bf16.mxu0 0
    %3298 = vmatpush1.bf16.msra.mxu0 %v3134
    %3299 = vmatprep.subr.bf16.mxu0 0
    %3300 = vmatpush1.bf16.msra.mxu0 %v3133
    %3301 = vmatprep.subr.bf16.mxu0 0
    %3302 = vmatpush2.bf16.msra.mxu0 0
    %3303 = vmatprep.subr.bf16.mxu0 0
    %3304 = vmatpush2.bf16.msra.mxu0 0
    %3305 = vmatprep.subr.bf16.mxu0 0
    %3306 = vmatpush2.bf16.msra.mxu0 0
    %3307 = vmatprep.subr.bf16.mxu0 0
    %3308 = vmatpush2.bf16.msra.mxu0 0
    %3309 = vmatprep.subr.bf16.mxu0 0
    %3310 = vmatpush2.bf16.msra.mxu0 0
    %3311 = vmatprep.subr.bf16.mxu0 0
    %3312 = vmatpush2.bf16.msra.mxu0 0
    %3313 = vmatprep.subr.bf16.mxu0 0
    %3314 = vmatpush2.bf16.msra.mxu0 0
    %3315 = vmatprep.subr.bf16.mxu0 0
    %3316 = vmatpush2.bf16.msra.mxu0 0
    %3317 = vmatprep.mubr.bf16.mxu0 0
    %3318 = vmatmul.mubr.bf16.gmra.mxu0 %v3283
    %v3319 = vpop.f32.mrf.mxu0
    %v3320 = vadd.f32 0.0, %v3319
    %v3321 = vpop.f32.mrf.mxu0
    %v3322 = vpop.f32.mrf.mxu0
    %v3323 = vpop.f32.mrf.mxu0
    %3324 = vdwg.mxu0
    %v3325 = vadd.f32 %v3265, %v3320
    %v3326 = vld [vmem:[%s3] sm:$0x1]
    %v3328 = vlaneseq
    %v3329 = vshrl.u32 %v3328, 7
    %v3330 = vsub.s32 0, %v3329
    %v3331 = vrot.slane %v3326, %v3330
    %v3333 = vadd.f32 %v3189, %v3331
    %vm3334 = vcmp.ge.f32.partialorder %v3333, 0.0
    %v3335 = vmul.f32 %v3333, 0.2
    %v3336 = vsel %vm3334, %v3333, %v3335
    %v3337 = vadd.f32 %v3325, %v3331
    %vm3338 = vcmp.ge.f32.partialorder %v3337, 0.0
    %v3339 = vmul.f32 %v3337, 0.2
    %v3340 = vsel %vm3338, %v3337, %v3339
    %v3341 = vpack.c.bf16 %v3340, %v3340
    %v3343 = vunpack.c.l.b16 %v3341
    %v3344 = vpack.c.b16 %v3343, %v3343
    %v3346 = vshrl.u32 %v3344, 16
    %v3348 = vrot.slane %v3346, 7
    %v3349 = vshll.u32 %v3344, 16
    %v3351 = vor.u32 %v3348, %v3349
    %v3352 = vrot.slane %v3348, 4
    %3353 = vrot.lane.b32.xlu0 %v3351, 8
    %v3354 = vpop.permute.xlu0 %3353
    %3355 = vrot.lane.b32.xlu0 %v3352, 8
    %v3356 = vpop.permute.xlu0 %3355
    %v3357 = vrot.slane %v3354, 4
    %v3358 = vrot.slane %v3356, 4
    %v3359 = vsel %vm582, %v3357, %v3354
    %v3360 = vsel %vm582, %v3358, %v3356
    %s3363 = scalar_lea.vmem [#allocation2], 48
    %v3364 = vld [vmem:[%s3363] sm:$0xff]
    %v3365 = vsel %vm593, %v3359, %v3364
    %3366 = vst [vmem:[%s3363] sm:$0xff] %v3365
    %v3367 = vld [vmem:[%s3363 + $0x8] sm:$0x11]
    %v3368 = vsel %vm601, %v3360, %v3367
    %3369 = vst [vmem:[%s3363 + $0x8] sm:$0x11] %v3368
    %v3370 = vpack.c.bf16 %v3336, %v3336
    %v3372 = vunpack.c.l.b16 %v3370
    %v3373 = vpack.c.b16 %v3372, %v3372
    %3374 = vrot.lane.b32.xlu0 %v3373, 8
    %v3375 = vpop.permute.xlu0 %3374
    %v3376 = vrot.slane %v3375, 4
    %v3377 = vsel %vm582, %v3376, %v3375
    %s3379 = scalar_lea.vmem [#allocation3], 48
    %3380 = vst.msk [vmem:[%s3379] sm:$0xff] %vm616, %v3377
    %v3381 = vld [vmem:[%s3363] sm:$0xff]
    %v3382 = vld [vmem:[%s4] sm:$0xf]
    %v3383 = vld [vmem:[%s4 + $0x4] sm:$0xf]
    %v3384 = vld [vmem:[%s4 + $0x8] sm:$0xf]
    %v3385 = vld [vmem:[%s4 + $0xc] sm:$0xf]
    %v3386 = vld [vmem:[%s4 + $0x10] sm:$0xf]
    %v3387 = vld [vmem:[%s4 + $0x14] sm:$0xf]
    %v3388 = vld [vmem:[%s4 + $0x18] sm:$0xf]
    %v3389 = vld [vmem:[%s4 + $0x1c] sm:$0xf]
    %v3390 = vld [vmem:[%s4 + $0x20] sm:$0xf]
    %v3391 = vld [vmem:[%s4 + $0x24] sm:$0xf]
    %v3392 = vld [vmem:[%s4 + $0x28] sm:$0xf]
    %v3393 = vld [vmem:[%s4 + $0x2c] sm:$0xf]
    %v3394 = vld [vmem:[%s4 + $0x30] sm:$0xf]
    %v3395 = vld [vmem:[%s4 + $0x34] sm:$0xf]
    %v3396 = vld [vmem:[%s4 + $0x38] sm:$0xf]
    %v3397 = vld [vmem:[%s4 + $0x3c] sm:$0xf]
    %v3398 = vld [vmem:[%s4 + $0x40] sm:$0xf]
    %v3399 = vld [vmem:[%s4 + $0x44] sm:$0xf]
    %v3400 = vld [vmem:[%s3379] sm:$0xff]
    %v3401 = vld [vmem:[%s638] sm:$0xf]
    %v3402 = vld [vmem:[%s638 + $0x4] sm:$0xf]
    %v3403 = vld [vmem:[%s638 + $0x8] sm:$0xf]
    %v3404 = vld [vmem:[%s638 + $0xc] sm:$0xf]
    %v3405 = vld [vmem:[%s638 + $0x10] sm:$0xf]
    %v3406 = vld [vmem:[%s638 + $0x14] sm:$0xf]
    %v3407 = vld [vmem:[%s638 + $0x18] sm:$0xf]
    %v3408 = vld [vmem:[%s638 + $0x1c] sm:$0xf]
    %v3409 = vld [vmem:[%s638 + $0x20] sm:$0xf]
    %v3410 = vld [vmem:[%s638 + $0x24] sm:$0xf]
    %v3411 = vld [vmem:[%s638 + $0x28] sm:$0xf]
    %v3412 = vld [vmem:[%s638 + $0x2c] sm:$0xf]
    %v3413 = vld [vmem:[%s638 + $0x30] sm:$0xf]
    %v3414 = vld [vmem:[%s638 + $0x34] sm:$0xf]
    %v3415 = vld [vmem:[%s638 + $0x38] sm:$0xf]
    %v3416 = vld [vmem:[%s638 + $0x3c] sm:$0xf]
    %v3417 = vld [vmem:[%s638 + $0x40] sm:$0xf]
    %v3418 = vld [vmem:[%s638 + $0x44] sm:$0xf]
    %v3420 = vunpack.c.l.b16 %v3400
    %v3421 = vunpack.c.h.b16 %v3400
    %v3422 = vpack.c.b16 %v3420, %v3420
    %v3423 = vpack.c.b16 %v3421, %v3421
    %v3443 = vunpack.c.l.b16 %v3401
    %v3444 = vunpack.c.l.b16 %v3402
    %v3445 = vunpack.c.l.b16 %v3403
    %v3446 = vunpack.c.l.b16 %v3404
    %v3447 = vunpack.c.l.b16 %v3405
    %v3448 = vunpack.c.l.b16 %v3406
    %v3449 = vunpack.c.l.b16 %v3407
    %v3450 = vunpack.c.l.b16 %v3408
    %v3451 = vunpack.c.l.b16 %v3409
    %v3452 = vunpack.c.l.b16 %v3410
    %v3453 = vunpack.c.l.b16 %v3411
    %v3454 = vunpack.c.l.b16 %v3412
    %v3455 = vunpack.c.l.b16 %v3413
    %v3456 = vunpack.c.l.b16 %v3414
    %v3457 = vunpack.c.l.b16 %v3415
    %v3458 = vunpack.c.l.b16 %v3416
    %v3459 = vunpack.c.l.b16 %v3417
    %v3460 = vunpack.c.l.b16 %v3418
    %v3461 = vpack.c.b16 %v3444, %v3443
    %v3462 = vpack.c.b16 %v3446, %v3445
    %v3463 = vpack.c.b16 %v3448, %v3447
    %v3464 = vpack.c.b16 %v3450, %v3449
    %v3465 = vpack.c.b16 %v3452, %v3451
    %v3466 = vpack.c.b16 %v3454, %v3453
    %v3467 = vpack.c.b16 %v3456, %v3455
    %v3468 = vpack.c.b16 %v3458, %v3457
    %v3469 = vpack.c.b16 %v3460, %v3459
    %v3480 = vsel %vm717, %v3423, 0
    %3482 = vmatprep.subr.bf16.mxu0 0
    %3483 = vmatpush1.bf16.msra.mxu0 %v3468
    %3484 = vmatprep.subr.bf16.mxu0 0
    %3485 = vmatpush1.bf16.msra.mxu0 %v3467
    %3486 = vmatprep.subr.bf16.mxu0 0
    %3487 = vmatpush1.bf16.msra.mxu0 %v3466
    %3488 = vmatprep.subr.bf16.mxu0 0
    %3489 = vmatpush1.bf16.msra.mxu0 %v3465
    %3490 = vmatprep.subr.bf16.mxu0 0
    %3491 = vmatpush1.bf16.msra.mxu0 %v3464
    %3492 = vmatprep.subr.bf16.mxu0 0
    %3493 = vmatpush1.bf16.msra.mxu0 %v3463
    %3494 = vmatprep.subr.bf16.mxu0 0
    %3495 = vmatpush1.bf16.msra.mxu0 %v3462
    %3496 = vmatprep.subr.bf16.mxu0 0
    %3497 = vmatpush1.bf16.msra.mxu0 %v3461
    %3498 = vmatprep.subr.bf16.mxu0 0
    %3499 = vmatpush2.bf16.msra.mxu0 0
    %3500 = vmatprep.subr.bf16.mxu0 0
    %3501 = vmatpush2.bf16.msra.mxu0 0
    %3502 = vmatprep.subr.bf16.mxu0 0
    %3503 = vmatpush2.bf16.msra.mxu0 0
    %3504 = vmatprep.subr.bf16.mxu0 0
    %3505 = vmatpush2.bf16.msra.mxu0 0
    %3506 = vmatprep.subr.bf16.mxu0 0
    %3507 = vmatpush2.bf16.msra.mxu0 0
    %3508 = vmatprep.subr.bf16.mxu0 0
    %3509 = vmatpush2.bf16.msra.mxu0 0
    %3510 = vmatprep.subr.bf16.mxu0 0
    %3511 = vmatpush2.bf16.msra.mxu0 0
    %3512 = vmatprep.subr.bf16.mxu0 0
    %3513 = vmatpush2.bf16.msra.mxu0 %v3469
    %3514 = vmatprep.mubr.bf16.mxu0 %v3480
    %3515 = vmatmul.mubr.bf16.gmra.mxu0 %v3422
    %v3516 = vpop.f32.mrf.mxu0
    %v3517 = vadd.f32 0.0, %v3516
    %v3518 = vpop.f32.mrf.mxu0
    %v3519 = vpop.f32.mrf.mxu0
    %v3520 = vpop.f32.mrf.mxu0
    %3521 = vdwg.mxu0
    %v3523 = vunpack.c.l.b16 %v3381
    %v3524 = vunpack.c.h.b16 %v3381
    %v3525 = vpack.c.b16 %v3523, %v3523
    %v3526 = vpack.c.b16 %v3524, %v3524
    %v3546 = vunpack.c.l.b16 %v3382
    %v3547 = vunpack.c.l.b16 %v3383
    %v3548 = vunpack.c.l.b16 %v3384
    %v3549 = vunpack.c.l.b16 %v3385
    %v3550 = vunpack.c.l.b16 %v3386
    %v3551 = vunpack.c.l.b16 %v3387
    %v3552 = vunpack.c.l.b16 %v3388
    %v3553 = vunpack.c.l.b16 %v3389
    %v3554 = vunpack.c.l.b16 %v3390
    %v3555 = vunpack.c.l.b16 %v3391
    %v3556 = vunpack.c.l.b16 %v3392
    %v3557 = vunpack.c.l.b16 %v3393
    %v3558 = vunpack.c.l.b16 %v3394
    %v3559 = vunpack.c.l.b16 %v3395
    %v3560 = vunpack.c.l.b16 %v3396
    %v3561 = vunpack.c.l.b16 %v3397
    %v3562 = vunpack.c.l.b16 %v3398
    %v3563 = vunpack.c.l.b16 %v3399
    %v3564 = vpack.c.b16 %v3547, %v3546
    %v3565 = vpack.c.b16 %v3549, %v3548
    %v3566 = vpack.c.b16 %v3551, %v3550
    %v3567 = vpack.c.b16 %v3553, %v3552
    %v3568 = vpack.c.b16 %v3555, %v3554
    %v3569 = vpack.c.b16 %v3557, %v3556
    %v3570 = vpack.c.b16 %v3559, %v3558
    %v3571 = vpack.c.b16 %v3561, %v3560
    %v3572 = vpack.c.b16 %v3563, %v3562
    %v3583 = vsel %vm717, %v3526, 0
    %3585 = vmatprep.subr.bf16.mxu0 0
    %3586 = vmatpush1.bf16.msra.mxu0 %v3571
    %3587 = vmatprep.subr.bf16.mxu0 0
    %3588 = vmatpush1.bf16.msra.mxu0 %v3570
    %3589 = vmatprep.subr.bf16.mxu0 0
    %3590 = vmatpush1.bf16.msra.mxu0 %v3569
    %3591 = vmatprep.subr.bf16.mxu0 0
    %3592 = vmatpush1.bf16.msra.mxu0 %v3568
    %3593 = vmatprep.subr.bf16.mxu0 0
    %3594 = vmatpush1.bf16.msra.mxu0 %v3567
    %3595 = vmatprep.subr.bf16.mxu0 0
    %3596 = vmatpush1.bf16.msra.mxu0 %v3566
    %3597 = vmatprep.subr.bf16.mxu0 0
    %3598 = vmatpush1.bf16.msra.mxu0 %v3565
    %3599 = vmatprep.subr.bf16.mxu0 0
    %3600 = vmatpush1.bf16.msra.mxu0 %v3564
    %3601 = vmatprep.subr.bf16.mxu0 0
    %3602 = vmatpush2.bf16.msra.mxu0 0
    %3603 = vmatprep.subr.bf16.mxu0 0
    %3604 = vmatpush2.bf16.msra.mxu0 0
    %3605 = vmatprep.subr.bf16.mxu0 0
    %3606 = vmatpush2.bf16.msra.mxu0 0
    %3607 = vmatprep.subr.bf16.mxu0 0
    %3608 = vmatpush2.bf16.msra.mxu0 0
    %3609 = vmatprep.subr.bf16.mxu0 0
    %3610 = vmatpush2.bf16.msra.mxu0 0
    %3611 = vmatprep.subr.bf16.mxu0 0
    %3612 = vmatpush2.bf16.msra.mxu0 0
    %3613 = vmatprep.subr.bf16.mxu0 0
    %3614 = vmatpush2.bf16.msra.mxu0 0
    %3615 = vmatprep.subr.bf16.mxu0 0
    %3616 = vmatpush2.bf16.msra.mxu0 %v3572
    %3617 = vmatprep.mubr.bf16.mxu0 %v3583
    %3618 = vmatmul.mubr.bf16.gmra.mxu0 %v3525
    %v3619 = vpop.f32.mrf.mxu0
    %v3620 = vadd.f32 %v3517, %v3619
    %v3621 = vpop.f32.mrf.mxu0
    %v3622 = vpop.f32.mrf.mxu0
    %v3623 = vpop.f32.mrf.mxu0
    %3624 = vdwg.mxu0
    %v3625 = vld [vmem:[%s3363] sm:$0xff]
    %v3626 = vld [vmem:[%s3363 + $0x8] sm:$0x11]
    %v3627 = vld [vmem:[%s866] sm:$0xf]
    %v3628 = vld [vmem:[%s866 + $0x4] sm:$0xf]
    %v3629 = vld [vmem:[%s866 + $0x8] sm:$0xf]
    %v3630 = vld [vmem:[%s866 + $0xc] sm:$0xf]
    %v3631 = vld [vmem:[%s866 + $0x10] sm:$0xf]
    %v3632 = vld [vmem:[%s866 + $0x14] sm:$0xf]
    %v3633 = vld [vmem:[%s866 + $0x18] sm:$0xf]
    %v3634 = vld [vmem:[%s866 + $0x1c] sm:$0xf]
    %v3635 = vld [vmem:[%s866 + $0x20] sm:$0xf]
    %v3636 = vld [vmem:[%s866 + $0x24] sm:$0xf]
    %v3637 = vld [vmem:[%s866 + $0x28] sm:$0xf]
    %v3638 = vld [vmem:[%s866 + $0x2c] sm:$0xf]
    %v3639 = vld [vmem:[%s866 + $0x30] sm:$0xf]
    %v3640 = vld [vmem:[%s866 + $0x34] sm:$0xf]
    %v3641 = vld [vmem:[%s866 + $0x38] sm:$0xf]
    %v3642 = vld [vmem:[%s866 + $0x3c] sm:$0xf]
    %v3643 = vld [vmem:[%s866 + $0x40] sm:$0xf]
    %v3644 = vld [vmem:[%s866 + $0x44] sm:$0xf]
    %v3647 = vunpack.c.l.b16 %v3625
    %v3648 = vunpack.c.h.b16 %v3625
    %v3649 = vunpack.c.l.b16 %v3626
    %v3650 = vunpack.c.h.b16 %v3626
    %v3651 = vpack.c.b16 %v3649, %v3647
    %v3652 = vpack.c.b16 %v3650, %v3648
    %v3654 = vshrl.u32 %v3651, 16
    %v3656 = vshll.u32 %v3651, 16
    %v3658 = vrot.slane %v3656, 1
    %v3659 = vor.u32 %v3654, %v3658
    %v3661 = vshrl.u32 %v3652, 16
    %v3663 = vshll.u32 %v3652, 16
    %v3665 = vrot.slane %v3663, 1
    %v3666 = vor.u32 %v3661, %v3665
    %v3686 = vunpack.c.l.b16 %v3627
    %v3687 = vunpack.c.l.b16 %v3628
    %v3688 = vunpack.c.l.b16 %v3629
    %v3689 = vunpack.c.l.b16 %v3630
    %v3690 = vunpack.c.l.b16 %v3631
    %v3691 = vunpack.c.l.b16 %v3632
    %v3692 = vunpack.c.l.b16 %v3633
    %v3693 = vunpack.c.l.b16 %v3634
    %v3694 = vunpack.c.l.b16 %v3635
    %v3695 = vunpack.c.l.b16 %v3636
    %v3696 = vunpack.c.l.b16 %v3637
    %v3697 = vunpack.c.l.b16 %v3638
    %v3698 = vunpack.c.l.b16 %v3639
    %v3699 = vunpack.c.l.b16 %v3640
    %v3700 = vunpack.c.l.b16 %v3641
    %v3701 = vunpack.c.l.b16 %v3642
    %v3702 = vunpack.c.l.b16 %v3643
    %v3703 = vunpack.c.l.b16 %v3644
    %v3704 = vpack.c.b16 %v3687, %v3686
    %v3705 = vpack.c.b16 %v3689, %v3688
    %v3706 = vpack.c.b16 %v3691, %v3690
    %v3707 = vpack.c.b16 %v3693, %v3692
    %v3708 = vpack.c.b16 %v3695, %v3694
    %v3709 = vpack.c.b16 %v3697, %v3696
    %v3710 = vpack.c.b16 %v3699, %v3698
    %v3711 = vpack.c.b16 %v3701, %v3700
    %v3712 = vpack.c.b16 %v3703, %v3702
    %v3723 = vsel %vm717, %v3666, 0
    %3725 = vmatprep.subr.bf16.mxu0 0
    %3726 = vmatpush1.bf16.msra.mxu0 %v3711
    %3727 = vmatprep.subr.bf16.mxu0 0
    %3728 = vmatpush1.bf16.msra.mxu0 %v3710
    %3729 = vmatprep.subr.bf16.mxu0 0
    %3730 = vmatpush1.bf16.msra.mxu0 %v3709
    %3731 = vmatprep.subr.bf16.mxu0 0
    %3732 = vmatpush1.bf16.msra.mxu0 %v3708
    %3733 = vmatprep.subr.bf16.mxu0 0
    %3734 = vmatpush1.bf16.msra.mxu0 %v3707
    %3735 = vmatprep.subr.bf16.mxu0 0
    %3736 = vmatpush1.bf16.msra.mxu0 %v3706
    %3737 = vmatprep.subr.bf16.mxu0 0
    %3738 = vmatpush1.bf16.msra.mxu0 %v3705
    %3739 = vmatprep.subr.bf16.mxu0 0
    %3740 = vmatpush1.bf16.msra.mxu0 %v3704
    %3741 = vmatprep.subr.bf16.mxu0 0
    %3742 = vmatpush2.bf16.msra.mxu0 0
    %3743 = vmatprep.subr.bf16.mxu0 0
    %3744 = vmatpush2.bf16.msra.mxu0 0
    %3745 = vmatprep.subr.bf16.mxu0 0
    %3746 = vmatpush2.bf16.msra.mxu0 0
    %3747 = vmatprep.subr.bf16.mxu0 0
    %3748 = vmatpush2.bf16.msra.mxu0 0
    %3749 = vmatprep.subr.bf16.mxu0 0
    %3750 = vmatpush2.bf16.msra.mxu0 0
    %3751 = vmatprep.subr.bf16.mxu0 0
    %3752 = vmatpush2.bf16.msra.mxu0 0
    %3753 = vmatprep.subr.bf16.mxu0 0
    %3754 = vmatpush2.bf16.msra.mxu0 0
    %3755 = vmatprep.subr.bf16.mxu0 0
    %3756 = vmatpush2.bf16.msra.mxu0 %v3712
    %3757 = vmatprep.mubr.bf16.mxu0 %v3723
    %3758 = vmatmul.mubr.bf16.gmra.mxu0 %v3659
    %v3759 = vpop.f32.mrf.mxu0
    %v3760 = vadd.f32 0.0, %v3759
    %v3761 = vpop.f32.mrf.mxu0
    %v3762 = vpop.f32.mrf.mxu0
    %v3763 = vpop.f32.mrf.mxu0
    %3764 = vdwg.mxu0
    %v3765 = vadd.f32 %v3620, %v3760
    %v3766 = vld [vmem:[%s5] sm:$0x1]
    %v3768 = vlaneseq
    %v3769 = vshrl.u32 %v3768, 7
    %v3770 = vsub.s32 0, %v3769
    %v3771 = vrot.slane %v3766, %v3770
    %v3773 = vadd.f32 %v3765, %v3771
    %vm3774 = vcmp.ge.f32.partialorder %v3773, 0.0
    %v3775 = vmul.f32 %v3773, 0.2
    %v3776 = vsel %vm3774, %v3773, %v3775
    %v3777 = vpack.c.bf16 %v3776, %v3776
    %v3779 = vshll.u32 %v1937, 16
    %v3783 = vrot.slane %v2857, 7
    %v3785 = vshll.u32 %v3777, 16
    %v3787 = vrot.slane %v3785, 7
    %v3789 = vsel %vm45, %v1017, %v3779
    %vm3790 = vcmask 1040384
    %v3793 = vsel %vm3790, %v3789, %v3783
    %vm3795 = vcmask 1041408
    %vm3796 = vsmask.f32 1280
    %vm3797 = vmand %vm3795, %vm3796
    %v3798 = vsel %vm3797, %v3793, %v3787
    %v3799 = vld [vmem:[%s6] sm:$0xf]
    %v3800 = vld [vmem:[%s6 + $0x4] sm:$0xf]
    %v3801 = vld [vmem:[%s6 + $0x8] sm:$0xf]
    %v3802 = vld [vmem:[%s6 + $0xc] sm:$0xf]
    %v3803 = vld [vmem:[%s6 + $0x10] sm:$0xf]
    %v3804 = vld [vmem:[%s6 + $0x14] sm:$0xf]
    %v3805 = vld [vmem:[%s6 + $0x18] sm:$0xf]
    %v3806 = vld [vmem:[%s6 + $0x1c] sm:$0xf]
    %v3807 = vld [vmem:[%s6 + $0x20] sm:$0xf]
    %v3808 = vld [vmem:[%s6 + $0x24] sm:$0xf]
    %v3809 = vld [vmem:[%s6 + $0x28] sm:$0xf]
    %v3810 = vld [vmem:[%s6 + $0x2c] sm:$0xf]
    %v3811 = vld [vmem:[%s6 + $0x30] sm:$0xf]
    %v3812 = vld [vmem:[%s6 + $0x34] sm:$0xf]
    %v3813 = vld [vmem:[%s6 + $0x38] sm:$0xf]
    %v3814 = vld [vmem:[%s6 + $0x3c] sm:$0xf]
    %v3816 = vshrl.u32 %v1017, 16
    %v3820 = vshrl.u32 %v2857, 16
    %v3822 = vrot.slane %v3820, 7
    %v3824 = vrot.slane %v3777, 7
    %v3826 = vsel %vm45, %v3816, %v1937
    %v3829 = vsel %vm3790, %v3826, %v3822
    %v3831 = vsel %vm3797, %v3829, %v3824
    %s3832 = scalar_lea.vmem %s6, 64
    %v3833 = vld [vmem:[%s3832] sm:$0xf]
    %v3834 = vld [vmem:[%s3832 + $0x4] sm:$0xf]
    %v3835 = vld [vmem:[%s3832 + $0x8] sm:$0xf]
    %v3836 = vld [vmem:[%s3832 + $0xc] sm:$0xf]
    %v3837 = vld [vmem:[%s3832 + $0x10] sm:$0xf]
    %v3838 = vld [vmem:[%s3832 + $0x14] sm:$0xf]
    %v3839 = vld [vmem:[%s3832 + $0x18] sm:$0xf]
    %v3840 = vld [vmem:[%s3832 + $0x1c] sm:$0xf]
    %v3841 = vld [vmem:[%s3832 + $0x20] sm:$0xf]
    %v3842 = vld [vmem:[%s3832 + $0x24] sm:$0xf]
    %v3843 = vld [vmem:[%s3832 + $0x28] sm:$0xf]
    %v3844 = vld [vmem:[%s3832 + $0x2c] sm:$0xf]
    %v3845 = vld [vmem:[%s3832 + $0x30] sm:$0xf]
    %v3846 = vld [vmem:[%s3832 + $0x34] sm:$0xf]
    %v3847 = vld [vmem:[%s3832 + $0x38] sm:$0xf]
    %v3848 = vld [vmem:[%s3832 + $0x3c] sm:$0xf]
    %v3865 = vunpack.c.l.b16 %v3833
    %v3866 = vunpack.c.l.b16 %v3834
    %v3867 = vunpack.c.l.b16 %v3835
    %v3868 = vunpack.c.l.b16 %v3836
    %v3869 = vunpack.c.l.b16 %v3837
    %v3870 = vunpack.c.l.b16 %v3838
    %v3871 = vunpack.c.l.b16 %v3839
    %v3872 = vunpack.c.l.b16 %v3840
    %v3873 = vunpack.c.l.b16 %v3841
    %v3874 = vunpack.c.l.b16 %v3842
    %v3875 = vunpack.c.l.b16 %v3843
    %v3876 = vunpack.c.l.b16 %v3844
    %v3877 = vunpack.c.l.b16 %v3845
    %v3878 = vunpack.c.l.b16 %v3846
    %v3879 = vunpack.c.l.b16 %v3847
    %v3880 = vunpack.c.l.b16 %v3848
    %v3881 = vpack.c.b16 %v3866, %v3865
    %v3882 = vpack.c.b16 %v3868, %v3867
    %v3883 = vpack.c.b16 %v3870, %v3869
    %v3884 = vpack.c.b16 %v3872, %v3871
    %v3885 = vpack.c.b16 %v3874, %v3873
    %v3886 = vpack.c.b16 %v3876, %v3875
    %v3887 = vpack.c.b16 %v3878, %v3877
    %v3888 = vpack.c.b16 %v3880, %v3879
    %3897 = vmatprep.subr.bf16.mxu0 0
    %3898 = vmatpush1.bf16.msra.mxu0 %v3888
    %3899 = vmatprep.subr.bf16.mxu0 0
    %3900 = vmatpush1.bf16.msra.mxu0 %v3887
    %3901 = vmatprep.subr.bf16.mxu0 0
    %3902 = vmatpush1.bf16.msra.mxu0 %v3886
    %3903 = vmatprep.subr.bf16.mxu0 0
    %3904 = vmatpush1.bf16.msra.mxu0 %v3885
    %3905 = vmatprep.subr.bf16.mxu0 0
    %3906 = vmatpush1.bf16.msra.mxu0 %v3884
    %3907 = vmatprep.subr.bf16.mxu0 0
    %3908 = vmatpush1.bf16.msra.mxu0 %v3883
    %3909 = vmatprep.subr.bf16.mxu0 0
    %3910 = vmatpush1.bf16.msra.mxu0 %v3882
    %3911 = vmatprep.subr.bf16.mxu0 0
    %3912 = vmatpush1.bf16.msra.mxu0 %v3881
    %3913 = vmatprep.subr.bf16.mxu0 0
    %3914 = vmatpush2.bf16.msra.mxu0 0
    %3915 = vmatprep.subr.bf16.mxu0 0
    %3916 = vmatpush2.bf16.msra.mxu0 0
    %3917 = vmatprep.subr.bf16.mxu0 0
    %3918 = vmatpush2.bf16.msra.mxu0 0
    %3919 = vmatprep.subr.bf16.mxu0 0
    %3920 = vmatpush2.bf16.msra.mxu0 0
    %3921 = vmatprep.subr.bf16.mxu0 0
    %3922 = vmatpush2.bf16.msra.mxu0 0
    %3923 = vmatprep.subr.bf16.mxu0 0
    %3924 = vmatpush2.bf16.msra.mxu0 0
    %3925 = vmatprep.subr.bf16.mxu0 0
    %3926 = vmatpush2.bf16.msra.mxu0 0
    %3927 = vmatprep.subr.bf16.mxu0 0
    %3928 = vmatpush2.bf16.msra.mxu0 0
    %3929 = vmatprep.mubr.bf16.mxu0 0
    %3930 = vmatmul.mubr.bf16.gmra.mxu0 %v3831
    %v3931 = vpop.f32.mrf.mxu0
    %v3932 = vadd.f32 0.0, %v3931
    %v3933 = vpop.f32.mrf.mxu0
    %v3934 = vpop.f32.mrf.mxu0
    %v3935 = vpop.f32.mrf.mxu0
    %3936 = vdwg.mxu0
    %v3953 = vunpack.c.l.b16 %v3799
    %v3954 = vunpack.c.l.b16 %v3800
    %v3955 = vunpack.c.l.b16 %v3801
    %v3956 = vunpack.c.l.b16 %v3802
    %v3957 = vunpack.c.l.b16 %v3803
    %v3958 = vunpack.c.l.b16 %v3804
    %v3959 = vunpack.c.l.b16 %v3805
    %v3960 = vunpack.c.l.b16 %v3806
    %v3961 = vunpack.c.l.b16 %v3807
    %v3962 = vunpack.c.l.b16 %v3808
    %v3963 = vunpack.c.l.b16 %v3809
    %v3964 = vunpack.c.l.b16 %v3810
    %v3965 = vunpack.c.l.b16 %v3811
    %v3966 = vunpack.c.l.b16 %v3812
    %v3967 = vunpack.c.l.b16 %v3813
    %v3968 = vunpack.c.l.b16 %v3814
    %v3969 = vpack.c.b16 %v3954, %v3953
    %v3970 = vpack.c.b16 %v3956, %v3955
    %v3971 = vpack.c.b16 %v3958, %v3957
    %v3972 = vpack.c.b16 %v3960, %v3959
    %v3973 = vpack.c.b16 %v3962, %v3961
    %v3974 = vpack.c.b16 %v3964, %v3963
    %v3975 = vpack.c.b16 %v3966, %v3965
    %v3976 = vpack.c.b16 %v3968, %v3967
    %3985 = vmatprep.subr.bf16.mxu0 0
    %3986 = vmatpush1.bf16.msra.mxu0 %v3976
    %3987 = vmatprep.subr.bf16.mxu0 0
    %3988 = vmatpush1.bf16.msra.mxu0 %v3975
    %3989 = vmatprep.subr.bf16.mxu0 0
    %3990 = vmatpush1.bf16.msra.mxu0 %v3974
    %3991 = vmatprep.subr.bf16.mxu0 0
    %3992 = vmatpush1.bf16.msra.mxu0 %v3973
    %3993 = vmatprep.subr.bf16.mxu0 0
    %3994 = vmatpush1.bf16.msra.mxu0 %v3972
    %3995 = vmatprep.subr.bf16.mxu0 0
    %3996 = vmatpush1.bf16.msra.mxu0 %v3971
    %3997 = vmatprep.subr.bf16.mxu0 0
    %3998 = vmatpush1.bf16.msra.mxu0 %v3970
    %3999 = vmatprep.subr.bf16.mxu0 0
    %4000 = vmatpush1.bf16.msra.mxu0 %v3969
    %4001 = vmatprep.subr.bf16.mxu0 0
    %4002 = vmatpush2.bf16.msra.mxu0 0
    %4003 = vmatprep.subr.bf16.mxu0 0
    %4004 = vmatpush2.bf16.msra.mxu0 0
    %4005 = vmatprep.subr.bf16.mxu0 0
    %4006 = vmatpush2.bf16.msra.mxu0 0
    %4007 = vmatprep.subr.bf16.mxu0 0
    %4008 = vmatpush2.bf16.msra.mxu0 0
    %4009 = vmatprep.subr.bf16.mxu0 0
    %4010 = vmatpush2.bf16.msra.mxu0 0
    %4011 = vmatprep.subr.bf16.mxu0 0
    %4012 = vmatpush2.bf16.msra.mxu0 0
    %4013 = vmatprep.subr.bf16.mxu0 0
    %4014 = vmatpush2.bf16.msra.mxu0 0
    %4015 = vmatprep.subr.bf16.mxu0 0
    %4016 = vmatpush2.bf16.msra.mxu0 0
    %4017 = vmatprep.mubr.bf16.mxu0 0
    %4018 = vmatmul.mubr.bf16.gmra.mxu0 %v3798
    %v4019 = vpop.f32.mrf.mxu0
    %v4020 = vadd.f32 %v3932, %v4019
    %v4021 = vpop.f32.mrf.mxu0
    %v4022 = vpop.f32.mrf.mxu0
    %v4023 = vpop.f32.mrf.mxu0
    %4024 = vdwg.mxu0
    %v4026 = vrot.slane %v1017, 1
    %v4028 = vrot.slane %v3779, 1
    %v4031 = vsel %vm45, %v4026, %v4028
    %v4033 = vsel %vm3790, %v4031, %v2857
    %v4035 = vsel %vm3797, %v4033, %v3785
    %s4036 = scalar_lea.vmem %s6, 128
    %v4037 = vld [vmem:[%s4036] sm:$0xf]
    %v4038 = vld [vmem:[%s4036 + $0x4] sm:$0xf]
    %v4039 = vld [vmem:[%s4036 + $0x8] sm:$0xf]
    %v4040 = vld [vmem:[%s4036 + $0xc] sm:$0xf]
    %v4041 = vld [vmem:[%s4036 + $0x10] sm:$0xf]
    %v4042 = vld [vmem:[%s4036 + $0x14] sm:$0xf]
    %v4043 = vld [vmem:[%s4036 + $0x18] sm:$0xf]
    %v4044 = vld [vmem:[%s4036 + $0x1c] sm:$0xf]
    %v4045 = vld [vmem:[%s4036 + $0x20] sm:$0xf]
    %v4046 = vld [vmem:[%s4036 + $0x24] sm:$0xf]
    %v4047 = vld [vmem:[%s4036 + $0x28] sm:$0xf]
    %v4048 = vld [vmem:[%s4036 + $0x2c] sm:$0xf]
    %v4049 = vld [vmem:[%s4036 + $0x30] sm:$0xf]
    %v4050 = vld [vmem:[%s4036 + $0x34] sm:$0xf]
    %v4051 = vld [vmem:[%s4036 + $0x38] sm:$0xf]
    %v4052 = vld [vmem:[%s4036 + $0x3c] sm:$0xf]
    %v4069 = vunpack.c.l.b16 %v4037
    %v4070 = vunpack.c.l.b16 %v4038
    %v4071 = vunpack.c.l.b16 %v4039
    %v4072 = vunpack.c.l.b16 %v4040
    %v4073 = vunpack.c.l.b16 %v4041
    %v4074 = vunpack.c.l.b16 %v4042
    %v4075 = vunpack.c.l.b16 %v4043
    %v4076 = vunpack.c.l.b16 %v4044
    %v4077 = vunpack.c.l.b16 %v4045
    %v4078 = vunpack.c.l.b16 %v4046
    %v4079 = vunpack.c.l.b16 %v4047
    %v4080 = vunpack.c.l.b16 %v4048
    %v4081 = vunpack.c.l.b16 %v4049
    %v4082 = vunpack.c.l.b16 %v4050
    %v4083 = vunpack.c.l.b16 %v4051
    %v4084 = vunpack.c.l.b16 %v4052
    %v4085 = vpack.c.b16 %v4070, %v4069
    %v4086 = vpack.c.b16 %v4072, %v4071
    %v4087 = vpack.c.b16 %v4074, %v4073
    %v4088 = vpack.c.b16 %v4076, %v4075
    %v4089 = vpack.c.b16 %v4078, %v4077
    %v4090 = vpack.c.b16 %v4080, %v4079
    %v4091 = vpack.c.b16 %v4082, %v4081
    %v4092 = vpack.c.b16 %v4084, %v4083
    %4101 = vmatprep.subr.bf16.mxu0 0
    %4102 = vmatpush1.bf16.msra.mxu0 %v4092
    %4103 = vmatprep.subr.bf16.mxu0 0
    %4104 = vmatpush1.bf16.msra.mxu0 %v4091
    %4105 = vmatprep.subr.bf16.mxu0 0
    %4106 = vmatpush1.bf16.msra.mxu0 %v4090
    %4107 = vmatprep.subr.bf16.mxu0 0
    %4108 = vmatpush1.bf16.msra.mxu0 %v4089
    %4109 = vmatprep.subr.bf16.mxu0 0
    %4110 = vmatpush1.bf16.msra.mxu0 %v4088
    %4111 = vmatprep.subr.bf16.mxu0 0
    %4112 = vmatpush1.bf16.msra.mxu0 %v4087
    %4113 = vmatprep.subr.bf16.mxu0 0
    %4114 = vmatpush1.bf16.msra.mxu0 %v4086
    %4115 = vmatprep.subr.bf16.mxu0 0
    %4116 = vmatpush1.bf16.msra.mxu0 %v4085
    %4117 = vmatprep.subr.bf16.mxu0 0
    %4118 = vmatpush2.bf16.msra.mxu0 0
    %4119 = vmatprep.subr.bf16.mxu0 0
    %4120 = vmatpush2.bf16.msra.mxu0 0
    %4121 = vmatprep.subr.bf16.mxu0 0
    %4122 = vmatpush2.bf16.msra.mxu0 0
    %4123 = vmatprep.subr.bf16.mxu0 0
    %4124 = vmatpush2.bf16.msra.mxu0 0
    %4125 = vmatprep.subr.bf16.mxu0 0
    %4126 = vmatpush2.bf16.msra.mxu0 0
    %4127 = vmatprep.subr.bf16.mxu0 0
    %4128 = vmatpush2.bf16.msra.mxu0 0
    %4129 = vmatprep.subr.bf16.mxu0 0
    %4130 = vmatpush2.bf16.msra.mxu0 0
    %4131 = vmatprep.subr.bf16.mxu0 0
    %4132 = vmatpush2.bf16.msra.mxu0 0
    %4133 = vmatprep.mubr.bf16.mxu0 0
    %4134 = vmatmul.mubr.bf16.gmra.mxu0 %v4035
    %v4135 = vpop.f32.mrf.mxu0
    %v4136 = vadd.f32 0.0, %v4135
    %v4137 = vpop.f32.mrf.mxu0
    %v4138 = vpop.f32.mrf.mxu0
    %v4139 = vpop.f32.mrf.mxu0
    %4140 = vdwg.mxu0
    %v4141 = vadd.f32 %v4020, %v4136
    %v4142 = vrot.slane %v3816, 1
    %v4145 = vrot.slane %v1937, 1
    %v4147 = vsel %vm45, %v4142, %v4145
    %v4150 = vsel %vm3790, %v4147, %v3820
    %v4152 = vsel %vm3797, %v4150, %v3777
    %s4153 = scalar_lea.vmem %s6, 192
    %v4154 = vld [vmem:[%s4153] sm:$0xf]
    %v4155 = vld [vmem:[%s4153 + $0x4] sm:$0xf]
    %v4156 = vld [vmem:[%s4153 + $0x8] sm:$0xf]
    %v4157 = vld [vmem:[%s4153 + $0xc] sm:$0xf]
    %v4158 = vld [vmem:[%s4153 + $0x10] sm:$0xf]
    %v4159 = vld [vmem:[%s4153 + $0x14] sm:$0xf]
    %v4160 = vld [vmem:[%s4153 + $0x18] sm:$0xf]
    %v4161 = vld [vmem:[%s4153 + $0x1c] sm:$0xf]
    %v4162 = vld [vmem:[%s4153 + $0x20] sm:$0xf]
    %v4163 = vld [vmem:[%s4153 + $0x24] sm:$0xf]
    %v4164 = vld [vmem:[%s4153 + $0x28] sm:$0xf]
    %v4165 = vld [vmem:[%s4153 + $0x2c] sm:$0xf]
    %v4166 = vld [vmem:[%s4153 + $0x30] sm:$0xf]
    %v4167 = vld [vmem:[%s4153 + $0x34] sm:$0xf]
    %v4168 = vld [vmem:[%s4153 + $0x38] sm:$0xf]
    %v4169 = vld [vmem:[%s4153 + $0x3c] sm:$0xf]
    %v4186 = vunpack.c.l.b16 %v4154
    %v4187 = vunpack.c.l.b16 %v4155
    %v4188 = vunpack.c.l.b16 %v4156
    %v4189 = vunpack.c.l.b16 %v4157
    %v4190 = vunpack.c.l.b16 %v4158
    %v4191 = vunpack.c.l.b16 %v4159
    %v4192 = vunpack.c.l.b16 %v4160
    %v4193 = vunpack.c.l.b16 %v4161
    %v4194 = vunpack.c.l.b16 %v4162
    %v4195 = vunpack.c.l.b16 %v4163
    %v4196 = vunpack.c.l.b16 %v4164
    %v4197 = vunpack.c.l.b16 %v4165
    %v4198 = vunpack.c.l.b16 %v4166
    %v4199 = vunpack.c.l.b16 %v4167
    %v4200 = vunpack.c.l.b16 %v4168
    %v4201 = vunpack.c.l.b16 %v4169
    %v4202 = vpack.c.b16 %v4187, %v4186
    %v4203 = vpack.c.b16 %v4189, %v4188
    %v4204 = vpack.c.b16 %v4191, %v4190
    %v4205 = vpack.c.b16 %v4193, %v4192
    %v4206 = vpack.c.b16 %v4195, %v4194
    %v4207 = vpack.c.b16 %v4197, %v4196
    %v4208 = vpack.c.b16 %v4199, %v4198
    %v4209 = vpack.c.b16 %v4201, %v4200
    %4218 = vmatprep.subr.bf16.mxu0 0
    %4219 = vmatpush1.bf16.msra.mxu0 %v4209
    %4220 = vmatprep.subr.bf16.mxu0 0
    %4221 = vmatpush1.bf16.msra.mxu0 %v4208
    %4222 = vmatprep.subr.bf16.mxu0 0
    %4223 = vmatpush1.bf16.msra.mxu0 %v4207
    %4224 = vmatprep.subr.bf16.mxu0 0
    %4225 = vmatpush1.bf16.msra.mxu0 %v4206
    %4226 = vmatprep.subr.bf16.mxu0 0
    %4227 = vmatpush1.bf16.msra.mxu0 %v4205
    %4228 = vmatprep.subr.bf16.mxu0 0
    %4229 = vmatpush1.bf16.msra.mxu0 %v4204
    %4230 = vmatprep.subr.bf16.mxu0 0
    %4231 = vmatpush1.bf16.msra.mxu0 %v4203
    %4232 = vmatprep.subr.bf16.mxu0 0
    %4233 = vmatpush1.bf16.msra.mxu0 %v4202
    %4234 = vmatprep.subr.bf16.mxu0 0
    %4235 = vmatpush2.bf16.msra.mxu0 0
    %4236 = vmatprep.subr.bf16.mxu0 0
    %4237 = vmatpush2.bf16.msra.mxu0 0
    %4238 = vmatprep.subr.bf16.mxu0 0
    %4239 = vmatpush2.bf16.msra.mxu0 0
    %4240 = vmatprep.subr.bf16.mxu0 0
    %4241 = vmatpush2.bf16.msra.mxu0 0
    %4242 = vmatprep.subr.bf16.mxu0 0
    %4243 = vmatpush2.bf16.msra.mxu0 0
    %4244 = vmatprep.subr.bf16.mxu0 0
    %4245 = vmatpush2.bf16.msra.mxu0 0
    %4246 = vmatprep.subr.bf16.mxu0 0
    %4247 = vmatpush2.bf16.msra.mxu0 0
    %4248 = vmatprep.subr.bf16.mxu0 0
    %4249 = vmatpush2.bf16.msra.mxu0 0
    %4250 = vmatprep.mubr.bf16.mxu0 0
    %4251 = vmatmul.mubr.bf16.gmra.mxu0 %v4152
    %v4252 = vpop.f32.mrf.mxu0
    %v4253 = vadd.f32 0.0, %v4252
    %v4254 = vpop.f32.mrf.mxu0
    %v4255 = vpop.f32.mrf.mxu0
    %v4256 = vpop.f32.mrf.mxu0
    %4257 = vdwg.mxu0
    %v4258 = vadd.f32 %v4141, %v4253
    %v4259 = vrot.slane %v1017, 2
    %v4261 = vrot.slane %v3779, 2
    %v4263 = vrot.slane %v2857, 1
    %v4264 = vrot.slane %v3785, 1
    %v4266 = vsel %vm45, %v4259, %v4261
    %v4269 = vsel %vm3790, %v4266, %v4263
    %v4271 = vsel %vm3797, %v4269, %v4264
    %s4272 = scalar_lea.vmem %s6, 256
    %v4273 = vld [vmem:[%s4272] sm:$0xf]
    %v4274 = vld [vmem:[%s4272 + $0x4] sm:$0xf]
    %v4275 = vld [vmem:[%s4272 + $0x8] sm:$0xf]
    %v4276 = vld [vmem:[%s4272 + $0xc] sm:$0xf]
    %v4277 = vld [vmem:[%s4272 + $0x10] sm:$0xf]
    %v4278 = vld [vmem:[%s4272 + $0x14] sm:$0xf]
    %v4279 = vld [vmem:[%s4272 + $0x18] sm:$0xf]
    %v4280 = vld [vmem:[%s4272 + $0x1c] sm:$0xf]
    %v4281 = vld [vmem:[%s4272 + $0x20] sm:$0xf]
    %v4282 = vld [vmem:[%s4272 + $0x24] sm:$0xf]
    %v4283 = vld [vmem:[%s4272 + $0x28] sm:$0xf]
    %v4284 = vld [vmem:[%s4272 + $0x2c] sm:$0xf]
    %v4285 = vld [vmem:[%s4272 + $0x30] sm:$0xf]
    %v4286 = vld [vmem:[%s4272 + $0x34] sm:$0xf]
    %v4287 = vld [vmem:[%s4272 + $0x38] sm:$0xf]
    %v4288 = vld [vmem:[%s4272 + $0x3c] sm:$0xf]
    %v4305 = vunpack.c.l.b16 %v4273
    %v4306 = vunpack.c.l.b16 %v4274
    %v4307 = vunpack.c.l.b16 %v4275
    %v4308 = vunpack.c.l.b16 %v4276
    %v4309 = vunpack.c.l.b16 %v4277
    %v4310 = vunpack.c.l.b16 %v4278
    %v4311 = vunpack.c.l.b16 %v4279
    %v4312 = vunpack.c.l.b16 %v4280
    %v4313 = vunpack.c.l.b16 %v4281
    %v4314 = vunpack.c.l.b16 %v4282
    %v4315 = vunpack.c.l.b16 %v4283
    %v4316 = vunpack.c.l.b16 %v4284
    %v4317 = vunpack.c.l.b16 %v4285
    %v4318 = vunpack.c.l.b16 %v4286
    %v4319 = vunpack.c.l.b16 %v4287
    %v4320 = vunpack.c.l.b16 %v4288
    %v4321 = vpack.c.b16 %v4306, %v4305
    %v4322 = vpack.c.b16 %v4308, %v4307
    %v4323 = vpack.c.b16 %v4310, %v4309
    %v4324 = vpack.c.b16 %v4312, %v4311
    %v4325 = vpack.c.b16 %v4314, %v4313
    %v4326 = vpack.c.b16 %v4316, %v4315
    %v4327 = vpack.c.b16 %v4318, %v4317
    %v4328 = vpack.c.b16 %v4320, %v4319
    %4337 = vmatprep.subr.bf16.mxu0 0
    %4338 = vmatpush1.bf16.msra.mxu0 %v4328
    %4339 = vmatprep.subr.bf16.mxu0 0
    %4340 = vmatpush1.bf16.msra.mxu0 %v4327
    %4341 = vmatprep.subr.bf16.mxu0 0
    %4342 = vmatpush1.bf16.msra.mxu0 %v4326
    %4343 = vmatprep.subr.bf16.mxu0 0
    %4344 = vmatpush1.bf16.msra.mxu0 %v4325
    %4345 = vmatprep.subr.bf16.mxu0 0
    %4346 = vmatpush1.bf16.msra.mxu0 %v4324
    %4347 = vmatprep.subr.bf16.mxu0 0
    %4348 = vmatpush1.bf16.msra.mxu0 %v4323
    %4349 = vmatprep.subr.bf16.mxu0 0
    %4350 = vmatpush1.bf16.msra.mxu0 %v4322
    %4351 = vmatprep.subr.bf16.mxu0 0
    %4352 = vmatpush1.bf16.msra.mxu0 %v4321
    %4353 = vmatprep.subr.bf16.mxu0 0
    %4354 = vmatpush2.bf16.msra.mxu0 0
    %4355 = vmatprep.subr.bf16.mxu0 0
    %4356 = vmatpush2.bf16.msra.mxu0 0
    %4357 = vmatprep.subr.bf16.mxu0 0
    %4358 = vmatpush2.bf16.msra.mxu0 0
    %4359 = vmatprep.subr.bf16.mxu0 0
    %4360 = vmatpush2.bf16.msra.mxu0 0
    %4361 = vmatprep.subr.bf16.mxu0 0
    %4362 = vmatpush2.bf16.msra.mxu0 0
    %4363 = vmatprep.subr.bf16.mxu0 0
    %4364 = vmatpush2.bf16.msra.mxu0 0
    %4365 = vmatprep.subr.bf16.mxu0 0
    %4366 = vmatpush2.bf16.msra.mxu0 0
    %4367 = vmatprep.subr.bf16.mxu0 0
    %4368 = vmatpush2.bf16.msra.mxu0 0
    %4369 = vmatprep.mubr.bf16.mxu0 0
    %4370 = vmatmul.mubr.bf16.gmra.mxu0 %v4271
    %v4371 = vpop.f32.mrf.mxu0
    %v4372 = vadd.f32 0.0, %v4371
    %v4373 = vpop.f32.mrf.mxu0
    %v4374 = vpop.f32.mrf.mxu0
    %v4375 = vpop.f32.mrf.mxu0
    %4376 = vdwg.mxu0
    %v4377 = vadd.f32 %v4258, %v4372
    %v4378 = vrot.slane %v3816, 2
    %v4380 = vrot.slane %v1937, 2
    %v4382 = vrot.slane %v3820, 1
    %v4383 = vrot.slane %v3777, 1
    %v4385 = vsel %vm45, %v4378, %v4380
    %v4388 = vsel %vm3790, %v4385, %v4382
    %v4390 = vsel %vm3797, %v4388, %v4383
    %s4391 = scalar_lea.vmem %s6, 320
    %v4392 = vld [vmem:[%s4391] sm:$0xf]
    %v4393 = vld [vmem:[%s4391 + $0x4] sm:$0xf]
    %v4394 = vld [vmem:[%s4391 + $0x8] sm:$0xf]
    %v4395 = vld [vmem:[%s4391 + $0xc] sm:$0xf]
    %v4396 = vld [vmem:[%s4391 + $0x10] sm:$0xf]
    %v4397 = vld [vmem:[%s4391 + $0x14] sm:$0xf]
    %v4398 = vld [vmem:[%s4391 + $0x18] sm:$0xf]
    %v4399 = vld [vmem:[%s4391 + $0x1c] sm:$0xf]
    %v4400 = vld [vmem:[%s4391 + $0x20] sm:$0xf]
    %v4401 = vld [vmem:[%s4391 + $0x24] sm:$0xf]
    %v4402 = vld [vmem:[%s4391 + $0x28] sm:$0xf]
    %v4403 = vld [vmem:[%s4391 + $0x2c] sm:$0xf]
    %v4404 = vld [vmem:[%s4391 + $0x30] sm:$0xf]
    %v4405 = vld [vmem:[%s4391 + $0x34] sm:$0xf]
    %v4406 = vld [vmem:[%s4391 + $0x38] sm:$0xf]
    %v4407 = vld [vmem:[%s4391 + $0x3c] sm:$0xf]
    %v4424 = vunpack.c.l.b16 %v4392
    %v4425 = vunpack.c.l.b16 %v4393
    %v4426 = vunpack.c.l.b16 %v4394
    %v4427 = vunpack.c.l.b16 %v4395
    %v4428 = vunpack.c.l.b16 %v4396
    %v4429 = vunpack.c.l.b16 %v4397
    %v4430 = vunpack.c.l.b16 %v4398
    %v4431 = vunpack.c.l.b16 %v4399
    %v4432 = vunpack.c.l.b16 %v4400
    %v4433 = vunpack.c.l.b16 %v4401
    %v4434 = vunpack.c.l.b16 %v4402
    %v4435 = vunpack.c.l.b16 %v4403
    %v4436 = vunpack.c.l.b16 %v4404
    %v4437 = vunpack.c.l.b16 %v4405
    %v4438 = vunpack.c.l.b16 %v4406
    %v4439 = vunpack.c.l.b16 %v4407
    %v4440 = vpack.c.b16 %v4425, %v4424
    %v4441 = vpack.c.b16 %v4427, %v4426
    %v4442 = vpack.c.b16 %v4429, %v4428
    %v4443 = vpack.c.b16 %v4431, %v4430
    %v4444 = vpack.c.b16 %v4433, %v4432
    %v4445 = vpack.c.b16 %v4435, %v4434
    %v4446 = vpack.c.b16 %v4437, %v4436
    %v4447 = vpack.c.b16 %v4439, %v4438
    %4456 = vmatprep.subr.bf16.mxu0 0
    %4457 = vmatpush1.bf16.msra.mxu0 %v4447
    %4458 = vmatprep.subr.bf16.mxu0 0
    %4459 = vmatpush1.bf16.msra.mxu0 %v4446
    %4460 = vmatprep.subr.bf16.mxu0 0
    %4461 = vmatpush1.bf16.msra.mxu0 %v4445
    %4462 = vmatprep.subr.bf16.mxu0 0
    %4463 = vmatpush1.bf16.msra.mxu0 %v4444
    %4464 = vmatprep.subr.bf16.mxu0 0
    %4465 = vmatpush1.bf16.msra.mxu0 %v4443
    %4466 = vmatprep.subr.bf16.mxu0 0
    %4467 = vmatpush1.bf16.msra.mxu0 %v4442
    %4468 = vmatprep.subr.bf16.mxu0 0
    %4469 = vmatpush1.bf16.msra.mxu0 %v4441
    %4470 = vmatprep.subr.bf16.mxu0 0
    %4471 = vmatpush1.bf16.msra.mxu0 %v4440
    %4472 = vmatprep.subr.bf16.mxu0 0
    %4473 = vmatpush2.bf16.msra.mxu0 0
    %4474 = vmatprep.subr.bf16.mxu0 0
    %4475 = vmatpush2.bf16.msra.mxu0 0
    %4476 = vmatprep.subr.bf16.mxu0 0
    %4477 = vmatpush2.bf16.msra.mxu0 0
    %4478 = vmatprep.subr.bf16.mxu0 0
    %4479 = vmatpush2.bf16.msra.mxu0 0
    %4480 = vmatprep.subr.bf16.mxu0 0
    %4481 = vmatpush2.bf16.msra.mxu0 0
    %4482 = vmatprep.subr.bf16.mxu0 0
    %4483 = vmatpush2.bf16.msra.mxu0 0
    %4484 = vmatprep.subr.bf16.mxu0 0
    %4485 = vmatpush2.bf16.msra.mxu0 0
    %4486 = vmatprep.subr.bf16.mxu0 0
    %4487 = vmatpush2.bf16.msra.mxu0 0
    %4488 = vmatprep.mubr.bf16.mxu0 0
    %4489 = vmatmul.mubr.bf16.gmra.mxu0 %v4390
    %v4490 = vpop.f32.mrf.mxu0
    %v4491 = vadd.f32 0.0, %v4490
    %v4492 = vpop.f32.mrf.mxu0
    %v4493 = vpop.f32.mrf.mxu0
    %v4494 = vpop.f32.mrf.mxu0
    %4495 = vdwg.mxu0
    %v4496 = vadd.f32 %v4377, %v4491
    %v4497 = vrot.slane %v1017, 3
    %v4499 = vrot.slane %v3779, 3
    %v4501 = vrot.slane %v2857, 2
    %v4502 = vrot.slane %v3785, 2
    %v4504 = vsel %vm45, %v4497, %v4499
    %v4507 = vsel %vm3790, %v4504, %v4501
    %v4509 = vsel %vm3797, %v4507, %v4502
    %s4510 = scalar_lea.vmem %s6, 384
    %v4511 = vld [vmem:[%s4510] sm:$0xf]
    %v4512 = vld [vmem:[%s4510 + $0x4] sm:$0xf]
    %v4513 = vld [vmem:[%s4510 + $0x8] sm:$0xf]
    %v4514 = vld [vmem:[%s4510 + $0xc] sm:$0xf]
    %v4515 = vld [vmem:[%s4510 + $0x10] sm:$0xf]
    %v4516 = vld [vmem:[%s4510 + $0x14] sm:$0xf]
    %v4517 = vld [vmem:[%s4510 + $0x18] sm:$0xf]
    %v4518 = vld [vmem:[%s4510 + $0x1c] sm:$0xf]
    %v4519 = vld [vmem:[%s4510 + $0x20] sm:$0xf]
    %v4520 = vld [vmem:[%s4510 + $0x24] sm:$0xf]
    %v4521 = vld [vmem:[%s4510 + $0x28] sm:$0xf]
    %v4522 = vld [vmem:[%s4510 + $0x2c] sm:$0xf]
    %v4523 = vld [vmem:[%s4510 + $0x30] sm:$0xf]
    %v4524 = vld [vmem:[%s4510 + $0x34] sm:$0xf]
    %v4525 = vld [vmem:[%s4510 + $0x38] sm:$0xf]
    %v4526 = vld [vmem:[%s4510 + $0x3c] sm:$0xf]
    %v4543 = vunpack.c.l.b16 %v4511
    %v4544 = vunpack.c.l.b16 %v4512
    %v4545 = vunpack.c.l.b16 %v4513
    %v4546 = vunpack.c.l.b16 %v4514
    %v4547 = vunpack.c.l.b16 %v4515
    %v4548 = vunpack.c.l.b16 %v4516
    %v4549 = vunpack.c.l.b16 %v4517
    %v4550 = vunpack.c.l.b16 %v4518
    %v4551 = vunpack.c.l.b16 %v4519
    %v4552 = vunpack.c.l.b16 %v4520
    %v4553 = vunpack.c.l.b16 %v4521
    %v4554 = vunpack.c.l.b16 %v4522
    %v4555 = vunpack.c.l.b16 %v4523
    %v4556 = vunpack.c.l.b16 %v4524
    %v4557 = vunpack.c.l.b16 %v4525
    %v4558 = vunpack.c.l.b16 %v4526
    %v4559 = vpack.c.b16 %v4544, %v4543
    %v4560 = vpack.c.b16 %v4546, %v4545
    %v4561 = vpack.c.b16 %v4548, %v4547
    %v4562 = vpack.c.b16 %v4550, %v4549
    %v4563 = vpack.c.b16 %v4552, %v4551
    %v4564 = vpack.c.b16 %v4554, %v4553
    %v4565 = vpack.c.b16 %v4556, %v4555
    %v4566 = vpack.c.b16 %v4558, %v4557
    %4575 = vmatprep.subr.bf16.mxu0 0
    %4576 = vmatpush1.bf16.msra.mxu0 %v4566
    %4577 = vmatprep.subr.bf16.mxu0 0
    %4578 = vmatpush1.bf16.msra.mxu0 %v4565
    %4579 = vmatprep.subr.bf16.mxu0 0
    %4580 = vmatpush1.bf16.msra.mxu0 %v4564
    %4581 = vmatprep.subr.bf16.mxu0 0
    %4582 = vmatpush1.bf16.msra.mxu0 %v4563
    %4583 = vmatprep.subr.bf16.mxu0 0
    %4584 = vmatpush1.bf16.msra.mxu0 %v4562
    %4585 = vmatprep.subr.bf16.mxu0 0
    %4586 = vmatpush1.bf16.msra.mxu0 %v4561
    %4587 = vmatprep.subr.bf16.mxu0 0
    %4588 = vmatpush1.bf16.msra.mxu0 %v4560
    %4589 = vmatprep.subr.bf16.mxu0 0
    %4590 = vmatpush1.bf16.msra.mxu0 %v4559
    %4591 = vmatprep.subr.bf16.mxu0 0
    %4592 = vmatpush2.bf16.msra.mxu0 0
    %4593 = vmatprep.subr.bf16.mxu0 0
    %4594 = vmatpush2.bf16.msra.mxu0 0
    %4595 = vmatprep.subr.bf16.mxu0 0
    %4596 = vmatpush2.bf16.msra.mxu0 0
    %4597 = vmatprep.subr.bf16.mxu0 0
    %4598 = vmatpush2.bf16.msra.mxu0 0
    %4599 = vmatprep.subr.bf16.mxu0 0
    %4600 = vmatpush2.bf16.msra.mxu0 0
    %4601 = vmatprep.subr.bf16.mxu0 0
    %4602 = vmatpush2.bf16.msra.mxu0 0
    %4603 = vmatprep.subr.bf16.mxu0 0
    %4604 = vmatpush2.bf16.msra.mxu0 0
    %4605 = vmatprep.subr.bf16.mxu0 0
    %4606 = vmatpush2.bf16.msra.mxu0 0
    %4607 = vmatprep.mubr.bf16.mxu0 0
    %4608 = vmatmul.mubr.bf16.gmra.mxu0 %v4509
    %v4609 = vpop.f32.mrf.mxu0
    %v4610 = vadd.f32 0.0, %v4609
    %v4611 = vpop.f32.mrf.mxu0
    %v4612 = vpop.f32.mrf.mxu0
    %v4613 = vpop.f32.mrf.mxu0
    %4614 = vdwg.mxu0
    %v4615 = vadd.f32 %v4496, %v4610
    %v4616 = vrot.slane %v3816, 3
    %v4618 = vrot.slane %v1937, 3
    %v4620 = vrot.slane %v3820, 2
    %v4621 = vrot.slane %v3777, 2
    %v4623 = vsel %vm45, %v4616, %v4618
    %v4626 = vsel %vm3790, %v4623, %v4620
    %v4628 = vsel %vm3797, %v4626, %v4621
    %s4629 = scalar_lea.vmem %s6, 448
    %v4630 = vld [vmem:[%s4629] sm:$0xf]
    %v4631 = vld [vmem:[%s4629 + $0x4] sm:$0xf]
    %v4632 = vld [vmem:[%s4629 + $0x8] sm:$0xf]
    %v4633 = vld [vmem:[%s4629 + $0xc] sm:$0xf]
    %v4634 = vld [vmem:[%s4629 + $0x10] sm:$0xf]
    %v4635 = vld [vmem:[%s4629 + $0x14] sm:$0xf]
    %v4636 = vld [vmem:[%s4629 + $0x18] sm:$0xf]
    %v4637 = vld [vmem:[%s4629 + $0x1c] sm:$0xf]
    %v4638 = vld [vmem:[%s4629 + $0x20] sm:$0xf]
    %v4639 = vld [vmem:[%s4629 + $0x24] sm:$0xf]
    %v4640 = vld [vmem:[%s4629 + $0x28] sm:$0xf]
    %v4641 = vld [vmem:[%s4629 + $0x2c] sm:$0xf]
    %v4642 = vld [vmem:[%s4629 + $0x30] sm:$0xf]
    %v4643 = vld [vmem:[%s4629 + $0x34] sm:$0xf]
    %v4644 = vld [vmem:[%s4629 + $0x38] sm:$0xf]
    %v4645 = vld [vmem:[%s4629 + $0x3c] sm:$0xf]
    %v4662 = vunpack.c.l.b16 %v4630
    %v4663 = vunpack.c.l.b16 %v4631
    %v4664 = vunpack.c.l.b16 %v4632
    %v4665 = vunpack.c.l.b16 %v4633
    %v4666 = vunpack.c.l.b16 %v4634
    %v4667 = vunpack.c.l.b16 %v4635
    %v4668 = vunpack.c.l.b16 %v4636
    %v4669 = vunpack.c.l.b16 %v4637
    %v4670 = vunpack.c.l.b16 %v4638
    %v4671 = vunpack.c.l.b16 %v4639
    %v4672 = vunpack.c.l.b16 %v4640
    %v4673 = vunpack.c.l.b16 %v4641
    %v4674 = vunpack.c.l.b16 %v4642
    %v4675 = vunpack.c.l.b16 %v4643
    %v4676 = vunpack.c.l.b16 %v4644
    %v4677 = vunpack.c.l.b16 %v4645
    %v4678 = vpack.c.b16 %v4663, %v4662
    %v4679 = vpack.c.b16 %v4665, %v4664
    %v4680 = vpack.c.b16 %v4667, %v4666
    %v4681 = vpack.c.b16 %v4669, %v4668
    %v4682 = vpack.c.b16 %v4671, %v4670
    %v4683 = vpack.c.b16 %v4673, %v4672
    %v4684 = vpack.c.b16 %v4675, %v4674
    %v4685 = vpack.c.b16 %v4677, %v4676
    %4694 = vmatprep.subr.bf16.mxu0 0
    %4695 = vmatpush1.bf16.msra.mxu0 %v4685
    %4696 = vmatprep.subr.bf16.mxu0 0
    %4697 = vmatpush1.bf16.msra.mxu0 %v4684
    %4698 = vmatprep.subr.bf16.mxu0 0
    %4699 = vmatpush1.bf16.msra.mxu0 %v4683
    %4700 = vmatprep.subr.bf16.mxu0 0
    %4701 = vmatpush1.bf16.msra.mxu0 %v4682
    %4702 = vmatprep.subr.bf16.mxu0 0
    %4703 = vmatpush1.bf16.msra.mxu0 %v4681
    %4704 = vmatprep.subr.bf16.mxu0 0
    %4705 = vmatpush1.bf16.msra.mxu0 %v4680
    %4706 = vmatprep.subr.bf16.mxu0 0
    %4707 = vmatpush1.bf16.msra.mxu0 %v4679
    %4708 = vmatprep.subr.bf16.mxu0 0
    %4709 = vmatpush1.bf16.msra.mxu0 %v4678
    %4710 = vmatprep.subr.bf16.mxu0 0
    %4711 = vmatpush2.bf16.msra.mxu0 0
    %4712 = vmatprep.subr.bf16.mxu0 0
    %4713 = vmatpush2.bf16.msra.mxu0 0
    %4714 = vmatprep.subr.bf16.mxu0 0
    %4715 = vmatpush2.bf16.msra.mxu0 0
    %4716 = vmatprep.subr.bf16.mxu0 0
    %4717 = vmatpush2.bf16.msra.mxu0 0
    %4718 = vmatprep.subr.bf16.mxu0 0
    %4719 = vmatpush2.bf16.msra.mxu0 0
    %4720 = vmatprep.subr.bf16.mxu0 0
    %4721 = vmatpush2.bf16.msra.mxu0 0
    %4722 = vmatprep.subr.bf16.mxu0 0
    %4723 = vmatpush2.bf16.msra.mxu0 0
    %4724 = vmatprep.subr.bf16.mxu0 0
    %4725 = vmatpush2.bf16.msra.mxu0 0
    %4726 = vmatprep.mubr.bf16.mxu0 0
    %4727 = vmatmul.mubr.bf16.gmra.mxu0 %v4628
    %v4728 = vpop.f32.mrf.mxu0
    %v4729 = vadd.f32 0.0, %v4728
    %v4730 = vpop.f32.mrf.mxu0
    %v4731 = vpop.f32.mrf.mxu0
    %v4732 = vpop.f32.mrf.mxu0
    %4733 = vdwg.mxu0
    %v4734 = vadd.f32 %v4615, %v4729
    %v4735 = vld [vmem:[%s7] sm:$0x1]
    %v4737 = vlaneseq
    %v4738 = vshrl.u32 %v4737, 7
    %v4739 = vsub.s32 0, %v4738
    %v4740 = vrot.slane %v4735, %v4739
    %v4742 = vadd.f32 %v4734, %v4740
    %vm4743 = vcmp.ge.f32.partialorder %v4742, 0.0
    %v4744 = vmul.f32 %v4742, 0.2
    %v4745 = vsel %vm4743, %v4742, %v4744
    %v4746 = vld [vmem:[%s8] sm:$0x1]
    %v4748 = vlaneseq
    %v4749 = vshrl.u32 %v4748, 7
    %v4750 = vsub.s32 0, %v4749
    %v4751 = vrot.slane %v4746, %v4750
    %v4753 = vmul.f32 %v4745, %v4751
    %v4754 = vsel %vm39, %v4753, 0.0
    %4755 = vadd.xlane.f32.xlu0 %v4754
    %v4756 = vpop.xlane.xlu0 %4755
    %v4757 = vld [vmem:[#allocation4] sm:$0x1]
    %v4759 = vlaneseq
    %v4760 = vshrl.u32 %v4759, 7
    %v4761 = vsub.s32 0, %v4760
    %v4762 = vrot.slane %v4757, %v4761
    %v4764 = vadd.f32 %v4756, %v4762
    %v4765 = vmax.f32 %v4764, 0.0
    %v4766 = vsub.f32 %v4765, %v4764
    %v4767 = vand.u32 2147483647, %v4764
    %v4768 = vsub.f32 0.0, %v4767
    %v4769 = vmul.f32 %v4768, 1.442695
    %v4770 = vpow.pop %v4769
    %v4771 = vadd.f32 %v4770, 1.0
    %v4772 = vlog2.pop %v4771
    %v4773 = vmul.f32 %v4772, 0.6931472
    %v4774 = vmul.f32 -0.5, %v4770
    %v4775 = vadd.f32 %v4774, 1.0
    %v4776 = vmul.f32 %v4775, %v4770
    %v4777 = vand.u32 2147483647, %v4770
    %vm4778 = vcmp.lt.f32.partialorder %v4777, 0.0004427343
    %v4779 = vsel %vm4778, %v4776, %v4773
    %v4780 = vadd.f32 %v4766, %v4779
    %vm4781 = vcmask 1024
    %v4782 = vsel %vm4781, %v4780, 0.0
    %4783 = vadd.xlane.f32.xlu0 %v4782
    %v4784 = vpop.xlane.xlu0 %4783
    %v4785 = vrot.slane %v4784, 4
    %v4786 = vadd.f32 %v4784, %v4785
    %v4787 = vrot.slane %v4786, 2
    %v4788 = vadd.f32 %v4786, %v4787
    %v4789 = vrot.slane %v4788, 1
    %v4790 = vadd.f32 %v4788, %v4789
    %s4791 = vtos %v4790
    %s4792 = smul.f32 %s4791, 0.5
    %s4793 = scalar_lea.smem [#allocation5], 0
    %4794 = sst [smem:[%s4793]] %s4792
    %v4796 = vrot.slane %v4780, 2
    %v4798 = vsel %vm4781, %v4796, 0.0
    %4799 = vadd.xlane.f32.xlu0 %v4798
    %v4800 = vpop.xlane.xlu0 %4799
    %v4801 = vrot.slane %v4800, 4
    %v4802 = vadd.f32 %v4800, %v4801
    %v4803 = vrot.slane %v4802, 2
    %v4804 = vadd.f32 %v4802, %v4803
    %v4805 = vrot.slane %v4804, 1
    %v4806 = vadd.f32 %v4804, %v4805
    %s4807 = vtos %v4806
    %s4808 = smul.f32 %s4807, 0.5
    %s4809 = scalar_lea.smem [#allocation5], 1
    %4810 = sst [smem:[%s4809]] %s4808
    %v4811 = vmul.f32 %v4764, 0.0
    %v4812 = vsub.f32 %v4765, %v4811
    %v4813 = vadd.f32 %v4812, %v4779
    %v4814 = vsel %vm4781, %v4813, 0.0
    %4815 = vadd.xlane.f32.xlu0 %v4814
    %v4816 = vpop.xlane.xlu0 %4815
    %v4817 = vrot.slane %v4816, 4
    %v4818 = vadd.f32 %v4816, %v4817
    %v4819 = vrot.slane %v4818, 2
    %v4820 = vadd.f32 %v4818, %v4819
    %v4821 = vrot.slane %v4820, 1
    %v4822 = vadd.f32 %v4820, %v4821
    %s4823 = vtos %v4822
    %s4824 = smul.f32 %s4823, 0.5
    %s4825 = scalar_lea.smem [#allocation5], 2
    %4826 = sst [smem:[%s4825]] %s4824
    // Predicated region
    $region42: #{adversarial_forward.1} parent=1 // pred_check
      _
    $region43: #{adversarial_forward.1} parent=1 // pred_check_branch
      %4828 = sbr.rel (0) target = $region45
    $region44: #{adversarial_forward.1} parent=1 // pred_region
      %s4830 = ssub.s32 16, 16
      %4831 = vsyncadd [#allocation6], %s4830
      %s4833 = sshll.u32 %s10, 4
      %s4834 = int_to_ptr.vmem [resolvable:$true] %s4833
      %4836 = dma.smem_to_vmem [#allocation5], 16, %s4834, [#allocation6]
    $region45: #{adversarial_forward.1} parent=1 // pred_fallthru
      _
    // Predicated region
    $region46: #{adversarial_forward.1} parent=1 // pred_check
      _
    $region47: #{adversarial_forward.1} parent=1 // pred_check_branch
      %4838 = sbr.rel (0) target = $region49
    $region48: #{adversarial_forward.1} parent=1 // pred_region
      %4839 = dma.done [#allocation6], 16
    $region49: #{adversarial_forward.1} parent=1 // pred_fallthru
      _
    %4840 = sfence
    %4841 = vsyncpa [#allocation6], 1

</llo_original>
